<compile_context>
chip_gen: v5e
topology: v5e:2x2
jax: 0.10.0
libtpu: 0.0.40
codegen_flags: <defaults>
</compile_context>

<pallas_src>
import functools

import jax
import jax.numpy as jnp
from jax.experimental import pallas as pl
from jax.experimental.pallas import tpu as pltpu


OUT_PAD = 128  # packed per-step output width: [mel (n_mels) | gate (1) | zeros]


# ------------------------------ Pallas kernel ------------------------------ #
def _decoder_kernel(
    ctx_ref,                                            # (CHUNK, BB, ENC)  contexts for this chunk
    start_ref,                                          # (1, PRENET)       decoder_start
    wp1_ref, bp1_ref, wp2_ref, bp2_ref,                 # prenet (wp1 zero-padded to OUT_PAD rows)
    wih_p_ref, wih_e_ref, whh_ref, b_lstm_ref,          # LSTMCell weights (bf16) + bias (f32)
    w_head_ref, b_head_ref,                             # fused mel|gate head, padded to OUT_PAD
    h0_ref, c0_ref,                                     # initial state
    out_ref,                                            # (CHUNK, BB, OUT_PAD) packed outputs
    h_ref, c_ref,                                       # (BB, DEC) state carry (VMEM-resident)
    prev_sc,                                            # (BB, OUT_PAD) previous packed frame
    *, n_mels,
):
    t_blk = pl.program_id(1)            # time-chunk index (innermost grid axis)
    chunk = ctx_ref.shape[0]
    H = h_ref.shape[-1]
    BB = h_ref.shape[0]
    bf16 = jnp.bfloat16

    # ---- first chunk of this batch shard: load initial state ----
    @pl.when(t_blk == 0)
    def _init():
        h_ref[...] = h0_ref[...]
        c_ref[...] = c0_ref[...]
        prev_sc[...] = jnp.zeros_like(prev_sc)

    start_b = jnp.broadcast_to(start_ref[...], (BB, start_ref.shape[-1]))

    def step(s, carry):
        # ---- prenet on the previously generated packed frame ----
        # prev_sc holds [mel | gate | 0-pad]; wp1 is zero-padded past the
        # n_mels rows, so the gate / padding lanes contribute nothing.
        p1 = jnp.maximum(
            jnp.dot(prev_sc[...].astype(bf16), wp1_ref[...],
                    preferred_element_type=jnp.float32) + bp1_ref[...], 0.0)
        p2 = jnp.maximum(
            jnp.dot(p1.astype(bf16), wp2_ref[...],
                    preferred_element_type=jnp.float32) + bp2_ref[...], 0.0)
        # Step 0 of the whole sequence uses the learned decoder_start instead.
        is_first = jnp.logical_and(t_blk == 0, s == 0)
        x_pre = jnp.where(is_first, start_b, p2)

        # ---- LSTMCell: three small dots accumulated in f32 (no concat) ----
        ctx_t = ctx_ref[s]                                   # (BB, ENC)
        gates = (
            jnp.dot(x_pre.astype(bf16), wih_p_ref[...],
                    preferred_element_type=jnp.float32)
            + jnp.dot(ctx_t.astype(bf16), wih_e_ref[...],
                      preferred_element_type=jnp.float32)
            + jnp.dot(h_ref[...].astype(bf16), whh_ref[...],
                      preferred_element_type=jnp.float32)
            + b_lstm_ref[...])                               # (BB, 4H), PyTorch order i,f,g,o
        i = jax.nn.sigmoid(gates[:, 0 * H:1 * H])
        f = jax.nn.sigmoid(gates[:, 1 * H:2 * H])
        g = jnp.tanh(gates[:, 2 * H:3 * H])
        o = jax.nn.sigmoid(gates[:, 3 * H:4 * H])

        c_new = f * c_ref[...] + i * g
        h_new = o * jnp.tanh(c_new)
        c_ref[...] = c_new
        h_ref[...] = h_new

        # ---- fused output heads: one MXU pass, one lane-dense 128-wide store ----
        heads = (jnp.dot(h_new.astype(bf16), w_head_ref[...],
                         preferred_element_type=jnp.float32)
                 + b_head_ref[...])                          # (BB, OUT_PAD)
        col = jax.lax.broadcasted_iota(jnp.int32, heads.shape, 1)
        packed = jnp.where(col == n_mels, jax.nn.sigmoid(heads), heads)
        out_ref[s] = packed
        prev_sc[...] = packed                                # feed back into the next step
        return carry

    jax.lax.fori_loop(0, chunk, step, 0, unroll=True)


# --------------------------- host-side param prep --------------------------- #
def pack_params(p):
    """Fuse / pad / bf16-cast the natural parameter set into kernel-ready arrays."""
    n_mels, prenet = p["wp1"].shape
    dec = p["whh"].shape[0]
    wp1_pad = jnp.zeros((OUT_PAD, prenet), jnp.float32).at[:n_mels, :].set(p["wp1"])
    w_head = (jnp.zeros((dec, OUT_PAD), jnp.float32)
              .at[:, :n_mels].set(p["wout"])
              .at[:, n_mels:n_mels + 1].set(p["wgate"]))
    b_head = (jnp.zeros((1, OUT_PAD), jnp.float32)
              .at[:, :n_mels].set(p["bout"])
              .at[:, n_mels:n_mels + 1].set(p["bgate"]))
    bf = lambda a: a.astype(jnp.bfloat16)        # weights -> bf16 (MXU); biases stay f32
    return {
        "start": p["start"],
        "wp1_pad": bf(wp1_pad), "bp1": p["bp1"],
        "wp2": bf(p["wp2"]), "bp2": p["bp2"],
        "wih_p": bf(p["wih_p"]), "wih_e": bf(p["wih_e"]), "whh": bf(p["whh"]),
        "b_lstm": p["b_lstm"],
        "w_head": bf(w_head), "b_head": b_head,
    }


# ------------------------------ host wrapper ------------------------------- #
def decoder_generate(context_seq, h0, c0, kp, *, n_mels, chunk=8, batch_block=None):
    """Run T autoregressive decoder steps inside one pallas_call.

    context_seq: (T, B, ENC).  Returns (mel (T,B,n_mels), gate (T,B,1), h_T, c_T).
    """
    T, B, ENC = context_seq.shape
    DEC = h0.shape[-1]
    PRENET = kp["start"].shape[-1]
    BB = B if batch_block is None else batch_block
    assert T % chunk == 0, "T must be a multiple of the time chunk"
    assert B % BB == 0 and BB >= 8, "batch shard must be a multiple of 8 rows"

    kernel = functools.partial(_decoder_kernel, n_mels=n_mels)
    const = lambda b, t: (0, 0)    # constant block -> loaded once, stays resident in VMEM

    in_specs = [
        pl.BlockSpec((chunk, BB, ENC), lambda b, t: (t, b, 0)),   # per-chunk contexts
        pl.BlockSpec((1, PRENET), const),                         # decoder_start
        pl.BlockSpec((OUT_PAD, PRENET), const),                   # wp1 (padded, bf16)
        pl.BlockSpec((1, PRENET), const),                         # bp1
        pl.BlockSpec((PRENET, PRENET), const),                    # wp2 (bf16)
        pl.BlockSpec((1, PRENET), const),                         # bp2
        pl.BlockSpec((PRENET, 4 * DEC), const),                   # W_ih (prenet half, bf16)
        pl.BlockSpec((ENC, 4 * DEC), const),                      # W_ih (encoder half, bf16)
        pl.BlockSpec((DEC, 4 * DEC), const),                      # W_hh (bf16)
        pl.BlockSpec((1, 4 * DEC), const),                        # LSTM bias
        pl.BlockSpec((DEC, OUT_PAD), const),                      # fused head weight (bf16)
        pl.BlockSpec((1, OUT_PAD), const),                        # fused head bias
        pl.BlockSpec((BB, DEC), lambda b, t: (b, 0)),             # h0
        pl.BlockSpec((BB, DEC), lambda b, t: (b, 0)),             # c0
    ]
    out_specs = (
        pl.BlockSpec((chunk, BB, OUT_PAD), lambda b, t: (t, b, 0)),  # packed [mel|gate|pad]
        pl.BlockSpec((BB, DEC), lambda b, t: (b, 0)),                # final h (VMEM carry)
        pl.BlockSpec((BB, DEC), lambda b, t: (b, 0)),                # final c (VMEM carry)
    )
    out_shape = (
        jax.ShapeDtypeStruct((T, B, OUT_PAD), jnp.float32),
        jax.ShapeDtypeStruct((B, DEC), jnp.float32),
        jax.ShapeDtypeStruct((B, DEC), jnp.float32),
    )
    scratch_shapes = [
        pltpu.VMEM((BB, OUT_PAD), jnp.float32),   # previous packed frame (feedback)
    ]

    packed, h_T, c_T = pl.pallas_call(
        kernel,
        out_shape=out_shape,
        grid_spec=pltpu.PrefetchScalarGridSpec(
            num_scalar_prefetch=0,
            grid=(B // BB, T // chunk),
            in_specs=in_specs,
            out_specs=out_specs,
            scratch_shapes=scratch_shapes),
        compiler_params=pltpu.CompilerParams(
            # batch shards are independent (megacore); time is recurrent
            dimension_semantics=("parallel", "arbitrary"),
            vmem_limit_bytes=32 * 1024 * 1024),
    )(context_seq, kp["start"], kp["wp1_pad"], kp["bp1"], kp["wp2"], kp["bp2"],
      kp["wih_p"], kp["wih_e"], kp["whh"], kp["b_lstm"],
      kp["w_head"], kp["b_head"], h0, c0)

    mel = packed[:, :, :n_mels]
    gate = packed[:, :, n_mels:n_mels + 1]
    return mel, gate, h_T, c_T


# --------------------------- pure-JAX reference ---------------------------- #
def decoder_step_ref(first_step, prev_mel, context, h, c, p):
    p1 = jnp.maximum(prev_mel @ p["wp1"] + p["bp1"], 0.0)
    p2 = jnp.maximum(p1 @ p["wp2"] + p["bp2"], 0.0)
    x_pre = jnp.where(first_step, jnp.broadcast_to(p["start"], p2.shape), p2)
    gates = x_pre @ p["wih_p"] + context @ p["wih_e"] + h @ p["whh"] + p["b_lstm"]
    H = h.shape[1]
    i = jax.nn.sigmoid(gates[:, 0 * H:1 * H])
    f = jax.nn.sigmoid(gates[:, 1 * H:2 * H])
    g = jnp.tanh(gates[:, 2 * H:3 * H])
    o = jax.nn.sigmoid(gates[:, 3 * H:4 * H])
    c_new = f * c + i * g
    h_new = o * jnp.tanh(c_new)
    mel = h_new @ p["wout"] + p["bout"]
    gate = jax.nn.sigmoid(h_new @ p["wgate"] + p["bgate"])
    return mel, gate, h_new, c_new


def decoder_generate_ref(context_seq, h0, c0, p):
    T, B, _ = context_seq.shape
    n_mels = p["wp1"].shape[0]
    h, c = h0, c0
    prev_mel = jnp.zeros((B, n_mels), jnp.float32)
    mels, gates = [], []
    for t in range(T):
        mel, gate, h, c = decoder_step_ref(t == 0, prev_mel, context_seq[t], h, c, p)
        mels.append(mel)
        gates.append(gate)
        prev_mel = mel
    return jnp.stack(mels), jnp.stack(gates), h, c


# --------------------------------- main ------------------------------------ #
if __name__ == "__main__":
    # Small shapes consistent with the module's __init__.
    T = 16           # autoregressive decoding steps (2 time chunks of 8)
    B = 8            # batch
    N_MELS = 16      # mel spectrogram channels
    PRENET = 32      # args.prenet_dim
    ENC = 32         # args.encoder_dim
    DEC = 32         # args.decoder_dim

    key = jax.random.PRNGKey(0)
    ks = jax.random.split(key, 16)
    rnd = lambda k, shape: (0.1 * jax.random.normal(k, shape)).astype(jnp.float32)

    base_params = {
        # prenet (weights stored [in, out])
        "wp1": rnd(ks[0], (N_MELS, PRENET)), "bp1": rnd(ks[1], (1, PRENET)),
        "wp2": rnd(ks[2], (PRENET, PRENET)), "bp2": rnd(ks[3], (1, PRENET)),
        # decoder_start parameter (prenet_dim,), kept 2D for lane layout
        "start": rnd(ks[4], (1, PRENET)),
        # LSTMCell: W_ih split into prenet / encoder halves, b = b_ih + b_hh
        # (real PyTorch weights must be transposed to (in, 4H) and biases summed)
        "wih_p": rnd(ks[5], (PRENET, 4 * DEC)),
        "wih_e": rnd(ks[6], (ENC, 4 * DEC)),
        "whh": rnd(ks[7], (DEC, 4 * DEC)),
        "b_lstm": rnd(ks[8], (1, 4 * DEC)),
        # output / gate heads
        "wout": rnd(ks[9], (DEC, N_MELS)), "bout": rnd(ks[10], (1, N_MELS)),
        "wgate": rnd(ks[11], (DEC, 1)), "bgate": rnd(ks[12], (1, 1)),
    }
    kernel_params = pack_params(base_params)

    context_seq = rnd(ks[13], (T, B, ENC))   # per-step attention context
    h0 = jnp.zeros((B, DEC), jnp.float32)
    c0 = jnp.zeros((B, DEC), jnp.float32)

    run = jax.jit(functools.partial(decoder_generate, n_mels=N_MELS, chunk=8))
    mel, gate, h_T, c_T = run(context_seq, h0, c0, kernel_params)
    jax.block_until_ready((mel, gate, h_T, c_T))

    # Verify against a pure-JAX per-step reference on the unfused f32 parameters.
    # Tolerance is loosened because the kernel stores weights / feeds the MXU in bf16.
    r_mel, r_gate, r_h, r_c = decoder_generate_ref(context_seq, h0, c0, base_params)
    for got, want in [(mel, r_mel), (gate, r_gate), (h_T, r_h), (c_T, r_c)]:
        assert got.shape == want.shape, "shape mismatch vs reference"
        assert jnp.allclose(got, want, atol=3e-2, rtol=3e-2), "mismatch vs reference"

    print("KERNEL_OK")
</pallas_src>

<mosaic_0001>
module attributes {stable_mosaic.version = 11 : i64} {
  func.func @_decoder_kernel(%arg0: i32, %arg1: i32, %arg2: memref<8x8x32xf32, #tpu.memory_space<vmem>>, %arg3: memref<1x32xf32, #tpu.memory_space<vmem>>, %arg4: memref<128x32xbf16, #tpu.memory_space<vmem>>, %arg5: memref<1x32xf32, #tpu.memory_space<vmem>>, %arg6: memref<32x32xbf16, #tpu.memory_space<vmem>>, %arg7: memref<1x32xf32, #tpu.memory_space<vmem>>, %arg8: memref<32x128xbf16, #tpu.memory_space<vmem>>, %arg9: memref<32x128xbf16, #tpu.memory_space<vmem>>, %arg10: memref<32x128xbf16, #tpu.memory_space<vmem>>, %arg11: memref<1x128xf32, #tpu.memory_space<vmem>>, %arg12: memref<32x128xbf16, #tpu.memory_space<vmem>>, %arg13: memref<1x128xf32, #tpu.memory_space<vmem>>, %arg14: memref<8x32xf32, #tpu.memory_space<vmem>>, %arg15: memref<8x32xf32, #tpu.memory_space<vmem>>, %arg16: memref<8x8x128xf32, #tpu.memory_space<vmem>>, %arg17: memref<8x32xf32, #tpu.memory_space<vmem>>, %arg18: memref<8x32xf32, #tpu.memory_space<vmem>>, %arg19: memref<8x128xf32, #tpu.memory_space<vmem>>) attributes {dimension_semantics = [#tpu.dimension_semantics<parallel>, #tpu.dimension_semantics<arbitrary>], iteration_bounds = array<i64: 1, 2>, scalar_prefetch = 0 : i64, scratch_operands = 1 : i64, tpu.core_type = #tpu.core_type<tc>, window_params = [{transform_indices = @transform_0, window_bounds = array<i64: 8, 8, 32>}, {pipeline_mode = #tpu.pipeline_mode<synchronous>, transform_indices = @transform_1, window_bounds = array<i64: 1, 32>}, {pipeline_mode = #tpu.pipeline_mode<synchronous>, transform_indices = @transform_2, window_bounds = array<i64: 128, 32>}, {pipeline_mode = #tpu.pipeline_mode<synchronous>, transform_indices = @transform_3, window_bounds = array<i64: 1, 32>}, {pipeline_mode = #tpu.pipeline_mode<synchronous>, transform_indices = @transform_4, window_bounds = array<i64: 32, 32>}, {pipeline_mode = #tpu.pipeline_mode<synchronous>, transform_indices = @transform_5, window_bounds = array<i64: 1, 32>}, {pipeline_mode = #tpu.pipeline_mode<synchronous>, transform_indices = @transform_6, window_bounds = array<i64: 32, 128>}, {pipeline_mode = #tpu.pipeline_mode<synchronous>, transform_indices = @transform_7, window_bounds = array<i64: 32, 128>}, {pipeline_mode = #tpu.pipeline_mode<synchronous>, transform_indices = @transform_8, window_bounds = array<i64: 32, 128>}, {pipeline_mode = #tpu.pipeline_mode<synchronous>, transform_indices = @transform_9, window_bounds = array<i64: 1, 128>}, {pipeline_mode = #tpu.pipeline_mode<synchronous>, transform_indices = @transform_10, window_bounds = array<i64: 32, 128>}, {pipeline_mode = #tpu.pipeline_mode<synchronous>, transform_indices = @transform_11, window_bounds = array<i64: 1, 128>}, {transform_indices = @transform_12, window_bounds = array<i64: 8, 32>}, {transform_indices = @transform_13, window_bounds = array<i64: 8, 32>}, {transform_indices = @transform_14, window_bounds = array<i64: 8, 8, 128>}, {transform_indices = @transform_15, window_bounds = array<i64: 8, 32>}, {transform_indices = @transform_16, window_bounds = array<i64: 8, 32>}]} {
    %c0_i32 = arith.constant 0 : i32
    %0 = arith.cmpi eq, %arg1, %c0_i32 : i32
    %1 = arith.extui %0 : i1 to i32
    %c0_i32_0 = arith.constant 0 : i32
    %2 = arith.cmpi ne, %1, %c0_i32_0 : i32
    scf.if %2 {
      %c0_409 = arith.constant 0 : index
      %c0_410 = arith.constant 0 : index
      %702 = vector.load %arg14[%c0_409, %c0_410] : memref<8x32xf32, #tpu.memory_space<vmem>>, vector<8x32xf32>
      %c0_411 = arith.constant 0 : index
      %c0_412 = arith.constant 0 : index
      %703 = vector.load %arg17[%c0_411, %c0_412] : memref<8x32xf32, #tpu.memory_space<vmem>>, vector<8x32xf32>
      tpu.vector_store %arg17[%c0_411, %c0_412], %702 {strides = array<i32>} : memref<8x32xf32, #tpu.memory_space<vmem>>, vector<8x32xf32>,
      %c0_413 = arith.constant 0 : index
      %c0_414 = arith.constant 0 : index
      %704 = vector.load %arg15[%c0_413, %c0_414] : memref<8x32xf32, #tpu.memory_space<vmem>>, vector<8x32xf32>
      %c0_415 = arith.constant 0 : index
      %c0_416 = arith.constant 0 : index
      %705 = vector.load %arg18[%c0_415, %c0_416] : memref<8x32xf32, #tpu.memory_space<vmem>>, vector<8x32xf32>
      tpu.vector_store %arg18[%c0_415, %c0_416], %704 {strides = array<i32>} : memref<8x32xf32, #tpu.memory_space<vmem>>, vector<8x32xf32>,
      %cst_417 = arith.constant 0.000000e+00 : f32
      %706 = vector.broadcast %cst_417 : f32 to vector<8x128xf32>
      %c0_418 = arith.constant 0 : index
      %c0_419 = arith.constant 0 : index
      %707 = vector.load %arg19[%c0_418, %c0_419] : memref<8x128xf32, #tpu.memory_space<vmem>>, vector<8x128xf32>
      tpu.vector_store %arg19[%c0_418, %c0_419], %706 {strides = array<i32>} : memref<8x128xf32, #tpu.memory_space<vmem>>, vector<8x128xf32>,
    } else {
    }
    %c0 = arith.constant 0 : index
    %c0_1 = arith.constant 0 : index
    %3 = vector.load %arg3[%c0, %c0_1] : memref<1x32xf32, #tpu.memory_space<vmem>>, vector<1x32xf32>
    %4 = vector.shape_cast %3 : vector<1x32xf32> to vector<1x32xf32>
    %5 = vector.broadcast %4 : vector<1x32xf32> to vector<8x32xf32>
    %c0_i32_2 = arith.constant 0 : i32
    %c0_3 = arith.constant 0 : index
    %c0_4 = arith.constant 0 : index
    %6 = vector.load %arg19[%c0_3, %c0_4] : memref<8x128xf32, #tpu.memory_space<vmem>>, vector<8x128xf32>
    %7 = arith.truncf %6 : vector<8x128xf32> to vector<8x128xbf16>
    %c0_5 = arith.constant 0 : index
    %c0_6 = arith.constant 0 : index
    %8 = vector.load %arg4[%c0_5, %c0_6] : memref<128x32xbf16, #tpu.memory_space<vmem>>, vector<128x32xbf16>
    %cst = arith.constant dense<0.000000e+00> : vector<8x32xf32>
    %9 = tpu.matmul %7, %8, %cst {dimension_numbers = #tpu.dot_dimension_numbers<[1], [0], [0], [1], [0, 0, 1, 1], [], []>} : vector<8x128xbf16>, vector<128x32xbf16>, vector<8x32xf32> -> vector<8x32xf32>
    %c0_7 = arith.constant 0 : index
    %c0_8 = arith.constant 0 : index
    %10 = vector.load %arg5[%c0_7, %c0_8] : memref<1x32xf32, #tpu.memory_space<vmem>>, vector<1x32xf32>
    %11 = vector.broadcast %10 : vector<1x32xf32> to vector<8x32xf32>
    %12 = arith.addf %9, %11 : vector<8x32xf32>
    %cst_9 = arith.constant 0.000000e+00 : f32
    %13 = vector.broadcast %cst_9 : f32 to vector<8x32xf32>
    %14 = arith.maximumf %12, %13 : vector<8x32xf32>
    %15 = arith.truncf %14 : vector<8x32xf32> to vector<8x32xbf16>
    %c0_10 = arith.constant 0 : index
    %c0_11 = arith.constant 0 : index
    %16 = vector.load %arg6[%c0_10, %c0_11] : memref<32x32xbf16, #tpu.memory_space<vmem>>, vector<32x32xbf16>
    %cst_12 = arith.constant dense<0.000000e+00> : vector<8x32xf32>
    %17 = tpu.matmul %15, %16, %cst_12 {dimension_numbers = #tpu.dot_dimension_numbers<[1], [0], [0], [1], [0, 0, 1, 1], [], []>} : vector<8x32xbf16>, vector<32x32xbf16>, vector<8x32xf32> -> vector<8x32xf32>
    %c0_13 = arith.constant 0 : index
    %c0_14 = arith.constant 0 : index
    %18 = vector.load %arg7[%c0_13, %c0_14] : memref<1x32xf32, #tpu.memory_space<vmem>>, vector<1x32xf32>
    %19 = vector.broadcast %18 : vector<1x32xf32> to vector<8x32xf32>
    %20 = arith.addf %17, %19 : vector<8x32xf32>
    %cst_15 = arith.constant 0.000000e+00 : f32
    %21 = vector.broadcast %cst_15 : f32 to vector<8x32xf32>
    %22 = arith.maximumf %20, %21 : vector<8x32xf32>
    %c0_i32_16 = arith.constant 0 : i32
    %23 = arith.cmpi eq, %arg1, %c0_i32_16 : i32
    %c0_i32_17 = arith.constant 0 : i32
    %24 = arith.cmpi eq, %c0_i32_2, %c0_i32_17 : i32
    %25 = arith.andi %23, %24 : i1
    %26 = arith.select %25, %5, %22 : vector<8x32xf32>
    %27 = arith.index_cast %c0_i32_2 : i32 to index
    %c0_18 = arith.constant 0 : index
    %c0_19 = arith.constant 0 : index
    %28 = vector.load %arg2[%27, %c0_18, %c0_19] : memref<8x8x32xf32, #tpu.memory_space<vmem>>, vector<1x8x32xf32>
    %29 = vector.shape_cast %28 : vector<1x8x32xf32> to vector<8x32xf32>
    %30 = arith.truncf %26 : vector<8x32xf32> to vector<8x32xbf16>
    %c0_20 = arith.constant 0 : index
    %c0_21 = arith.constant 0 : index
    %31 = vector.load %arg8[%c0_20, %c0_21] : memref<32x128xbf16, #tpu.memory_space<vmem>>, vector<32x128xbf16>
    %cst_22 = arith.constant dense<0.000000e+00> : vector<8x128xf32>
    %32 = tpu.matmul %30, %31, %cst_22 {dimension_numbers = #tpu.dot_dimension_numbers<[1], [0], [0], [1], [0, 0, 1, 1], [], []>} : vector<8x32xbf16>, vector<32x128xbf16>, vector<8x128xf32> -> vector<8x128xf32>
    %33 = arith.truncf %29 : vector<8x32xf32> to vector<8x32xbf16>
    %c0_23 = arith.constant 0 : index
    %c0_24 = arith.constant 0 : index
    %34 = vector.load %arg9[%c0_23, %c0_24] : memref<32x128xbf16, #tpu.memory_space<vmem>>, vector<32x128xbf16>
    %cst_25 = arith.constant dense<0.000000e+00> : vector<8x128xf32>
    %35 = tpu.matmul %33, %34, %cst_25 {dimension_numbers = #tpu.dot_dimension_numbers<[1], [0], [0], [1], [0, 0, 1, 1], [], []>} : vector<8x32xbf16>, vector<32x128xbf16>, vector<8x128xf32> -> vector<8x128xf32>
    %36 = arith.addf %32, %35 : vector<8x128xf32>
    %c0_26 = arith.constant 0 : index
    %c0_27 = arith.constant 0 : index
    %37 = vector.load %arg17[%c0_26, %c0_27] : memref<8x32xf32, #tpu.memory_space<vmem>>, vector<8x32xf32>
    %38 = arith.truncf %37 : vector<8x32xf32> to vector<8x32xbf16>
    %c0_28 = arith.constant 0 : index
    %c0_29 = arith.constant 0 : index
    %39 = vector.load %arg10[%c0_28, %c0_29] : memref<32x128xbf16, #tpu.memory_space<vmem>>, vector<32x128xbf16>
    %cst_30 = arith.constant dense<0.000000e+00> : vector<8x128xf32>
    %40 = tpu.matmul %38, %39, %cst_30 {dimension_numbers = #tpu.dot_dimension_numbers<[1], [0], [0], [1], [0, 0, 1, 1], [], []>} : vector<8x32xbf16>, vector<32x128xbf16>, vector<8x128xf32> -> vector<8x128xf32>
    %41 = arith.addf %36, %40 : vector<8x128xf32>
    %c0_31 = arith.constant 0 : index
    %c0_32 = arith.constant 0 : index
    %42 = vector.load %arg11[%c0_31, %c0_32] : memref<1x128xf32, #tpu.memory_space<vmem>>, vector<1x128xf32>
    %43 = vector.broadcast %42 : vector<1x128xf32> to vector<8x128xf32>
    %44 = arith.addf %41, %43 : vector<8x128xf32>
    %45 = vector.extract_strided_slice %44 {offsets = [0, 0], sizes = [8, 32], strides = [1, 1]} : vector<8x128xf32> to vector<8x32xf32>
    %46 = arith.negf %45 : vector<8x32xf32>
    %47 = math.exp %46 : vector<8x32xf32>
    %cst_33 = arith.constant 1.000000e+00 : f32
    %48 = vector.broadcast %cst_33 : f32 to vector<8x32xf32>
    %49 = arith.addf %48, %47 : vector<8x32xf32>
    %50 = arith.divf %48, %49 : vector<8x32xf32>
    %51 = vector.extract_strided_slice %44 {offsets = [0, 32], sizes = [8, 32], strides = [1, 1]} : vector<8x128xf32> to vector<8x32xf32>
    %52 = arith.negf %51 : vector<8x32xf32>
    %53 = math.exp %52 : vector<8x32xf32>
    %cst_34 = arith.constant 1.000000e+00 : f32
    %54 = vector.broadcast %cst_34 : f32 to vector<8x32xf32>
    %55 = arith.addf %54, %53 : vector<8x32xf32>
    %56 = arith.divf %54, %55 : vector<8x32xf32>
    %57 = vector.extract_strided_slice %44 {offsets = [0, 64], sizes = [8, 32], strides = [1, 1]} : vector<8x128xf32> to vector<8x32xf32>
    %58 = math.tanh %57 : vector<8x32xf32>
    %59 = vector.extract_strided_slice %44 {offsets = [0, 96], sizes = [8, 32], strides = [1, 1]} : vector<8x128xf32> to vector<8x32xf32>
    %60 = arith.negf %59 : vector<8x32xf32>
    %61 = math.exp %60 : vector<8x32xf32>
    %cst_35 = arith.constant 1.000000e+00 : f32
    %62 = vector.broadcast %cst_35 : f32 to vector<8x32xf32>
    %63 = arith.addf %62, %61 : vector<8x32xf32>
    %64 = arith.divf %62, %63 : vector<8x32xf32>
    %c0_36 = arith.constant 0 : index
    %c0_37 = arith.constant 0 : index
    %65 = vector.load %arg18[%c0_36, %c0_37] : memref<8x32xf32, #tpu.memory_space<vmem>>, vector<8x32xf32>
    %66 = arith.mulf %56, %65 : vector<8x32xf32>
    %67 = arith.mulf %50, %58 : vector<8x32xf32>
    %68 = arith.addf %66, %67 : vector<8x32xf32>
    %69 = math.tanh %68 : vector<8x32xf32>
    %70 = arith.mulf %64, %69 : vector<8x32xf32>
    %c0_38 = arith.constant 0 : index
    %c0_39 = arith.constant 0 : index
    %71 = vector.load %arg18[%c0_38, %c0_39] : memref<8x32xf32, #tpu.memory_space<vmem>>, vector<8x32xf32>
    tpu.vector_store %arg18[%c0_38, %c0_39], %68 {strides = array<i32>} : memref<8x32xf32, #tpu.memory_space<vmem>>, vector<8x32xf32>,
    %c0_40 = arith.constant 0 : index
    %c0_41 = arith.constant 0 : index
    %72 = vector.load %arg17[%c0_40, %c0_41] : memref<8x32xf32, #tpu.memory_space<vmem>>, vector<8x32xf32>
    tpu.vector_store %arg17[%c0_40, %c0_41], %70 {strides = array<i32>} : memref<8x32xf32, #tpu.memory_space<vmem>>, vector<8x32xf32>,
    %73 = arith.truncf %70 : vector<8x32xf32> to vector<8x32xbf16>
    %c0_42 = arith.constant 0 : index
    %c0_43 = arith.constant 0 : index
    %74 = vector.load %arg12[%c0_42, %c0_43] : memref<32x128xbf16, #tpu.memory_space<vmem>>, vector<32x128xbf16>
    %cst_44 = arith.constant dense<0.000000e+00> : vector<8x128xf32>
    %75 = tpu.matmul %73, %74, %cst_44 {dimension_numbers = #tpu.dot_dimension_numbers<[1], [0], [0], [1], [0, 0, 1, 1], [], []>} : vector<8x32xbf16>, vector<32x128xbf16>, vector<8x128xf32> -> vector<8x128xf32>
    %c0_45 = arith.constant 0 : index
    %c0_46 = arith.constant 0 : index
    %76 = vector.load %arg13[%c0_45, %c0_46] : memref<1x128xf32, #tpu.memory_space<vmem>>, vector<1x128xf32>
    %77 = vector.broadcast %76 : vector<1x128xf32> to vector<8x128xf32>
    %78 = arith.addf %75, %77 : vector<8x128xf32>
    %79 = tpu.iota {dimensions = array<i32: 1>} : vector<8x128xi32>
    %c16_i32 = arith.constant 16 : i32
    %80 = vector.broadcast %c16_i32 : i32 to vector<8x128xi32>
    %81 = arith.cmpi eq, %79, %80 : vector<8x128xi32>
    %82 = arith.negf %78 : vector<8x128xf32>
    %83 = math.exp %82 : vector<8x128xf32>
    %cst_47 = arith.constant 1.000000e+00 : f32
    %84 = vector.broadcast %cst_47 : f32 to vector<8x128xf32>
    %85 = arith.addf %84, %83 : vector<8x128xf32>
    %86 = arith.divf %84, %85 : vector<8x128xf32>
    %87 = arith.select %81, %86, %78 : vector<8x128xi1>, vector<8x128xf32>
    %88 = arith.index_cast %c0_i32_2 : i32 to index
    %c0_48 = arith.constant 0 : index
    %c0_49 = arith.constant 0 : index
    %89 = vector.load %arg16[%88, %c0_48, %c0_49] : memref<8x8x128xf32, #tpu.memory_space<vmem>>, vector<1x8x128xf32>
    %90 = vector.shape_cast %89 : vector<1x8x128xf32> to vector<8x128xf32>
    %91 = vector.shape_cast %87 : vector<8x128xf32> to vector<1x8x128xf32>
    tpu.vector_store %arg16[%88, %c0_48, %c0_49], %91 {strides = array<i32>} : memref<8x8x128xf32, #tpu.memory_space<vmem>>, vector<1x8x128xf32>,
    %c0_50 = arith.constant 0 : index
    %c0_51 = arith.constant 0 : index
    %92 = vector.load %arg19[%c0_50, %c0_51] : memref<8x128xf32, #tpu.memory_space<vmem>>, vector<8x128xf32>
    tpu.vector_store %arg19[%c0_50, %c0_51], %87 {strides = array<i32>} : memref<8x128xf32, #tpu.memory_space<vmem>>, vector<8x128xf32>,
    %c1_i32 = arith.constant 1 : i32
    %c0_52 = arith.constant 0 : index
    %c0_53 = arith.constant 0 : index
    %93 = vector.load %arg19[%c0_52, %c0_53] : memref<8x128xf32, #tpu.memory_space<vmem>>, vector<8x128xf32>
    %94 = arith.truncf %93 : vector<8x128xf32> to vector<8x128xbf16>
    %c0_54 = arith.constant 0 : index
    %c0_55 = arith.constant 0 : index
    %95 = vector.load %arg4[%c0_54, %c0_55] : memref<128x32xbf16, #tpu.memory_space<vmem>>, vector<128x32xbf16>
    %cst_56 = arith.constant dense<0.000000e+00> : vector<8x32xf32>
    %96 = tpu.matmul %94, %95, %cst_56 {dimension_numbers = #tpu.dot_dimension_numbers<[1], [0], [0], [1], [0, 0, 1, 1], [], []>} : vector<8x128xbf16>, vector<128x32xbf16>, vector<8x32xf32> -> vector<8x32xf32>
    %c0_57 = arith.constant 0 : index
    %c0_58 = arith.constant 0 : index
    %97 = vector.load %arg5[%c0_57, %c0_58] : memref<1x32xf32, #tpu.memory_space<vmem>>, vector<1x32xf32>
    %98 = vector.broadcast %97 : vector<1x32xf32> to vector<8x32xf32>
    %99 = arith.addf %96, %98 : vector<8x32xf32>
    %cst_59 = arith.constant 0.000000e+00 : f32
    %100 = vector.broadcast %cst_59 : f32 to vector<8x32xf32>
    %101 = arith.maximumf %99, %100 : vector<8x32xf32>
    %102 = arith.truncf %101 : vector<8x32xf32> to vector<8x32xbf16>
    %c0_60 = arith.constant 0 : index
    %c0_61 = arith.constant 0 : index
    %103 = vector.load %arg6[%c0_60, %c0_61] : memref<32x32xbf16, #tpu.memory_space<vmem>>, vector<32x32xbf16>
    %cst_62 = arith.constant dense<0.000000e+00> : vector<8x32xf32>
    %104 = tpu.matmul %102, %103, %cst_62 {dimension_numbers = #tpu.dot_dimension_numbers<[1], [0], [0], [1], [0, 0, 1, 1], [], []>} : vector<8x32xbf16>, vector<32x32xbf16>, vector<8x32xf32> -> vector<8x32xf32>
    %c0_63 = arith.constant 0 : index
    %c0_64 = arith.constant 0 : index
    %105 = vector.load %arg7[%c0_63, %c0_64] : memref<1x32xf32, #tpu.memory_space<vmem>>, vector<1x32xf32>
    %106 = vector.broadcast %105 : vector<1x32xf32> to vector<8x32xf32>
    %107 = arith.addf %104, %106 : vector<8x32xf32>
    %cst_65 = arith.constant 0.000000e+00 : f32
    %108 = vector.broadcast %cst_65 : f32 to vector<8x32xf32>
    %109 = arith.maximumf %107, %108 : vector<8x32xf32>
    %c0_i32_66 = arith.constant 0 : i32
    %110 = arith.cmpi eq, %arg1, %c0_i32_66 : i32
    %c0_i32_67 = arith.constant 0 : i32
    %111 = arith.cmpi eq, %c1_i32, %c0_i32_67 : i32
    %112 = arith.andi %110, %111 : i1
    %113 = arith.select %112, %5, %109 : vector<8x32xf32>
    %114 = arith.index_cast %c1_i32 : i32 to index
    %c0_68 = arith.constant 0 : index
    %c0_69 = arith.constant 0 : index
    %115 = vector.load %arg2[%114, %c0_68, %c0_69] : memref<8x8x32xf32, #tpu.memory_space<vmem>>, vector<1x8x32xf32>
    %116 = vector.shape_cast %115 : vector<1x8x32xf32> to vector<8x32xf32>
    %117 = arith.truncf %113 : vector<8x32xf32> to vector<8x32xbf16>
    %c0_70 = arith.constant 0 : index
    %c0_71 = arith.constant 0 : index
    %118 = vector.load %arg8[%c0_70, %c0_71] : memref<32x128xbf16, #tpu.memory_space<vmem>>, vector<32x128xbf16>
    %cst_72 = arith.constant dense<0.000000e+00> : vector<8x128xf32>
    %119 = tpu.matmul %117, %118, %cst_72 {dimension_numbers = #tpu.dot_dimension_numbers<[1], [0], [0], [1], [0, 0, 1, 1], [], []>} : vector<8x32xbf16>, vector<32x128xbf16>, vector<8x128xf32> -> vector<8x128xf32>
    %120 = arith.truncf %116 : vector<8x32xf32> to vector<8x32xbf16>
    %c0_73 = arith.constant 0 : index
    %c0_74 = arith.constant 0 : index
    %121 = vector.load %arg9[%c0_73, %c0_74] : memref<32x128xbf16, #tpu.memory_space<vmem>>, vector<32x128xbf16>
    %cst_75 = arith.constant dense<0.000000e+00> : vector<8x128xf32>
    %122 = tpu.matmul %120, %121, %cst_75 {dimension_numbers = #tpu.dot_dimension_numbers<[1], [0], [0], [1], [0, 0, 1, 1], [], []>} : vector<8x32xbf16>, vector<32x128xbf16>, vector<8x128xf32> -> vector<8x128xf32>
    %123 = arith.addf %119, %122 : vector<8x128xf32>
    %c0_76 = arith.constant 0 : index
    %c0_77 = arith.constant 0 : index
    %124 = vector.load %arg17[%c0_76, %c0_77] : memref<8x32xf32, #tpu.memory_space<vmem>>, vector<8x32xf32>
    %125 = arith.truncf %124 : vector<8x32xf32> to vector<8x32xbf16>
    %c0_78 = arith.constant 0 : index
    %c0_79 = arith.constant 0 : index
    %126 = vector.load %arg10[%c0_78, %c0_79] : memref<32x128xbf16, #tpu.memory_space<vmem>>, vector<32x128xbf16>
    %cst_80 = arith.constant dense<0.000000e+00> : vector<8x128xf32>
    %127 = tpu.matmul %125, %126, %cst_80 {dimension_numbers = #tpu.dot_dimension_numbers<[1], [0], [0], [1], [0, 0, 1, 1], [], []>} : vector<8x32xbf16>, vector<32x128xbf16>, vector<8x128xf32> -> vector<8x128xf32>
    %128 = arith.addf %123, %127 : vector<8x128xf32>
    %c0_81 = arith.constant 0 : index
    %c0_82 = arith.constant 0 : index
    %129 = vector.load %arg11[%c0_81, %c0_82] : memref<1x128xf32, #tpu.memory_space<vmem>>, vector<1x128xf32>
    %130 = vector.broadcast %129 : vector<1x128xf32> to vector<8x128xf32>
    %131 = arith.addf %128, %130 : vector<8x128xf32>
    %132 = vector.extract_strided_slice %131 {offsets = [0, 0], sizes = [8, 32], strides = [1, 1]} : vector<8x128xf32> to vector<8x32xf32>
    %133 = arith.negf %132 : vector<8x32xf32>
    %134 = math.exp %133 : vector<8x32xf32>
    %cst_83 = arith.constant 1.000000e+00 : f32
    %135 = vector.broadcast %cst_83 : f32 to vector<8x32xf32>
    %136 = arith.addf %135, %134 : vector<8x32xf32>
    %137 = arith.divf %135, %136 : vector<8x32xf32>
    %138 = vector.extract_strided_slice %131 {offsets = [0, 32], sizes = [8, 32], strides = [1, 1]} : vector<8x128xf32> to vector<8x32xf32>
    %139 = arith.negf %138 : vector<8x32xf32>
    %140 = math.exp %139 : vector<8x32xf32>
    %cst_84 = arith.constant 1.000000e+00 : f32
    %141 = vector.broadcast %cst_84 : f32 to vector<8x32xf32>
    %142 = arith.addf %141, %140 : vector<8x32xf32>
    %143 = arith.divf %141, %142 : vector<8x32xf32>
    %144 = vector.extract_strided_slice %131 {offsets = [0, 64], sizes = [8, 32], strides = [1, 1]} : vector<8x128xf32> to vector<8x32xf32>
    %145 = math.tanh %144 : vector<8x32xf32>
    %146 = vector.extract_strided_slice %131 {offsets = [0, 96], sizes = [8, 32], strides = [1, 1]} : vector<8x128xf32> to vector<8x32xf32>
    %147 = arith.negf %146 : vector<8x32xf32>
    %148 = math.exp %147 : vector<8x32xf32>
    %cst_85 = arith.constant 1.000000e+00 : f32
    %149 = vector.broadcast %cst_85 : f32 to vector<8x32xf32>
    %150 = arith.addf %149, %148 : vector<8x32xf32>
    %151 = arith.divf %149, %150 : vector<8x32xf32>
    %c0_86 = arith.constant 0 : index
    %c0_87 = arith.constant 0 : index
    %152 = vector.load %arg18[%c0_86, %c0_87] : memref<8x32xf32, #tpu.memory_space<vmem>>, vector<8x32xf32>
    %153 = arith.mulf %143, %152 : vector<8x32xf32>
    %154 = arith.mulf %137, %145 : vector<8x32xf32>
    %155 = arith.addf %153, %154 : vector<8x32xf32>
    %156 = math.tanh %155 : vector<8x32xf32>
    %157 = arith.mulf %151, %156 : vector<8x32xf32>
    %c0_88 = arith.constant 0 : index
    %c0_89 = arith.constant 0 : index
    %158 = vector.load %arg18[%c0_88, %c0_89] : memref<8x32xf32, #tpu.memory_space<vmem>>, vector<8x32xf32>
    tpu.vector_store %arg18[%c0_88, %c0_89], %155 {strides = array<i32>} : memref<8x32xf32, #tpu.memory_space<vmem>>, vector<8x32xf32>,
    %c0_90 = arith.constant 0 : index
    %c0_91 = arith.constant 0 : index
    %159 = vector.load %arg17[%c0_90, %c0_91] : memref<8x32xf32, #tpu.memory_space<vmem>>, vector<8x32xf32>
    tpu.vector_store %arg17[%c0_90, %c0_91], %157 {strides = array<i32>} : memref<8x32xf32, #tpu.memory_space<vmem>>, vector<8x32xf32>,
    %160 = arith.truncf %157 : vector<8x32xf32> to vector<8x32xbf16>
    %c0_92 = arith.constant 0 : index
    %c0_93 = arith.constant 0 : index
    %161 = vector.load %arg12[%c0_92, %c0_93] : memref<32x128xbf16, #tpu.memory_space<vmem>>, vector<32x128xbf16>
    %cst_94 = arith.constant dense<0.000000e+00> : vector<8x128xf32>
    %162 = tpu.matmul %160, %161, %cst_94 {dimension_numbers = #tpu.dot_dimension_numbers<[1], [0], [0], [1], [0, 0, 1, 1], [], []>} : vector<8x32xbf16>, vector<32x128xbf16>, vector<8x128xf32> -> vector<8x128xf32>
    %c0_95 = arith.constant 0 : index
    %c0_96 = arith.constant 0 : index
    %163 = vector.load %arg13[%c0_95, %c0_96] : memref<1x128xf32, #tpu.memory_space<vmem>>, vector<1x128xf32>
    %164 = vector.broadcast %163 : vector<1x128xf32> to vector<8x128xf32>
    %165 = arith.addf %162, %164 : vector<8x128xf32>
    %166 = tpu.iota {dimensions = array<i32: 1>} : vector<8x128xi32>
    %c16_i32_97 = arith.constant 16 : i32
    %167 = vector.broadcast %c16_i32_97 : i32 to vector<8x128xi32>
    %168 = arith.cmpi eq, %166, %167 : vector<8x128xi32>
    %169 = arith.negf %165 : vector<8x128xf32>
    %170 = math.exp %169 : vector<8x128xf32>
    %cst_98 = arith.constant 1.000000e+00 : f32
    %171 = vector.broadcast %cst_98 : f32 to vector<8x128xf32>
    %172 = arith.addf %171, %170 : vector<8x128xf32>
    %173 = arith.divf %171, %172 : vector<8x128xf32>
    %174 = arith.select %168, %173, %165 : vector<8x128xi1>, vector<8x128xf32>
    %175 = arith.index_cast %c1_i32 : i32 to index
    %c0_99 = arith.constant 0 : index
    %c0_100 = arith.constant 0 : index
    %176 = vector.load %arg16[%175, %c0_99, %c0_100] : memref<8x8x128xf32, #tpu.memory_space<vmem>>, vector<1x8x128xf32>
    %177 = vector.shape_cast %176 : vector<1x8x128xf32> to vector<8x128xf32>
    %178 = vector.shape_cast %174 : vector<8x128xf32> to vector<1x8x128xf32>
    tpu.vector_store %arg16[%175, %c0_99, %c0_100], %178 {strides = array<i32>} : memref<8x8x128xf32, #tpu.memory_space<vmem>>, vector<1x8x128xf32>,
    %c0_101 = arith.constant 0 : index
    %c0_102 = arith.constant 0 : index
    %179 = vector.load %arg19[%c0_101, %c0_102] : memref<8x128xf32, #tpu.memory_space<vmem>>, vector<8x128xf32>
    tpu.vector_store %arg19[%c0_101, %c0_102], %174 {strides = array<i32>} : memref<8x128xf32, #tpu.memory_space<vmem>>, vector<8x128xf32>,
    %c2_i32 = arith.constant 2 : i32
    %c0_103 = arith.constant 0 : index
    %c0_104 = arith.constant 0 : index
    %180 = vector.load %arg19[%c0_103, %c0_104] : memref<8x128xf32, #tpu.memory_space<vmem>>, vector<8x128xf32>
    %181 = arith.truncf %180 : vector<8x128xf32> to vector<8x128xbf16>
    %c0_105 = arith.constant 0 : index
    %c0_106 = arith.constant 0 : index
    %182 = vector.load %arg4[%c0_105, %c0_106] : memref<128x32xbf16, #tpu.memory_space<vmem>>, vector<128x32xbf16>
    %cst_107 = arith.constant dense<0.000000e+00> : vector<8x32xf32>
    %183 = tpu.matmul %181, %182, %cst_107 {dimension_numbers = #tpu.dot_dimension_numbers<[1], [0], [0], [1], [0, 0, 1, 1], [], []>} : vector<8x128xbf16>, vector<128x32xbf16>, vector<8x32xf32> -> vector<8x32xf32>
    %c0_108 = arith.constant 0 : index
    %c0_109 = arith.constant 0 : index
    %184 = vector.load %arg5[%c0_108, %c0_109] : memref<1x32xf32, #tpu.memory_space<vmem>>, vector<1x32xf32>
    %185 = vector.broadcast %184 : vector<1x32xf32> to vector<8x32xf32>
    %186 = arith.addf %183, %185 : vector<8x32xf32>
    %cst_110 = arith.constant 0.000000e+00 : f32
    %187 = vector.broadcast %cst_110 : f32 to vector<8x32xf32>
    %188 = arith.maximumf %186, %187 : vector<8x32xf32>
    %189 = arith.truncf %188 : vector<8x32xf32> to vector<8x32xbf16>
    %c0_111 = arith.constant 0 : index
    %c0_112 = arith.constant 0 : index
    %190 = vector.load %arg6[%c0_111, %c0_112] : memref<32x32xbf16, #tpu.memory_space<vmem>>, vector<32x32xbf16>
    %cst_113 = arith.constant dense<0.000000e+00> : vector<8x32xf32>
    %191 = tpu.matmul %189, %190, %cst_113 {dimension_numbers = #tpu.dot_dimension_numbers<[1], [0], [0], [1], [0, 0, 1, 1], [], []>} : vector<8x32xbf16>, vector<32x32xbf16>, vector<8x32xf32> -> vector<8x32xf32>
    %c0_114 = arith.constant 0 : index
    %c0_115 = arith.constant 0 : index
    %192 = vector.load %arg7[%c0_114, %c0_115] : memref<1x32xf32, #tpu.memory_space<vmem>>, vector<1x32xf32>
    %193 = vector.broadcast %192 : vector<1x32xf32> to vector<8x32xf32>
    %194 = arith.addf %191, %193 : vector<8x32xf32>
    %cst_116 = arith.constant 0.000000e+00 : f32
    %195 = vector.broadcast %cst_116 : f32 to vector<8x32xf32>
    %196 = arith.maximumf %194, %195 : vector<8x32xf32>
    %c0_i32_117 = arith.constant 0 : i32
    %197 = arith.cmpi eq, %arg1, %c0_i32_117 : i32
    %c0_i32_118 = arith.constant 0 : i32
    %198 = arith.cmpi eq, %c2_i32, %c0_i32_118 : i32
    %199 = arith.andi %197, %198 : i1
    %200 = arith.select %199, %5, %196 : vector<8x32xf32>
    %201 = arith.index_cast %c2_i32 : i32 to index
    %c0_119 = arith.constant 0 : index
    %c0_120 = arith.constant 0 : index
    %202 = vector.load %arg2[%201, %c0_119, %c0_120] : memref<8x8x32xf32, #tpu.memory_space<vmem>>, vector<1x8x32xf32>
    %203 = vector.shape_cast %202 : vector<1x8x32xf32> to vector<8x32xf32>
    %204 = arith.truncf %200 : vector<8x32xf32> to vector<8x32xbf16>
    %c0_121 = arith.constant 0 : index
    %c0_122 = arith.constant 0 : index
    %205 = vector.load %arg8[%c0_121, %c0_122] : memref<32x128xbf16, #tpu.memory_space<vmem>>, vector<32x128xbf16>
    %cst_123 = arith.constant dense<0.000000e+00> : vector<8x128xf32>
    %206 = tpu.matmul %204, %205, %cst_123 {dimension_numbers = #tpu.dot_dimension_numbers<[1], [0], [0], [1], [0, 0, 1, 1], [], []>} : vector<8x32xbf16>, vector<32x128xbf16>, vector<8x128xf32> -> vector<8x128xf32>
    %207 = arith.truncf %203 : vector<8x32xf32> to vector<8x32xbf16>
    %c0_124 = arith.constant 0 : index
    %c0_125 = arith.constant 0 : index
    %208 = vector.load %arg9[%c0_124, %c0_125] : memref<32x128xbf16, #tpu.memory_space<vmem>>, vector<32x128xbf16>
    %cst_126 = arith.constant dense<0.000000e+00> : vector<8x128xf32>
    %209 = tpu.matmul %207, %208, %cst_126 {dimension_numbers = #tpu.dot_dimension_numbers<[1], [0], [0], [1], [0, 0, 1, 1], [], []>} : vector<8x32xbf16>, vector<32x128xbf16>, vector<8x128xf32> -> vector<8x128xf32>
    %210 = arith.addf %206, %209 : vector<8x128xf32>
    %c0_127 = arith.constant 0 : index
    %c0_128 = arith.constant 0 : index
    %211 = vector.load %arg17[%c0_127, %c0_128] : memref<8x32xf32, #tpu.memory_space<vmem>>, vector<8x32xf32>
    %212 = arith.truncf %211 : vector<8x32xf32> to vector<8x32xbf16>
    %c0_129 = arith.constant 0 : index
    %c0_130 = arith.constant 0 : index
    %213 = vector.load %arg10[%c0_129, %c0_130] : memref<32x128xbf16, #tpu.memory_space<vmem>>, vector<32x128xbf16>
    %cst_131 = arith.constant dense<0.000000e+00> : vector<8x128xf32>
    %214 = tpu.matmul %212, %213, %cst_131 {dimension_numbers = #tpu.dot_dimension_numbers<[1], [0], [0], [1], [0, 0, 1, 1], [], []>} : vector<8x32xbf16>, vector<32x128xbf16>, vector<8x128xf32> -> vector<8x128xf32>
    %215 = arith.addf %210, %214 : vector<8x128xf32>
    %c0_132 = arith.constant 0 : index
    %c0_133 = arith.constant 0 : index
    %216 = vector.load %arg11[%c0_132, %c0_133] : memref<1x128xf32, #tpu.memory_space<vmem>>, vector<1x128xf32>
    %217 = vector.broadcast %216 : vector<1x128xf32> to vector<8x128xf32>
    %218 = arith.addf %215, %217 : vector<8x128xf32>
    %219 = vector.extract_strided_slice %218 {offsets = [0, 0], sizes = [8, 32], strides = [1, 1]} : vector<8x128xf32> to vector<8x32xf32>
    %220 = arith.negf %219 : vector<8x32xf32>
    %221 = math.exp %220 : vector<8x32xf32>
    %cst_134 = arith.constant 1.000000e+00 : f32
    %222 = vector.broadcast %cst_134 : f32 to vector<8x32xf32>
    %223 = arith.addf %222, %221 : vector<8x32xf32>
    %224 = arith.divf %222, %223 : vector<8x32xf32>
    %225 = vector.extract_strided_slice %218 {offsets = [0, 32], sizes = [8, 32], strides = [1, 1]} : vector<8x128xf32> to vector<8x32xf32>
    %226 = arith.negf %225 : vector<8x32xf32>
    %227 = math.exp %226 : vector<8x32xf32>
    %cst_135 = arith.constant 1.000000e+00 : f32
    %228 = vector.broadcast %cst_135 : f32 to vector<8x32xf32>
    %229 = arith.addf %228, %227 : vector<8x32xf32>
    %230 = arith.divf %228, %229 : vector<8x32xf32>
    %231 = vector.extract_strided_slice %218 {offsets = [0, 64], sizes = [8, 32], strides = [1, 1]} : vector<8x128xf32> to vector<8x32xf32>
    %232 = math.tanh %231 : vector<8x32xf32>
    %233 = vector.extract_strided_slice %218 {offsets = [0, 96], sizes = [8, 32], strides = [1, 1]} : vector<8x128xf32> to vector<8x32xf32>
    %234 = arith.negf %233 : vector<8x32xf32>
    %235 = math.exp %234 : vector<8x32xf32>
    %cst_136 = arith.constant 1.000000e+00 : f32
    %236 = vector.broadcast %cst_136 : f32 to vector<8x32xf32>
    %237 = arith.addf %236, %235 : vector<8x32xf32>
    %238 = arith.divf %236, %237 : vector<8x32xf32>
    %c0_137 = arith.constant 0 : index
    %c0_138 = arith.constant 0 : index
    %239 = vector.load %arg18[%c0_137, %c0_138] : memref<8x32xf32, #tpu.memory_space<vmem>>, vector<8x32xf32>
    %240 = arith.mulf %230, %239 : vector<8x32xf32>
    %241 = arith.mulf %224, %232 : vector<8x32xf32>
    %242 = arith.addf %240, %241 : vector<8x32xf32>
    %243 = math.tanh %242 : vector<8x32xf32>
    %244 = arith.mulf %238, %243 : vector<8x32xf32>
    %c0_139 = arith.constant 0 : index
    %c0_140 = arith.constant 0 : index
    %245 = vector.load %arg18[%c0_139, %c0_140] : memref<8x32xf32, #tpu.memory_space<vmem>>, vector<8x32xf32>
    tpu.vector_store %arg18[%c0_139, %c0_140], %242 {strides = array<i32>} : memref<8x32xf32, #tpu.memory_space<vmem>>, vector<8x32xf32>,
    %c0_141 = arith.constant 0 : index
    %c0_142 = arith.constant 0 : index
    %246 = vector.load %arg17[%c0_141, %c0_142] : memref<8x32xf32, #tpu.memory_space<vmem>>, vector<8x32xf32>
    tpu.vector_store %arg17[%c0_141, %c0_142], %244 {strides = array<i32>} : memref<8x32xf32, #tpu.memory_space<vmem>>, vector<8x32xf32>,
    %247 = arith.truncf %244 : vector<8x32xf32> to vector<8x32xbf16>
    %c0_143 = arith.constant 0 : index
    %c0_144 = arith.constant 0 : index
    %248 = vector.load %arg12[%c0_143, %c0_144] : memref<32x128xbf16, #tpu.memory_space<vmem>>, vector<32x128xbf16>
    %cst_145 = arith.constant dense<0.000000e+00> : vector<8x128xf32>
    %249 = tpu.matmul %247, %248, %cst_145 {dimension_numbers = #tpu.dot_dimension_numbers<[1], [0], [0], [1], [0, 0, 1, 1], [], []>} : vector<8x32xbf16>, vector<32x128xbf16>, vector<8x128xf32> -> vector<8x128xf32>
    %c0_146 = arith.constant 0 : index
    %c0_147 = arith.constant 0 : index
    %250 = vector.load %arg13[%c0_146, %c0_147] : memref<1x128xf32, #tpu.memory_space<vmem>>, vector<1x128xf32>
    %251 = vector.broadcast %250 : vector<1x128xf32> to vector<8x128xf32>
    %252 = arith.addf %249, %251 : vector<8x128xf32>
    %253 = tpu.iota {dimensions = array<i32: 1>} : vector<8x128xi32>
    %c16_i32_148 = arith.constant 16 : i32
    %254 = vector.broadcast %c16_i32_148 : i32 to vector<8x128xi32>
    %255 = arith.cmpi eq, %253, %254 : vector<8x128xi32>
    %256 = arith.negf %252 : vector<8x128xf32>
    %257 = math.exp %256 : vector<8x128xf32>
    %cst_149 = arith.constant 1.000000e+00 : f32
    %258 = vector.broadcast %cst_149 : f32 to vector<8x128xf32>
    %259 = arith.addf %258, %257 : vector<8x128xf32>
    %260 = arith.divf %258, %259 : vector<8x128xf32>
    %261 = arith.select %255, %260, %252 : vector<8x128xi1>, vector<8x128xf32>
    %262 = arith.index_cast %c2_i32 : i32 to index
    %c0_150 = arith.constant 0 : index
    %c0_151 = arith.constant 0 : index
    %263 = vector.load %arg16[%262, %c0_150, %c0_151] : memref<8x8x128xf32, #tpu.memory_space<vmem>>, vector<1x8x128xf32>
    %264 = vector.shape_cast %263 : vector<1x8x128xf32> to vector<8x128xf32>
    %265 = vector.shape_cast %261 : vector<8x128xf32> to vector<1x8x128xf32>
    tpu.vector_store %arg16[%262, %c0_150, %c0_151], %265 {strides = array<i32>} : memref<8x8x128xf32, #tpu.memory_space<vmem>>, vector<1x8x128xf32>,
    %c0_152 = arith.constant 0 : index
    %c0_153 = arith.constant 0 : index
    %266 = vector.load %arg19[%c0_152, %c0_153] : memref<8x128xf32, #tpu.memory_space<vmem>>, vector<8x128xf32>
    tpu.vector_store %arg19[%c0_152, %c0_153], %261 {strides = array<i32>} : memref<8x128xf32, #tpu.memory_space<vmem>>, vector<8x128xf32>,
    %c3_i32 = arith.constant 3 : i32
    %c0_154 = arith.constant 0 : index
    %c0_155 = arith.constant 0 : index
    %267 = vector.load %arg19[%c0_154, %c0_155] : memref<8x128xf32, #tpu.memory_space<vmem>>, vector<8x128xf32>
    %268 = arith.truncf %267 : vector<8x128xf32> to vector<8x128xbf16>
    %c0_156 = arith.constant 0 : index
    %c0_157 = arith.constant 0 : index
    %269 = vector.load %arg4[%c0_156, %c0_157] : memref<128x32xbf16, #tpu.memory_space<vmem>>, vector<128x32xbf16>
    %cst_158 = arith.constant dense<0.000000e+00> : vector<8x32xf32>
    %270 = tpu.matmul %268, %269, %cst_158 {dimension_numbers = #tpu.dot_dimension_numbers<[1], [0], [0], [1], [0, 0, 1, 1], [], []>} : vector<8x128xbf16>, vector<128x32xbf16>, vector<8x32xf32> -> vector<8x32xf32>
    %c0_159 = arith.constant 0 : index
    %c0_160 = arith.constant 0 : index
    %271 = vector.load %arg5[%c0_159, %c0_160] : memref<1x32xf32, #tpu.memory_space<vmem>>, vector<1x32xf32>
    %272 = vector.broadcast %271 : vector<1x32xf32> to vector<8x32xf32>
    %273 = arith.addf %270, %272 : vector<8x32xf32>
    %cst_161 = arith.constant 0.000000e+00 : f32
    %274 = vector.broadcast %cst_161 : f32 to vector<8x32xf32>
    %275 = arith.maximumf %273, %274 : vector<8x32xf32>
    %276 = arith.truncf %275 : vector<8x32xf32> to vector<8x32xbf16>
    %c0_162 = arith.constant 0 : index
    %c0_163 = arith.constant 0 : index
    %277 = vector.load %arg6[%c0_162, %c0_163] : memref<32x32xbf16, #tpu.memory_space<vmem>>, vector<32x32xbf16>
    %cst_164 = arith.constant dense<0.000000e+00> : vector<8x32xf32>
    %278 = tpu.matmul %276, %277, %cst_164 {dimension_numbers = #tpu.dot_dimension_numbers<[1], [0], [0], [1], [0, 0, 1, 1], [], []>} : vector<8x32xbf16>, vector<32x32xbf16>, vector<8x32xf32> -> vector<8x32xf32>
    %c0_165 = arith.constant 0 : index
    %c0_166 = arith.constant 0 : index
    %279 = vector.load %arg7[%c0_165, %c0_166] : memref<1x32xf32, #tpu.memory_space<vmem>>, vector<1x32xf32>
    %280 = vector.broadcast %279 : vector<1x32xf32> to vector<8x32xf32>
    %281 = arith.addf %278, %280 : vector<8x32xf32>
    %cst_167 = arith.constant 0.000000e+00 : f32
    %282 = vector.broadcast %cst_167 : f32 to vector<8x32xf32>
    %283 = arith.maximumf %281, %282 : vector<8x32xf32>
    %c0_i32_168 = arith.constant 0 : i32
    %284 = arith.cmpi eq, %arg1, %c0_i32_168 : i32
    %c0_i32_169 = arith.constant 0 : i32
    %285 = arith.cmpi eq, %c3_i32, %c0_i32_169 : i32
    %286 = arith.andi %284, %285 : i1
    %287 = arith.select %286, %5, %283 : vector<8x32xf32>
    %288 = arith.index_cast %c3_i32 : i32 to index
    %c0_170 = arith.constant 0 : index
    %c0_171 = arith.constant 0 : index
    %289 = vector.load %arg2[%288, %c0_170, %c0_171] : memref<8x8x32xf32, #tpu.memory_space<vmem>>, vector<1x8x32xf32>
    %290 = vector.shape_cast %289 : vector<1x8x32xf32> to vector<8x32xf32>
    %291 = arith.truncf %287 : vector<8x32xf32> to vector<8x32xbf16>
    %c0_172 = arith.constant 0 : index
    %c0_173 = arith.constant 0 : index
    %292 = vector.load %arg8[%c0_172, %c0_173] : memref<32x128xbf16, #tpu.memory_space<vmem>>, vector<32x128xbf16>
    %cst_174 = arith.constant dense<0.000000e+00> : vector<8x128xf32>
    %293 = tpu.matmul %291, %292, %cst_174 {dimension_numbers = #tpu.dot_dimension_numbers<[1], [0], [0], [1], [0, 0, 1, 1], [], []>} : vector<8x32xbf16>, vector<32x128xbf16>, vector<8x128xf32> -> vector<8x128xf32>
    %294 = arith.truncf %290 : vector<8x32xf32> to vector<8x32xbf16>
    %c0_175 = arith.constant 0 : index
    %c0_176 = arith.constant 0 : index
    %295 = vector.load %arg9[%c0_175, %c0_176] : memref<32x128xbf16, #tpu.memory_space<vmem>>, vector<32x128xbf16>
    %cst_177 = arith.constant dense<0.000000e+00> : vector<8x128xf32>
    %296 = tpu.matmul %294, %295, %cst_177 {dimension_numbers = #tpu.dot_dimension_numbers<[1], [0], [0], [1], [0, 0, 1, 1], [], []>} : vector<8x32xbf16>, vector<32x128xbf16>, vector<8x128xf32> -> vector<8x128xf32>
    %297 = arith.addf %293, %296 : vector<8x128xf32>
    %c0_178 = arith.constant 0 : index
    %c0_179 = arith.constant 0 : index
    %298 = vector.load %arg17[%c0_178, %c0_179] : memref<8x32xf32, #tpu.memory_space<vmem>>, vector<8x32xf32>
    %299 = arith.truncf %298 : vector<8x32xf32> to vector<8x32xbf16>
    %c0_180 = arith.constant 0 : index
    %c0_181 = arith.constant 0 : index
    %300 = vector.load %arg10[%c0_180, %c0_181] : memref<32x128xbf16, #tpu.memory_space<vmem>>, vector<32x128xbf16>
    %cst_182 = arith.constant dense<0.000000e+00> : vector<8x128xf32>
    %301 = tpu.matmul %299, %300, %cst_182 {dimension_numbers = #tpu.dot_dimension_numbers<[1], [0], [0], [1], [0, 0, 1, 1], [], []>} : vector<8x32xbf16>, vector<32x128xbf16>, vector<8x128xf32> -> vector<8x128xf32>
    %302 = arith.addf %297, %301 : vector<8x128xf32>
    %c0_183 = arith.constant 0 : index
    %c0_184 = arith.constant 0 : index
    %303 = vector.load %arg11[%c0_183, %c0_184] : memref<1x128xf32, #tpu.memory_space<vmem>>, vector<1x128xf32>
    %304 = vector.broadcast %303 : vector<1x128xf32> to vector<8x128xf32>
    %305 = arith.addf %302, %304 : vector<8x128xf32>
    %306 = vector.extract_strided_slice %305 {offsets = [0, 0], sizes = [8, 32], strides = [1, 1]} : vector<8x128xf32> to vector<8x32xf32>
    %307 = arith.negf %306 : vector<8x32xf32>
    %308 = math.exp %307 : vector<8x32xf32>
    %cst_185 = arith.constant 1.000000e+00 : f32
    %309 = vector.broadcast %cst_185 : f32 to vector<8x32xf32>
    %310 = arith.addf %309, %308 : vector<8x32xf32>
    %311 = arith.divf %309, %310 : vector<8x32xf32>
    %312 = vector.extract_strided_slice %305 {offsets = [0, 32], sizes = [8, 32], strides = [1, 1]} : vector<8x128xf32> to vector<8x32xf32>
    %313 = arith.negf %312 : vector<8x32xf32>
    %314 = math.exp %313 : vector<8x32xf32>
    %cst_186 = arith.constant 1.000000e+00 : f32
    %315 = vector.broadcast %cst_186 : f32 to vector<8x32xf32>
    %316 = arith.addf %315, %314 : vector<8x32xf32>
    %317 = arith.divf %315, %316 : vector<8x32xf32>
    %318 = vector.extract_strided_slice %305 {offsets = [0, 64], sizes = [8, 32], strides = [1, 1]} : vector<8x128xf32> to vector<8x32xf32>
    %319 = math.tanh %318 : vector<8x32xf32>
    %320 = vector.extract_strided_slice %305 {offsets = [0, 96], sizes = [8, 32], strides = [1, 1]} : vector<8x128xf32> to vector<8x32xf32>
    %321 = arith.negf %320 : vector<8x32xf32>
    %322 = math.exp %321 : vector<8x32xf32>
    %cst_187 = arith.constant 1.000000e+00 : f32
    %323 = vector.broadcast %cst_187 : f32 to vector<8x32xf32>
    %324 = arith.addf %323, %322 : vector<8x32xf32>
    %325 = arith.divf %323, %324 : vector<8x32xf32>
    %c0_188 = arith.constant 0 : index
    %c0_189 = arith.constant 0 : index
    %326 = vector.load %arg18[%c0_188, %c0_189] : memref<8x32xf32, #tpu.memory_space<vmem>>, vector<8x32xf32>
    %327 = arith.mulf %317, %326 : vector<8x32xf32>
    %328 = arith.mulf %311, %319 : vector<8x32xf32>
    %329 = arith.addf %327, %328 : vector<8x32xf32>
    %330 = math.tanh %329 : vector<8x32xf32>
    %331 = arith.mulf %325, %330 : vector<8x32xf32>
    %c0_190 = arith.constant 0 : index
    %c0_191 = arith.constant 0 : index
    %332 = vector.load %arg18[%c0_190, %c0_191] : memref<8x32xf32, #tpu.memory_space<vmem>>, vector<8x32xf32>
    tpu.vector_store %arg18[%c0_190, %c0_191], %329 {strides = array<i32>} : memref<8x32xf32, #tpu.memory_space<vmem>>, vector<8x32xf32>,
    %c0_192 = arith.constant 0 : index
    %c0_193 = arith.constant 0 : index
    %333 = vector.load %arg17[%c0_192, %c0_193] : memref<8x32xf32, #tpu.memory_space<vmem>>, vector<8x32xf32>
    tpu.vector_store %arg17[%c0_192, %c0_193], %331 {strides = array<i32>} : memref<8x32xf32, #tpu.memory_space<vmem>>, vector<8x32xf32>,
    %334 = arith.truncf %331 : vector<8x32xf32> to vector<8x32xbf16>
    %c0_194 = arith.constant 0 : index
    %c0_195 = arith.constant 0 : index
    %335 = vector.load %arg12[%c0_194, %c0_195] : memref<32x128xbf16, #tpu.memory_space<vmem>>, vector<32x128xbf16>
    %cst_196 = arith.constant dense<0.000000e+00> : vector<8x128xf32>
    %336 = tpu.matmul %334, %335, %cst_196 {dimension_numbers = #tpu.dot_dimension_numbers<[1], [0], [0], [1], [0, 0, 1, 1], [], []>} : vector<8x32xbf16>, vector<32x128xbf16>, vector<8x128xf32> -> vector<8x128xf32>
    %c0_197 = arith.constant 0 : index
    %c0_198 = arith.constant 0 : index
    %337 = vector.load %arg13[%c0_197, %c0_198] : memref<1x128xf32, #tpu.memory_space<vmem>>, vector<1x128xf32>
    %338 = vector.broadcast %337 : vector<1x128xf32> to vector<8x128xf32>
    %339 = arith.addf %336, %338 : vector<8x128xf32>
    %340 = tpu.iota {dimensions = array<i32: 1>} : vector<8x128xi32>
    %c16_i32_199 = arith.constant 16 : i32
    %341 = vector.broadcast %c16_i32_199 : i32 to vector<8x128xi32>
    %342 = arith.cmpi eq, %340, %341 : vector<8x128xi32>
    %343 = arith.negf %339 : vector<8x128xf32>
    %344 = math.exp %343 : vector<8x128xf32>
    %cst_200 = arith.constant 1.000000e+00 : f32
    %345 = vector.broadcast %cst_200 : f32 to vector<8x128xf32>
    %346 = arith.addf %345, %344 : vector<8x128xf32>
    %347 = arith.divf %345, %346 : vector<8x128xf32>
    %348 = arith.select %342, %347, %339 : vector<8x128xi1>, vector<8x128xf32>
    %349 = arith.index_cast %c3_i32 : i32 to index
    %c0_201 = arith.constant 0 : index
    %c0_202 = arith.constant 0 : index
    %350 = vector.load %arg16[%349, %c0_201, %c0_202] : memref<8x8x128xf32, #tpu.memory_space<vmem>>, vector<1x8x128xf32>
    %351 = vector.shape_cast %350 : vector<1x8x128xf32> to vector<8x128xf32>
    %352 = vector.shape_cast %348 : vector<8x128xf32> to vector<1x8x128xf32>
    tpu.vector_store %arg16[%349, %c0_201, %c0_202], %352 {strides = array<i32>} : memref<8x8x128xf32, #tpu.memory_space<vmem>>, vector<1x8x128xf32>,
    %c0_203 = arith.constant 0 : index
    %c0_204 = arith.constant 0 : index
    %353 = vector.load %arg19[%c0_203, %c0_204] : memref<8x128xf32, #tpu.memory_space<vmem>>, vector<8x128xf32>
    tpu.vector_store %arg19[%c0_203, %c0_204], %348 {strides = array<i32>} : memref<8x128xf32, #tpu.memory_space<vmem>>, vector<8x128xf32>,
    %c4_i32 = arith.constant 4 : i32
    %c0_205 = arith.constant 0 : index
    %c0_206 = arith.constant 0 : index
    %354 = vector.load %arg19[%c0_205, %c0_206] : memref<8x128xf32, #tpu.memory_space<vmem>>, vector<8x128xf32>
    %355 = arith.truncf %354 : vector<8x128xf32> to vector<8x128xbf16>
    %c0_207 = arith.constant 0 : index
    %c0_208 = arith.constant 0 : index
    %356 = vector.load %arg4[%c0_207, %c0_208] : memref<128x32xbf16, #tpu.memory_space<vmem>>, vector<128x32xbf16>
    %cst_209 = arith.constant dense<0.000000e+00> : vector<8x32xf32>
    %357 = tpu.matmul %355, %356, %cst_209 {dimension_numbers = #tpu.dot_dimension_numbers<[1], [0], [0], [1], [0, 0, 1, 1], [], []>} : vector<8x128xbf16>, vector<128x32xbf16>, vector<8x32xf32> -> vector<8x32xf32>
    %c0_210 = arith.constant 0 : index
    %c0_211 = arith.constant 0 : index
    %358 = vector.load %arg5[%c0_210, %c0_211] : memref<1x32xf32, #tpu.memory_space<vmem>>, vector<1x32xf32>
    %359 = vector.broadcast %358 : vector<1x32xf32> to vector<8x32xf32>
    %360 = arith.addf %357, %359 : vector<8x32xf32>
    %cst_212 = arith.constant 0.000000e+00 : f32
    %361 = vector.broadcast %cst_212 : f32 to vector<8x32xf32>
    %362 = arith.maximumf %360, %361 : vector<8x32xf32>
    %363 = arith.truncf %362 : vector<8x32xf32> to vector<8x32xbf16>
    %c0_213 = arith.constant 0 : index
    %c0_214 = arith.constant 0 : index
    %364 = vector.load %arg6[%c0_213, %c0_214] : memref<32x32xbf16, #tpu.memory_space<vmem>>, vector<32x32xbf16>
    %cst_215 = arith.constant dense<0.000000e+00> : vector<8x32xf32>
    %365 = tpu.matmul %363, %364, %cst_215 {dimension_numbers = #tpu.dot_dimension_numbers<[1], [0], [0], [1], [0, 0, 1, 1], [], []>} : vector<8x32xbf16>, vector<32x32xbf16>, vector<8x32xf32> -> vector<8x32xf32>
    %c0_216 = arith.constant 0 : index
    %c0_217 = arith.constant 0 : index
    %366 = vector.load %arg7[%c0_216, %c0_217] : memref<1x32xf32, #tpu.memory_space<vmem>>, vector<1x32xf32>
    %367 = vector.broadcast %366 : vector<1x32xf32> to vector<8x32xf32>
    %368 = arith.addf %365, %367 : vector<8x32xf32>
    %cst_218 = arith.constant 0.000000e+00 : f32
    %369 = vector.broadcast %cst_218 : f32 to vector<8x32xf32>
    %370 = arith.maximumf %368, %369 : vector<8x32xf32>
    %c0_i32_219 = arith.constant 0 : i32
    %371 = arith.cmpi eq, %arg1, %c0_i32_219 : i32
    %c0_i32_220 = arith.constant 0 : i32
    %372 = arith.cmpi eq, %c4_i32, %c0_i32_220 : i32
    %373 = arith.andi %371, %372 : i1
    %374 = arith.select %373, %5, %370 : vector<8x32xf32>
    %375 = arith.index_cast %c4_i32 : i32 to index
    %c0_221 = arith.constant 0 : index
    %c0_222 = arith.constant 0 : index
    %376 = vector.load %arg2[%375, %c0_221, %c0_222] : memref<8x8x32xf32, #tpu.memory_space<vmem>>, vector<1x8x32xf32>
    %377 = vector.shape_cast %376 : vector<1x8x32xf32> to vector<8x32xf32>
    %378 = arith.truncf %374 : vector<8x32xf32> to vector<8x32xbf16>
    %c0_223 = arith.constant 0 : index
    %c0_224 = arith.constant 0 : index
    %379 = vector.load %arg8[%c0_223, %c0_224] : memref<32x128xbf16, #tpu.memory_space<vmem>>, vector<32x128xbf16>
    %cst_225 = arith.constant dense<0.000000e+00> : vector<8x128xf32>
    %380 = tpu.matmul %378, %379, %cst_225 {dimension_numbers = #tpu.dot_dimension_numbers<[1], [0], [0], [1], [0, 0, 1, 1], [], []>} : vector<8x32xbf16>, vector<32x128xbf16>, vector<8x128xf32> -> vector<8x128xf32>
    %381 = arith.truncf %377 : vector<8x32xf32> to vector<8x32xbf16>
    %c0_226 = arith.constant 0 : index
    %c0_227 = arith.constant 0 : index
    %382 = vector.load %arg9[%c0_226, %c0_227] : memref<32x128xbf16, #tpu.memory_space<vmem>>, vector<32x128xbf16>
    %cst_228 = arith.constant dense<0.000000e+00> : vector<8x128xf32>
    %383 = tpu.matmul %381, %382, %cst_228 {dimension_numbers = #tpu.dot_dimension_numbers<[1], [0], [0], [1], [0, 0, 1, 1], [], []>} : vector<8x32xbf16>, vector<32x128xbf16>, vector<8x128xf32> -> vector<8x128xf32>
    %384 = arith.addf %380, %383 : vector<8x128xf32>
    %c0_229 = arith.constant 0 : index
    %c0_230 = arith.constant 0 : index
    %385 = vector.load %arg17[%c0_229, %c0_230] : memref<8x32xf32, #tpu.memory_space<vmem>>, vector<8x32xf32>
    %386 = arith.truncf %385 : vector<8x32xf32> to vector<8x32xbf16>
    %c0_231 = arith.constant 0 : index
    %c0_232 = arith.constant 0 : index
    %387 = vector.load %arg10[%c0_231, %c0_232] : memref<32x128xbf16, #tpu.memory_space<vmem>>, vector<32x128xbf16>
    %cst_233 = arith.constant dense<0.000000e+00> : vector<8x128xf32>
    %388 = tpu.matmul %386, %387, %cst_233 {dimension_numbers = #tpu.dot_dimension_numbers<[1], [0], [0], [1], [0, 0, 1, 1], [], []>} : vector<8x32xbf16>, vector<32x128xbf16>, vector<8x128xf32> -> vector<8x128xf32>
    %389 = arith.addf %384, %388 : vector<8x128xf32>
    %c0_234 = arith.constant 0 : index
    %c0_235 = arith.constant 0 : index
    %390 = vector.load %arg11[%c0_234, %c0_235] : memref<1x128xf32, #tpu.memory_space<vmem>>, vector<1x128xf32>
    %391 = vector.broadcast %390 : vector<1x128xf32> to vector<8x128xf32>
    %392 = arith.addf %389, %391 : vector<8x128xf32>
    %393 = vector.extract_strided_slice %392 {offsets = [0, 0], sizes = [8, 32], strides = [1, 1]} : vector<8x128xf32> to vector<8x32xf32>
    %394 = arith.negf %393 : vector<8x32xf32>
    %395 = math.exp %394 : vector<8x32xf32>
    %cst_236 = arith.constant 1.000000e+00 : f32
    %396 = vector.broadcast %cst_236 : f32 to vector<8x32xf32>
    %397 = arith.addf %396, %395 : vector<8x32xf32>
    %398 = arith.divf %396, %397 : vector<8x32xf32>
    %399 = vector.extract_strided_slice %392 {offsets = [0, 32], sizes = [8, 32], strides = [1, 1]} : vector<8x128xf32> to vector<8x32xf32>
    %400 = arith.negf %399 : vector<8x32xf32>
    %401 = math.exp %400 : vector<8x32xf32>
    %cst_237 = arith.constant 1.000000e+00 : f32
    %402 = vector.broadcast %cst_237 : f32 to vector<8x32xf32>
    %403 = arith.addf %402, %401 : vector<8x32xf32>
    %404 = arith.divf %402, %403 : vector<8x32xf32>
    %405 = vector.extract_strided_slice %392 {offsets = [0, 64], sizes = [8, 32], strides = [1, 1]} : vector<8x128xf32> to vector<8x32xf32>
    %406 = math.tanh %405 : vector<8x32xf32>
    %407 = vector.extract_strided_slice %392 {offsets = [0, 96], sizes = [8, 32], strides = [1, 1]} : vector<8x128xf32> to vector<8x32xf32>
    %408 = arith.negf %407 : vector<8x32xf32>
    %409 = math.exp %408 : vector<8x32xf32>
    %cst_238 = arith.constant 1.000000e+00 : f32
    %410 = vector.broadcast %cst_238 : f32 to vector<8x32xf32>
    %411 = arith.addf %410, %409 : vector<8x32xf32>
    %412 = arith.divf %410, %411 : vector<8x32xf32>
    %c0_239 = arith.constant 0 : index
    %c0_240 = arith.constant 0 : index
    %413 = vector.load %arg18[%c0_239, %c0_240] : memref<8x32xf32, #tpu.memory_space<vmem>>, vector<8x32xf32>
    %414 = arith.mulf %404, %413 : vector<8x32xf32>
    %415 = arith.mulf %398, %406 : vector<8x32xf32>
    %416 = arith.addf %414, %415 : vector<8x32xf32>
    %417 = math.tanh %416 : vector<8x32xf32>
    %418 = arith.mulf %412, %417 : vector<8x32xf32>
    %c0_241 = arith.constant 0 : index
    %c0_242 = arith.constant 0 : index
    %419 = vector.load %arg18[%c0_241, %c0_242] : memref<8x32xf32, #tpu.memory_space<vmem>>, vector<8x32xf32>
    tpu.vector_store %arg18[%c0_241, %c0_242], %416 {strides = array<i32>} : memref<8x32xf32, #tpu.memory_space<vmem>>, vector<8x32xf32>,
    %c0_243 = arith.constant 0 : index
    %c0_244 = arith.constant 0 : index
    %420 = vector.load %arg17[%c0_243, %c0_244] : memref<8x32xf32, #tpu.memory_space<vmem>>, vector<8x32xf32>
    tpu.vector_store %arg17[%c0_243, %c0_244], %418 {strides = array<i32>} : memref<8x32xf32, #tpu.memory_space<vmem>>, vector<8x32xf32>,
    %421 = arith.truncf %418 : vector<8x32xf32> to vector<8x32xbf16>
    %c0_245 = arith.constant 0 : index
    %c0_246 = arith.constant 0 : index
    %422 = vector.load %arg12[%c0_245, %c0_246] : memref<32x128xbf16, #tpu.memory_space<vmem>>, vector<32x128xbf16>
    %cst_247 = arith.constant dense<0.000000e+00> : vector<8x128xf32>
    %423 = tpu.matmul %421, %422, %cst_247 {dimension_numbers = #tpu.dot_dimension_numbers<[1], [0], [0], [1], [0, 0, 1, 1], [], []>} : vector<8x32xbf16>, vector<32x128xbf16>, vector<8x128xf32> -> vector<8x128xf32>
    %c0_248 = arith.constant 0 : index
    %c0_249 = arith.constant 0 : index
    %424 = vector.load %arg13[%c0_248, %c0_249] : memref<1x128xf32, #tpu.memory_space<vmem>>, vector<1x128xf32>
    %425 = vector.broadcast %424 : vector<1x128xf32> to vector<8x128xf32>
    %426 = arith.addf %423, %425 : vector<8x128xf32>
    %427 = tpu.iota {dimensions = array<i32: 1>} : vector<8x128xi32>
    %c16_i32_250 = arith.constant 16 : i32
    %428 = vector.broadcast %c16_i32_250 : i32 to vector<8x128xi32>
    %429 = arith.cmpi eq, %427, %428 : vector<8x128xi32>
    %430 = arith.negf %426 : vector<8x128xf32>
    %431 = math.exp %430 : vector<8x128xf32>
    %cst_251 = arith.constant 1.000000e+00 : f32
    %432 = vector.broadcast %cst_251 : f32 to vector<8x128xf32>
    %433 = arith.addf %432, %431 : vector<8x128xf32>
    %434 = arith.divf %432, %433 : vector<8x128xf32>
    %435 = arith.select %429, %434, %426 : vector<8x128xi1>, vector<8x128xf32>
    %436 = arith.index_cast %c4_i32 : i32 to index
    %c0_252 = arith.constant 0 : index
    %c0_253 = arith.constant 0 : index
    %437 = vector.load %arg16[%436, %c0_252, %c0_253] : memref<8x8x128xf32, #tpu.memory_space<vmem>>, vector<1x8x128xf32>
    %438 = vector.shape_cast %437 : vector<1x8x128xf32> to vector<8x128xf32>
    %439 = vector.shape_cast %435 : vector<8x128xf32> to vector<1x8x128xf32>
    tpu.vector_store %arg16[%436, %c0_252, %c0_253], %439 {strides = array<i32>} : memref<8x8x128xf32, #tpu.memory_space<vmem>>, vector<1x8x128xf32>,
    %c0_254 = arith.constant 0 : index
    %c0_255 = arith.constant 0 : index
    %440 = vector.load %arg19[%c0_254, %c0_255] : memref<8x128xf32, #tpu.memory_space<vmem>>, vector<8x128xf32>
    tpu.vector_store %arg19[%c0_254, %c0_255], %435 {strides = array<i32>} : memref<8x128xf32, #tpu.memory_space<vmem>>, vector<8x128xf32>,
    %c5_i32 = arith.constant 5 : i32
    %c0_256 = arith.constant 0 : index
    %c0_257 = arith.constant 0 : index
    %441 = vector.load %arg19[%c0_256, %c0_257] : memref<8x128xf32, #tpu.memory_space<vmem>>, vector<8x128xf32>
    %442 = arith.truncf %441 : vector<8x128xf32> to vector<8x128xbf16>
    %c0_258 = arith.constant 0 : index
    %c0_259 = arith.constant 0 : index
    %443 = vector.load %arg4[%c0_258, %c0_259] : memref<128x32xbf16, #tpu.memory_space<vmem>>, vector<128x32xbf16>
    %cst_260 = arith.constant dense<0.000000e+00> : vector<8x32xf32>
    %444 = tpu.matmul %442, %443, %cst_260 {dimension_numbers = #tpu.dot_dimension_numbers<[1], [0], [0], [1], [0, 0, 1, 1], [], []>} : vector<8x128xbf16>, vector<128x32xbf16>, vector<8x32xf32> -> vector<8x32xf32>
    %c0_261 = arith.constant 0 : index
    %c0_262 = arith.constant 0 : index
    %445 = vector.load %arg5[%c0_261, %c0_262] : memref<1x32xf32, #tpu.memory_space<vmem>>, vector<1x32xf32>
    %446 = vector.broadcast %445 : vector<1x32xf32> to vector<8x32xf32>
    %447 = arith.addf %444, %446 : vector<8x32xf32>
    %cst_263 = arith.constant 0.000000e+00 : f32
    %448 = vector.broadcast %cst_263 : f32 to vector<8x32xf32>
    %449 = arith.maximumf %447, %448 : vector<8x32xf32>
    %450 = arith.truncf %449 : vector<8x32xf32> to vector<8x32xbf16>
    %c0_264 = arith.constant 0 : index
    %c0_265 = arith.constant 0 : index
    %451 = vector.load %arg6[%c0_264, %c0_265] : memref<32x32xbf16, #tpu.memory_space<vmem>>, vector<32x32xbf16>
    %cst_266 = arith.constant dense<0.000000e+00> : vector<8x32xf32>
    %452 = tpu.matmul %450, %451, %cst_266 {dimension_numbers = #tpu.dot_dimension_numbers<[1], [0], [0], [1], [0, 0, 1, 1], [], []>} : vector<8x32xbf16>, vector<32x32xbf16>, vector<8x32xf32> -> vector<8x32xf32>
    %c0_267 = arith.constant 0 : index
    %c0_268 = arith.constant 0 : index
    %453 = vector.load %arg7[%c0_267, %c0_268] : memref<1x32xf32, #tpu.memory_space<vmem>>, vector<1x32xf32>
    %454 = vector.broadcast %453 : vector<1x32xf32> to vector<8x32xf32>
    %455 = arith.addf %452, %454 : vector<8x32xf32>
    %cst_269 = arith.constant 0.000000e+00 : f32
    %456 = vector.broadcast %cst_269 : f32 to vector<8x32xf32>
    %457 = arith.maximumf %455, %456 : vector<8x32xf32>
    %c0_i32_270 = arith.constant 0 : i32
    %458 = arith.cmpi eq, %arg1, %c0_i32_270 : i32
    %c0_i32_271 = arith.constant 0 : i32
    %459 = arith.cmpi eq, %c5_i32, %c0_i32_271 : i32
    %460 = arith.andi %458, %459 : i1
    %461 = arith.select %460, %5, %457 : vector<8x32xf32>
    %462 = arith.index_cast %c5_i32 : i32 to index
    %c0_272 = arith.constant 0 : index
    %c0_273 = arith.constant 0 : index
    %463 = vector.load %arg2[%462, %c0_272, %c0_273] : memref<8x8x32xf32, #tpu.memory_space<vmem>>, vector<1x8x32xf32>
    %464 = vector.shape_cast %463 : vector<1x8x32xf32> to vector<8x32xf32>
    %465 = arith.truncf %461 : vector<8x32xf32> to vector<8x32xbf16>
    %c0_274 = arith.constant 0 : index
    %c0_275 = arith.constant 0 : index
    %466 = vector.load %arg8[%c0_274, %c0_275] : memref<32x128xbf16, #tpu.memory_space<vmem>>, vector<32x128xbf16>
    %cst_276 = arith.constant dense<0.000000e+00> : vector<8x128xf32>
    %467 = tpu.matmul %465, %466, %cst_276 {dimension_numbers = #tpu.dot_dimension_numbers<[1], [0], [0], [1], [0, 0, 1, 1], [], []>} : vector<8x32xbf16>, vector<32x128xbf16>, vector<8x128xf32> -> vector<8x128xf32>
    %468 = arith.truncf %464 : vector<8x32xf32> to vector<8x32xbf16>
    %c0_277 = arith.constant 0 : index
    %c0_278 = arith.constant 0 : index
    %469 = vector.load %arg9[%c0_277, %c0_278] : memref<32x128xbf16, #tpu.memory_space<vmem>>, vector<32x128xbf16>
    %cst_279 = arith.constant dense<0.000000e+00> : vector<8x128xf32>
    %470 = tpu.matmul %468, %469, %cst_279 {dimension_numbers = #tpu.dot_dimension_numbers<[1], [0], [0], [1], [0, 0, 1, 1], [], []>} : vector<8x32xbf16>, vector<32x128xbf16>, vector<8x128xf32> -> vector<8x128xf32>
    %471 = arith.addf %467, %470 : vector<8x128xf32>
    %c0_280 = arith.constant 0 : index
    %c0_281 = arith.constant 0 : index
    %472 = vector.load %arg17[%c0_280, %c0_281] : memref<8x32xf32, #tpu.memory_space<vmem>>, vector<8x32xf32>
    %473 = arith.truncf %472 : vector<8x32xf32> to vector<8x32xbf16>
    %c0_282 = arith.constant 0 : index
    %c0_283 = arith.constant 0 : index
    %474 = vector.load %arg10[%c0_282, %c0_283] : memref<32x128xbf16, #tpu.memory_space<vmem>>, vector<32x128xbf16>
    %cst_284 = arith.constant dense<0.000000e+00> : vector<8x128xf32>
    %475 = tpu.matmul %473, %474, %cst_284 {dimension_numbers = #tpu.dot_dimension_numbers<[1], [0], [0], [1], [0, 0, 1, 1], [], []>} : vector<8x32xbf16>, vector<32x128xbf16>, vector<8x128xf32> -> vector<8x128xf32>
    %476 = arith.addf %471, %475 : vector<8x128xf32>
    %c0_285 = arith.constant 0 : index
    %c0_286 = arith.constant 0 : index
    %477 = vector.load %arg11[%c0_285, %c0_286] : memref<1x128xf32, #tpu.memory_space<vmem>>, vector<1x128xf32>
    %478 = vector.broadcast %477 : vector<1x128xf32> to vector<8x128xf32>
    %479 = arith.addf %476, %478 : vector<8x128xf32>
    %480 = vector.extract_strided_slice %479 {offsets = [0, 0], sizes = [8, 32], strides = [1, 1]} : vector<8x128xf32> to vector<8x32xf32>
    %481 = arith.negf %480 : vector<8x32xf32>
    %482 = math.exp %481 : vector<8x32xf32>
    %cst_287 = arith.constant 1.000000e+00 : f32
    %483 = vector.broadcast %cst_287 : f32 to vector<8x32xf32>
    %484 = arith.addf %483, %482 : vector<8x32xf32>
    %485 = arith.divf %483, %484 : vector<8x32xf32>
    %486 = vector.extract_strided_slice %479 {offsets = [0, 32], sizes = [8, 32], strides = [1, 1]} : vector<8x128xf32> to vector<8x32xf32>
    %487 = arith.negf %486 : vector<8x32xf32>
    %488 = math.exp %487 : vector<8x32xf32>
    %cst_288 = arith.constant 1.000000e+00 : f32
    %489 = vector.broadcast %cst_288 : f32 to vector<8x32xf32>
    %490 = arith.addf %489, %488 : vector<8x32xf32>
    %491 = arith.divf %489, %490 : vector<8x32xf32>
    %492 = vector.extract_strided_slice %479 {offsets = [0, 64], sizes = [8, 32], strides = [1, 1]} : vector<8x128xf32> to vector<8x32xf32>
    %493 = math.tanh %492 : vector<8x32xf32>
    %494 = vector.extract_strided_slice %479 {offsets = [0, 96], sizes = [8, 32], strides = [1, 1]} : vector<8x128xf32> to vector<8x32xf32>
    %495 = arith.negf %494 : vector<8x32xf32>
    %496 = math.exp %495 : vector<8x32xf32>
    %cst_289 = arith.constant 1.000000e+00 : f32
    %497 = vector.broadcast %cst_289 : f32 to vector<8x32xf32>
    %498 = arith.addf %497, %496 : vector<8x32xf32>
    %499 = arith.divf %497, %498 : vector<8x32xf32>
    %c0_290 = arith.constant 0 : index
    %c0_291 = arith.constant 0 : index
    %500 = vector.load %arg18[%c0_290, %c0_291] : memref<8x32xf32, #tpu.memory_space<vmem>>, vector<8x32xf32>
    %501 = arith.mulf %491, %500 : vector<8x32xf32>
    %502 = arith.mulf %485, %493 : vector<8x32xf32>
    %503 = arith.addf %501, %502 : vector<8x32xf32>
    %504 = math.tanh %503 : vector<8x32xf32>
    %505 = arith.mulf %499, %504 : vector<8x32xf32>
    %c0_292 = arith.constant 0 : index
    %c0_293 = arith.constant 0 : index
    %506 = vector.load %arg18[%c0_292, %c0_293] : memref<8x32xf32, #tpu.memory_space<vmem>>, vector<8x32xf32>
    tpu.vector_store %arg18[%c0_292, %c0_293], %503 {strides = array<i32>} : memref<8x32xf32, #tpu.memory_space<vmem>>, vector<8x32xf32>,
    %c0_294 = arith.constant 0 : index
    %c0_295 = arith.constant 0 : index
    %507 = vector.load %arg17[%c0_294, %c0_295] : memref<8x32xf32, #tpu.memory_space<vmem>>, vector<8x32xf32>
    tpu.vector_store %arg17[%c0_294, %c0_295], %505 {strides = array<i32>} : memref<8x32xf32, #tpu.memory_space<vmem>>, vector<8x32xf32>,
    %508 = arith.truncf %505 : vector<8x32xf32> to vector<8x32xbf16>
    %c0_296 = arith.constant 0 : index
    %c0_297 = arith.constant 0 : index
    %509 = vector.load %arg12[%c0_296, %c0_297] : memref<32x128xbf16, #tpu.memory_space<vmem>>, vector<32x128xbf16>
    %cst_298 = arith.constant dense<0.000000e+00> : vector<8x128xf32>
    %510 = tpu.matmul %508, %509, %cst_298 {dimension_numbers = #tpu.dot_dimension_numbers<[1], [0], [0], [1], [0, 0, 1, 1], [], []>} : vector<8x32xbf16>, vector<32x128xbf16>, vector<8x128xf32> -> vector<8x128xf32>
    %c0_299 = arith.constant 0 : index
    %c0_300 = arith.constant 0 : index
    %511 = vector.load %arg13[%c0_299, %c0_300] : memref<1x128xf32, #tpu.memory_space<vmem>>, vector<1x128xf32>
    %512 = vector.broadcast %511 : vector<1x128xf32> to vector<8x128xf32>
    %513 = arith.addf %510, %512 : vector<8x128xf32>
    %514 = tpu.iota {dimensions = array<i32: 1>} : vector<8x128xi32>
    %c16_i32_301 = arith.constant 16 : i32
    %515 = vector.broadcast %c16_i32_301 : i32 to vector<8x128xi32>
    %516 = arith.cmpi eq, %514, %515 : vector<8x128xi32>
    %517 = arith.negf %513 : vector<8x128xf32>
    %518 = math.exp %517 : vector<8x128xf32>
    %cst_302 = arith.constant 1.000000e+00 : f32
    %519 = vector.broadcast %cst_302 : f32 to vector<8x128xf32>
    %520 = arith.addf %519, %518 : vector<8x128xf32>
    %521 = arith.divf %519, %520 : vector<8x128xf32>
    %522 = arith.select %516, %521, %513 : vector<8x128xi1>, vector<8x128xf32>
    %523 = arith.index_cast %c5_i32 : i32 to index
    %c0_303 = arith.constant 0 : index
    %c0_304 = arith.constant 0 : index
    %524 = vector.load %arg16[%523, %c0_303, %c0_304] : memref<8x8x128xf32, #tpu.memory_space<vmem>>, vector<1x8x128xf32>
    %525 = vector.shape_cast %524 : vector<1x8x128xf32> to vector<8x128xf32>
    %526 = vector.shape_cast %522 : vector<8x128xf32> to vector<1x8x128xf32>
    tpu.vector_store %arg16[%523, %c0_303, %c0_304], %526 {strides = array<i32>} : memref<8x8x128xf32, #tpu.memory_space<vmem>>, vector<1x8x128xf32>,
    %c0_305 = arith.constant 0 : index
    %c0_306 = arith.constant 0 : index
    %527 = vector.load %arg19[%c0_305, %c0_306] : memref<8x128xf32, #tpu.memory_space<vmem>>, vector<8x128xf32>
    tpu.vector_store %arg19[%c0_305, %c0_306], %522 {strides = array<i32>} : memref<8x128xf32, #tpu.memory_space<vmem>>, vector<8x128xf32>,
    %c6_i32 = arith.constant 6 : i32
    %c0_307 = arith.constant 0 : index
    %c0_308 = arith.constant 0 : index
    %528 = vector.load %arg19[%c0_307, %c0_308] : memref<8x128xf32, #tpu.memory_space<vmem>>, vector<8x128xf32>
    %529 = arith.truncf %528 : vector<8x128xf32> to vector<8x128xbf16>
    %c0_309 = arith.constant 0 : index
    %c0_310 = arith.constant 0 : index
    %530 = vector.load %arg4[%c0_309, %c0_310] : memref<128x32xbf16, #tpu.memory_space<vmem>>, vector<128x32xbf16>
    %cst_311 = arith.constant dense<0.000000e+00> : vector<8x32xf32>
    %531 = tpu.matmul %529, %530, %cst_311 {dimension_numbers = #tpu.dot_dimension_numbers<[1], [0], [0], [1], [0, 0, 1, 1], [], []>} : vector<8x128xbf16>, vector<128x32xbf16>, vector<8x32xf32> -> vector<8x32xf32>
    %c0_312 = arith.constant 0 : index
    %c0_313 = arith.constant 0 : index
    %532 = vector.load %arg5[%c0_312, %c0_313] : memref<1x32xf32, #tpu.memory_space<vmem>>, vector<1x32xf32>
    %533 = vector.broadcast %532 : vector<1x32xf32> to vector<8x32xf32>
    %534 = arith.addf %531, %533 : vector<8x32xf32>
    %cst_314 = arith.constant 0.000000e+00 : f32
    %535 = vector.broadcast %cst_314 : f32 to vector<8x32xf32>
    %536 = arith.maximumf %534, %535 : vector<8x32xf32>
    %537 = arith.truncf %536 : vector<8x32xf32> to vector<8x32xbf16>
    %c0_315 = arith.constant 0 : index
    %c0_316 = arith.constant 0 : index
    %538 = vector.load %arg6[%c0_315, %c0_316] : memref<32x32xbf16, #tpu.memory_space<vmem>>, vector<32x32xbf16>
    %cst_317 = arith.constant dense<0.000000e+00> : vector<8x32xf32>
    %539 = tpu.matmul %537, %538, %cst_317 {dimension_numbers = #tpu.dot_dimension_numbers<[1], [0], [0], [1], [0, 0, 1, 1], [], []>} : vector<8x32xbf16>, vector<32x32xbf16>, vector<8x32xf32> -> vector<8x32xf32>
    %c0_318 = arith.constant 0 : index
    %c0_319 = arith.constant 0 : index
    %540 = vector.load %arg7[%c0_318, %c0_319] : memref<1x32xf32, #tpu.memory_space<vmem>>, vector<1x32xf32>
    %541 = vector.broadcast %540 : vector<1x32xf32> to vector<8x32xf32>
    %542 = arith.addf %539, %541 : vector<8x32xf32>
    %cst_320 = arith.constant 0.000000e+00 : f32
    %543 = vector.broadcast %cst_320 : f32 to vector<8x32xf32>
    %544 = arith.maximumf %542, %543 : vector<8x32xf32>
    %c0_i32_321 = arith.constant 0 : i32
    %545 = arith.cmpi eq, %arg1, %c0_i32_321 : i32
    %c0_i32_322 = arith.constant 0 : i32
    %546 = arith.cmpi eq, %c6_i32, %c0_i32_322 : i32
    %547 = arith.andi %545, %546 : i1
    %548 = arith.select %547, %5, %544 : vector<8x32xf32>
    %549 = arith.index_cast %c6_i32 : i32 to index
    %c0_323 = arith.constant 0 : index
    %c0_324 = arith.constant 0 : index
    %550 = vector.load %arg2[%549, %c0_323, %c0_324] : memref<8x8x32xf32, #tpu.memory_space<vmem>>, vector<1x8x32xf32>
    %551 = vector.shape_cast %550 : vector<1x8x32xf32> to vector<8x32xf32>
    %552 = arith.truncf %548 : vector<8x32xf32> to vector<8x32xbf16>
    %c0_325 = arith.constant 0 : index
    %c0_326 = arith.constant 0 : index
    %553 = vector.load %arg8[%c0_325, %c0_326] : memref<32x128xbf16, #tpu.memory_space<vmem>>, vector<32x128xbf16>
    %cst_327 = arith.constant dense<0.000000e+00> : vector<8x128xf32>
    %554 = tpu.matmul %552, %553, %cst_327 {dimension_numbers = #tpu.dot_dimension_numbers<[1], [0], [0], [1], [0, 0, 1, 1], [], []>} : vector<8x32xbf16>, vector<32x128xbf16>, vector<8x128xf32> -> vector<8x128xf32>
    %555 = arith.truncf %551 : vector<8x32xf32> to vector<8x32xbf16>
    %c0_328 = arith.constant 0 : index
    %c0_329 = arith.constant 0 : index
    %556 = vector.load %arg9[%c0_328, %c0_329] : memref<32x128xbf16, #tpu.memory_space<vmem>>, vector<32x128xbf16>
    %cst_330 = arith.constant dense<0.000000e+00> : vector<8x128xf32>
    %557 = tpu.matmul %555, %556, %cst_330 {dimension_numbers = #tpu.dot_dimension_numbers<[1], [0], [0], [1], [0, 0, 1, 1], [], []>} : vector<8x32xbf16>, vector<32x128xbf16>, vector<8x128xf32> -> vector<8x128xf32>
    %558 = arith.addf %554, %557 : vector<8x128xf32>
    %c0_331 = arith.constant 0 : index
    %c0_332 = arith.constant 0 : index
    %559 = vector.load %arg17[%c0_331, %c0_332] : memref<8x32xf32, #tpu.memory_space<vmem>>, vector<8x32xf32>
    %560 = arith.truncf %559 : vector<8x32xf32> to vector<8x32xbf16>
    %c0_333 = arith.constant 0 : index
    %c0_334 = arith.constant 0 : index
    %561 = vector.load %arg10[%c0_333, %c0_334] : memref<32x128xbf16, #tpu.memory_space<vmem>>, vector<32x128xbf16>
    %cst_335 = arith.constant dense<0.000000e+00> : vector<8x128xf32>
    %562 = tpu.matmul %560, %561, %cst_335 {dimension_numbers = #tpu.dot_dimension_numbers<[1], [0], [0], [1], [0, 0, 1, 1], [], []>} : vector<8x32xbf16>, vector<32x128xbf16>, vector<8x128xf32> -> vector<8x128xf32>
    %563 = arith.addf %558, %562 : vector<8x128xf32>
    %c0_336 = arith.constant 0 : index
    %c0_337 = arith.constant 0 : index
    %564 = vector.load %arg11[%c0_336, %c0_337] : memref<1x128xf32, #tpu.memory_space<vmem>>, vector<1x128xf32>
    %565 = vector.broadcast %564 : vector<1x128xf32> to vector<8x128xf32>
    %566 = arith.addf %563, %565 : vector<8x128xf32>
    %567 = vector.extract_strided_slice %566 {offsets = [0, 0], sizes = [8, 32], strides = [1, 1]} : vector<8x128xf32> to vector<8x32xf32>
    %568 = arith.negf %567 : vector<8x32xf32>
    %569 = math.exp %568 : vector<8x32xf32>
    %cst_338 = arith.constant 1.000000e+00 : f32
    %570 = vector.broadcast %cst_338 : f32 to vector<8x32xf32>
    %571 = arith.addf %570, %569 : vector<8x32xf32>
    %572 = arith.divf %570, %571 : vector<8x32xf32>
    %573 = vector.extract_strided_slice %566 {offsets = [0, 32], sizes = [8, 32], strides = [1, 1]} : vector<8x128xf32> to vector<8x32xf32>
    %574 = arith.negf %573 : vector<8x32xf32>
    %575 = math.exp %574 : vector<8x32xf32>
    %cst_339 = arith.constant 1.000000e+00 : f32
    %576 = vector.broadcast %cst_339 : f32 to vector<8x32xf32>
    %577 = arith.addf %576, %575 : vector<8x32xf32>
    %578 = arith.divf %576, %577 : vector<8x32xf32>
    %579 = vector.extract_strided_slice %566 {offsets = [0, 64], sizes = [8, 32], strides = [1, 1]} : vector<8x128xf32> to vector<8x32xf32>
    %580 = math.tanh %579 : vector<8x32xf32>
    %581 = vector.extract_strided_slice %566 {offsets = [0, 96], sizes = [8, 32], strides = [1, 1]} : vector<8x128xf32> to vector<8x32xf32>
    %582 = arith.negf %581 : vector<8x32xf32>
    %583 = math.exp %582 : vector<8x32xf32>
    %cst_340 = arith.constant 1.000000e+00 : f32
    %584 = vector.broadcast %cst_340 : f32 to vector<8x32xf32>
    %585 = arith.addf %584, %583 : vector<8x32xf32>
    %586 = arith.divf %584, %585 : vector<8x32xf32>
    %c0_341 = arith.constant 0 : index
    %c0_342 = arith.constant 0 : index
    %587 = vector.load %arg18[%c0_341, %c0_342] : memref<8x32xf32, #tpu.memory_space<vmem>>, vector<8x32xf32>
    %588 = arith.mulf %578, %587 : vector<8x32xf32>
    %589 = arith.mulf %572, %580 : vector<8x32xf32>
    %590 = arith.addf %588, %589 : vector<8x32xf32>
    %591 = math.tanh %590 : vector<8x32xf32>
    %592 = arith.mulf %586, %591 : vector<8x32xf32>
    %c0_343 = arith.constant 0 : index
    %c0_344 = arith.constant 0 : index
    %593 = vector.load %arg18[%c0_343, %c0_344] : memref<8x32xf32, #tpu.memory_space<vmem>>, vector<8x32xf32>
    tpu.vector_store %arg18[%c0_343, %c0_344], %590 {strides = array<i32>} : memref<8x32xf32, #tpu.memory_space<vmem>>, vector<8x32xf32>,
    %c0_345 = arith.constant 0 : index
    %c0_346 = arith.constant 0 : index
    %594 = vector.load %arg17[%c0_345, %c0_346] : memref<8x32xf32, #tpu.memory_space<vmem>>, vector<8x32xf32>
    tpu.vector_store %arg17[%c0_345, %c0_346], %592 {strides = array<i32>} : memref<8x32xf32, #tpu.memory_space<vmem>>, vector<8x32xf32>,
    %595 = arith.truncf %592 : vector<8x32xf32> to vector<8x32xbf16>
    %c0_347 = arith.constant 0 : index
    %c0_348 = arith.constant 0 : index
    %596 = vector.load %arg12[%c0_347, %c0_348] : memref<32x128xbf16, #tpu.memory_space<vmem>>, vector<32x128xbf16>
    %cst_349 = arith.constant dense<0.000000e+00> : vector<8x128xf32>
    %597 = tpu.matmul %595, %596, %cst_349 {dimension_numbers = #tpu.dot_dimension_numbers<[1], [0], [0], [1], [0, 0, 1, 1], [], []>} : vector<8x32xbf16>, vector<32x128xbf16>, vector<8x128xf32> -> vector<8x128xf32>
    %c0_350 = arith.constant 0 : index
    %c0_351 = arith.constant 0 : index
    %598 = vector.load %arg13[%c0_350, %c0_351] : memref<1x128xf32, #tpu.memory_space<vmem>>, vector<1x128xf32>
    %599 = vector.broadcast %598 : vector<1x128xf32> to vector<8x128xf32>
    %600 = arith.addf %597, %599 : vector<8x128xf32>
    %601 = tpu.iota {dimensions = array<i32: 1>} : vector<8x128xi32>
    %c16_i32_352 = arith.constant 16 : i32
    %602 = vector.broadcast %c16_i32_352 : i32 to vector<8x128xi32>
    %603 = arith.cmpi eq, %601, %602 : vector<8x128xi32>
    %604 = arith.negf %600 : vector<8x128xf32>
    %605 = math.exp %604 : vector<8x128xf32>
    %cst_353 = arith.constant 1.000000e+00 : f32
    %606 = vector.broadcast %cst_353 : f32 to vector<8x128xf32>
    %607 = arith.addf %606, %605 : vector<8x128xf32>
    %608 = arith.divf %606, %607 : vector<8x128xf32>
    %609 = arith.select %603, %608, %600 : vector<8x128xi1>, vector<8x128xf32>
    %610 = arith.index_cast %c6_i32 : i32 to index
    %c0_354 = arith.constant 0 : index
    %c0_355 = arith.constant 0 : index
    %611 = vector.load %arg16[%610, %c0_354, %c0_355] : memref<8x8x128xf32, #tpu.memory_space<vmem>>, vector<1x8x128xf32>
    %612 = vector.shape_cast %611 : vector<1x8x128xf32> to vector<8x128xf32>
    %613 = vector.shape_cast %609 : vector<8x128xf32> to vector<1x8x128xf32>
    tpu.vector_store %arg16[%610, %c0_354, %c0_355], %613 {strides = array<i32>} : memref<8x8x128xf32, #tpu.memory_space<vmem>>, vector<1x8x128xf32>,
    %c0_356 = arith.constant 0 : index
    %c0_357 = arith.constant 0 : index
    %614 = vector.load %arg19[%c0_356, %c0_357] : memref<8x128xf32, #tpu.memory_space<vmem>>, vector<8x128xf32>
    tpu.vector_store %arg19[%c0_356, %c0_357], %609 {strides = array<i32>} : memref<8x128xf32, #tpu.memory_space<vmem>>, vector<8x128xf32>,
    %c7_i32 = arith.constant 7 : i32
    %c0_358 = arith.constant 0 : index
    %c0_359 = arith.constant 0 : index
    %615 = vector.load %arg19[%c0_358, %c0_359] : memref<8x128xf32, #tpu.memory_space<vmem>>, vector<8x128xf32>
    %616 = arith.truncf %615 : vector<8x128xf32> to vector<8x128xbf16>
    %c0_360 = arith.constant 0 : index
    %c0_361 = arith.constant 0 : index
    %617 = vector.load %arg4[%c0_360, %c0_361] : memref<128x32xbf16, #tpu.memory_space<vmem>>, vector<128x32xbf16>
    %cst_362 = arith.constant dense<0.000000e+00> : vector<8x32xf32>
    %618 = tpu.matmul %616, %617, %cst_362 {dimension_numbers = #tpu.dot_dimension_numbers<[1], [0], [0], [1], [0, 0, 1, 1], [], []>} : vector<8x128xbf16>, vector<128x32xbf16>, vector<8x32xf32> -> vector<8x32xf32>
    %c0_363 = arith.constant 0 : index
    %c0_364 = arith.constant 0 : index
    %619 = vector.load %arg5[%c0_363, %c0_364] : memref<1x32xf32, #tpu.memory_space<vmem>>, vector<1x32xf32>
    %620 = vector.broadcast %619 : vector<1x32xf32> to vector<8x32xf32>
    %621 = arith.addf %618, %620 : vector<8x32xf32>
    %cst_365 = arith.constant 0.000000e+00 : f32
    %622 = vector.broadcast %cst_365 : f32 to vector<8x32xf32>
    %623 = arith.maximumf %621, %622 : vector<8x32xf32>
    %624 = arith.truncf %623 : vector<8x32xf32> to vector<8x32xbf16>
    %c0_366 = arith.constant 0 : index
    %c0_367 = arith.constant 0 : index
    %625 = vector.load %arg6[%c0_366, %c0_367] : memref<32x32xbf16, #tpu.memory_space<vmem>>, vector<32x32xbf16>
    %cst_368 = arith.constant dense<0.000000e+00> : vector<8x32xf32>
    %626 = tpu.matmul %624, %625, %cst_368 {dimension_numbers = #tpu.dot_dimension_numbers<[1], [0], [0], [1], [0, 0, 1, 1], [], []>} : vector<8x32xbf16>, vector<32x32xbf16>, vector<8x32xf32> -> vector<8x32xf32>
    %c0_369 = arith.constant 0 : index
    %c0_370 = arith.constant 0 : index
    %627 = vector.load %arg7[%c0_369, %c0_370] : memref<1x32xf32, #tpu.memory_space<vmem>>, vector<1x32xf32>
    %628 = vector.broadcast %627 : vector<1x32xf32> to vector<8x32xf32>
    %629 = arith.addf %626, %628 : vector<8x32xf32>
    %cst_371 = arith.constant 0.000000e+00 : f32
    %630 = vector.broadcast %cst_371 : f32 to vector<8x32xf32>
    %631 = arith.maximumf %629, %630 : vector<8x32xf32>
    %c0_i32_372 = arith.constant 0 : i32
    %632 = arith.cmpi eq, %arg1, %c0_i32_372 : i32
    %c0_i32_373 = arith.constant 0 : i32
    %633 = arith.cmpi eq, %c7_i32, %c0_i32_373 : i32
    %634 = arith.andi %632, %633 : i1
    %635 = arith.select %634, %5, %631 : vector<8x32xf32>
    %636 = arith.index_cast %c7_i32 : i32 to index
    %c0_374 = arith.constant 0 : index
    %c0_375 = arith.constant 0 : index
    %637 = vector.load %arg2[%636, %c0_374, %c0_375] : memref<8x8x32xf32, #tpu.memory_space<vmem>>, vector<1x8x32xf32>
    %638 = vector.shape_cast %637 : vector<1x8x32xf32> to vector<8x32xf32>
    %639 = arith.truncf %635 : vector<8x32xf32> to vector<8x32xbf16>
    %c0_376 = arith.constant 0 : index
    %c0_377 = arith.constant 0 : index
    %640 = vector.load %arg8[%c0_376, %c0_377] : memref<32x128xbf16, #tpu.memory_space<vmem>>, vector<32x128xbf16>
    %cst_378 = arith.constant dense<0.000000e+00> : vector<8x128xf32>
    %641 = tpu.matmul %639, %640, %cst_378 {dimension_numbers = #tpu.dot_dimension_numbers<[1], [0], [0], [1], [0, 0, 1, 1], [], []>} : vector<8x32xbf16>, vector<32x128xbf16>, vector<8x128xf32> -> vector<8x128xf32>
    %642 = arith.truncf %638 : vector<8x32xf32> to vector<8x32xbf16>
    %c0_379 = arith.constant 0 : index
    %c0_380 = arith.constant 0 : index
    %643 = vector.load %arg9[%c0_379, %c0_380] : memref<32x128xbf16, #tpu.memory_space<vmem>>, vector<32x128xbf16>
    %cst_381 = arith.constant dense<0.000000e+00> : vector<8x128xf32>
    %644 = tpu.matmul %642, %643, %cst_381 {dimension_numbers = #tpu.dot_dimension_numbers<[1], [0], [0], [1], [0, 0, 1, 1], [], []>} : vector<8x32xbf16>, vector<32x128xbf16>, vector<8x128xf32> -> vector<8x128xf32>
    %645 = arith.addf %641, %644 : vector<8x128xf32>
    %c0_382 = arith.constant 0 : index
    %c0_383 = arith.constant 0 : index
    %646 = vector.load %arg17[%c0_382, %c0_383] : memref<8x32xf32, #tpu.memory_space<vmem>>, vector<8x32xf32>
    %647 = arith.truncf %646 : vector<8x32xf32> to vector<8x32xbf16>
    %c0_384 = arith.constant 0 : index
    %c0_385 = arith.constant 0 : index
    %648 = vector.load %arg10[%c0_384, %c0_385] : memref<32x128xbf16, #tpu.memory_space<vmem>>, vector<32x128xbf16>
    %cst_386 = arith.constant dense<0.000000e+00> : vector<8x128xf32>
    %649 = tpu.matmul %647, %648, %cst_386 {dimension_numbers = #tpu.dot_dimension_numbers<[1], [0], [0], [1], [0, 0, 1, 1], [], []>} : vector<8x32xbf16>, vector<32x128xbf16>, vector<8x128xf32> -> vector<8x128xf32>
    %650 = arith.addf %645, %649 : vector<8x128xf32>
    %c0_387 = arith.constant 0 : index
    %c0_388 = arith.constant 0 : index
    %651 = vector.load %arg11[%c0_387, %c0_388] : memref<1x128xf32, #tpu.memory_space<vmem>>, vector<1x128xf32>
    %652 = vector.broadcast %651 : vector<1x128xf32> to vector<8x128xf32>
    %653 = arith.addf %650, %652 : vector<8x128xf32>
    %654 = vector.extract_strided_slice %653 {offsets = [0, 0], sizes = [8, 32], strides = [1, 1]} : vector<8x128xf32> to vector<8x32xf32>
    %655 = arith.negf %654 : vector<8x32xf32>
    %656 = math.exp %655 : vector<8x32xf32>
    %cst_389 = arith.constant 1.000000e+00 : f32
    %657 = vector.broadcast %cst_389 : f32 to vector<8x32xf32>
    %658 = arith.addf %657, %656 : vector<8x32xf32>
    %659 = arith.divf %657, %658 : vector<8x32xf32>
    %660 = vector.extract_strided_slice %653 {offsets = [0, 32], sizes = [8, 32], strides = [1, 1]} : vector<8x128xf32> to vector<8x32xf32>
    %661 = arith.negf %660 : vector<8x32xf32>
    %662 = math.exp %661 : vector<8x32xf32>
    %cst_390 = arith.constant 1.000000e+00 : f32
    %663 = vector.broadcast %cst_390 : f32 to vector<8x32xf32>
    %664 = arith.addf %663, %662 : vector<8x32xf32>
    %665 = arith.divf %663, %664 : vector<8x32xf32>
    %666 = vector.extract_strided_slice %653 {offsets = [0, 64], sizes = [8, 32], strides = [1, 1]} : vector<8x128xf32> to vector<8x32xf32>
    %667 = math.tanh %666 : vector<8x32xf32>
    %668 = vector.extract_strided_slice %653 {offsets = [0, 96], sizes = [8, 32], strides = [1, 1]} : vector<8x128xf32> to vector<8x32xf32>
    %669 = arith.negf %668 : vector<8x32xf32>
    %670 = math.exp %669 : vector<8x32xf32>
    %cst_391 = arith.constant 1.000000e+00 : f32
    %671 = vector.broadcast %cst_391 : f32 to vector<8x32xf32>
    %672 = arith.addf %671, %670 : vector<8x32xf32>
    %673 = arith.divf %671, %672 : vector<8x32xf32>
    %c0_392 = arith.constant 0 : index
    %c0_393 = arith.constant 0 : index
    %674 = vector.load %arg18[%c0_392, %c0_393] : memref<8x32xf32, #tpu.memory_space<vmem>>, vector<8x32xf32>
    %675 = arith.mulf %665, %674 : vector<8x32xf32>
    %676 = arith.mulf %659, %667 : vector<8x32xf32>
    %677 = arith.addf %675, %676 : vector<8x32xf32>
    %678 = math.tanh %677 : vector<8x32xf32>
    %679 = arith.mulf %673, %678 : vector<8x32xf32>
    %c0_394 = arith.constant 0 : index
    %c0_395 = arith.constant 0 : index
    %680 = vector.load %arg18[%c0_394, %c0_395] : memref<8x32xf32, #tpu.memory_space<vmem>>, vector<8x32xf32>
    tpu.vector_store %arg18[%c0_394, %c0_395], %677 {strides = array<i32>} : memref<8x32xf32, #tpu.memory_space<vmem>>, vector<8x32xf32>,
    %c0_396 = arith.constant 0 : index
    %c0_397 = arith.constant 0 : index
    %681 = vector.load %arg17[%c0_396, %c0_397] : memref<8x32xf32, #tpu.memory_space<vmem>>, vector<8x32xf32>
    tpu.vector_store %arg17[%c0_396, %c0_397], %679 {strides = array<i32>} : memref<8x32xf32, #tpu.memory_space<vmem>>, vector<8x32xf32>,
    %682 = arith.truncf %679 : vector<8x32xf32> to vector<8x32xbf16>
    %c0_398 = arith.constant 0 : index
    %c0_399 = arith.constant 0 : index
    %683 = vector.load %arg12[%c0_398, %c0_399] : memref<32x128xbf16, #tpu.memory_space<vmem>>, vector<32x128xbf16>
    %cst_400 = arith.constant dense<0.000000e+00> : vector<8x128xf32>
    %684 = tpu.matmul %682, %683, %cst_400 {dimension_numbers = #tpu.dot_dimension_numbers<[1], [0], [0], [1], [0, 0, 1, 1], [], []>} : vector<8x32xbf16>, vector<32x128xbf16>, vector<8x128xf32> -> vector<8x128xf32>
    %c0_401 = arith.constant 0 : index
    %c0_402 = arith.constant 0 : index
    %685 = vector.load %arg13[%c0_401, %c0_402] : memref<1x128xf32, #tpu.memory_space<vmem>>, vector<1x128xf32>
    %686 = vector.broadcast %685 : vector<1x128xf32> to vector<8x128xf32>
    %687 = arith.addf %684, %686 : vector<8x128xf32>
    %688 = tpu.iota {dimensions = array<i32: 1>} : vector<8x128xi32>
    %c16_i32_403 = arith.constant 16 : i32
    %689 = vector.broadcast %c16_i32_403 : i32 to vector<8x128xi32>
    %690 = arith.cmpi eq, %688, %689 : vector<8x128xi32>
    %691 = arith.negf %687 : vector<8x128xf32>
    %692 = math.exp %691 : vector<8x128xf32>
    %cst_404 = arith.constant 1.000000e+00 : f32
    %693 = vector.broadcast %cst_404 : f32 to vector<8x128xf32>
    %694 = arith.addf %693, %692 : vector<8x128xf32>
    %695 = arith.divf %693, %694 : vector<8x128xf32>
    %696 = arith.select %690, %695, %687 : vector<8x128xi1>, vector<8x128xf32>
    %697 = arith.index_cast %c7_i32 : i32 to index
    %c0_405 = arith.constant 0 : index
    %c0_406 = arith.constant 0 : index
    %698 = vector.load %arg16[%697, %c0_405, %c0_406] : memref<8x8x128xf32, #tpu.memory_space<vmem>>, vector<1x8x128xf32>
    %699 = vector.shape_cast %698 : vector<1x8x128xf32> to vector<8x128xf32>
    %700 = vector.shape_cast %696 : vector<8x128xf32> to vector<1x8x128xf32>
    tpu.vector_store %arg16[%697, %c0_405, %c0_406], %700 {strides = array<i32>} : memref<8x8x128xf32, #tpu.memory_space<vmem>>, vector<1x8x128xf32>,
    %c0_407 = arith.constant 0 : index
    %c0_408 = arith.constant 0 : index
    %701 = vector.load %arg19[%c0_407, %c0_408] : memref<8x128xf32, #tpu.memory_space<vmem>>, vector<8x128xf32>
    tpu.vector_store %arg19[%c0_407, %c0_408], %696 {strides = array<i32>} : memref<8x128xf32, #tpu.memory_space<vmem>>, vector<8x128xf32>,
    %c8_i32 = arith.constant 8 : i32
    return
  }
  func.func @transform_0(%arg0: i32, %arg1: i32) -> (i32, i32, i32) {
    %c0_i32 = arith.constant 0 : i32
    %c0_i32_0 = arith.constant 0 : i32
    return %arg1, %arg0, %c0_i32 : i32, i32, i32
  }
  func.func @transform_1(%arg0: i32, %arg1: i32) -> (i32, i32) {
    %c0_i32 = arith.constant 0 : i32
    %c0_i32_0 = arith.constant 0 : i32
    %c0_i32_1 = arith.constant 0 : i32
    return %c0_i32, %c0_i32_0 : i32, i32
  }
  func.func @transform_2(%arg0: i32, %arg1: i32) -> (i32, i32) {
    %c0_i32 = arith.constant 0 : i32
    %c0_i32_0 = arith.constant 0 : i32
    %c0_i32_1 = arith.constant 0 : i32
    return %c0_i32, %c0_i32_0 : i32, i32
  }
  func.func @transform_3(%arg0: i32, %arg1: i32) -> (i32, i32) {
    %c0_i32 = arith.constant 0 : i32
    %c0_i32_0 = arith.constant 0 : i32
    %c0_i32_1 = arith.constant 0 : i32
    return %c0_i32, %c0_i32_0 : i32, i32
  }
  func.func @transform_4(%arg0: i32, %arg1: i32) -> (i32, i32) {
    %c0_i32 = arith.constant 0 : i32
    %c0_i32_0 = arith.constant 0 : i32
    %c0_i32_1 = arith.constant 0 : i32
    return %c0_i32, %c0_i32_0 : i32, i32
  }
  func.func @transform_5(%arg0: i32, %arg1: i32) -> (i32, i32) {
    %c0_i32 = arith.constant 0 : i32
    %c0_i32_0 = arith.constant 0 : i32
    %c0_i32_1 = arith.constant 0 : i32
    return %c0_i32, %c0_i32_0 : i32, i32
  }
  func.func @transform_6(%arg0: i32, %arg1: i32) -> (i32, i32) {
    %c0_i32 = arith.constant 0 : i32
    %c0_i32_0 = arith.constant 0 : i32
    %c0_i32_1 = arith.constant 0 : i32
    return %c0_i32, %c0_i32_0 : i32, i32
  }
  func.func @transform_7(%arg0: i32, %arg1: i32) -> (i32, i32) {
    %c0_i32 = arith.constant 0 : i32
    %c0_i32_0 = arith.constant 0 : i32
    %c0_i32_1 = arith.constant 0 : i32
    return %c0_i32, %c0_i32_0 : i32, i32
  }
  func.func @transform_8(%arg0: i32, %arg1: i32) -> (i32, i32) {
    %c0_i32 = arith.constant 0 : i32
    %c0_i32_0 = arith.constant 0 : i32
    %c0_i32_1 = arith.constant 0 : i32
    return %c0_i32, %c0_i32_0 : i32, i32
  }
  func.func @transform_9(%arg0: i32, %arg1: i32) -> (i32, i32) {
    %c0_i32 = arith.constant 0 : i32
    %c0_i32_0 = arith.constant 0 : i32
    %c0_i32_1 = arith.constant 0 : i32
    return %c0_i32, %c0_i32_0 : i32, i32
  }
  func.func @transform_10(%arg0: i32, %arg1: i32) -> (i32, i32) {
    %c0_i32 = arith.constant 0 : i32
    %c0_i32_0 = arith.constant 0 : i32
    %c0_i32_1 = arith.constant 0 : i32
    return %c0_i32, %c0_i32_0 : i32, i32
  }
  func.func @transform_11(%arg0: i32, %arg1: i32) -> (i32, i32) {
    %c0_i32 = arith.constant 0 : i32
    %c0_i32_0 = arith.constant 0 : i32
    %c0_i32_1 = arith.constant 0 : i32
    return %c0_i32, %c0_i32_0 : i32, i32
  }
  func.func @transform_12(%arg0: i32, %arg1: i32) -> (i32, i32) {
    %c0_i32 = arith.constant 0 : i32
    %c0_i32_0 = arith.constant 0 : i32
    return %arg0, %c0_i32 : i32, i32
  }
  func.func @transform_13(%arg0: i32, %arg1: i32) -> (i32, i32) {
    %c0_i32 = arith.constant 0 : i32
    %c0_i32_0 = arith.constant 0 : i32
    return %arg0, %c0_i32 : i32, i32
  }
  func.func @transform_14(%arg0: i32, %arg1: i32) -> (i32, i32, i32) {
    %c0_i32 = arith.constant 0 : i32
    %c0_i32_0 = arith.constant 0 : i32
    return %arg1, %arg0, %c0_i32 : i32, i32, i32
  }
  func.func @transform_15(%arg0: i32, %arg1: i32) -> (i32, i32) {
    %c0_i32 = arith.constant 0 : i32
    %c0_i32_0 = arith.constant 0 : i32
    return %arg0, %c0_i32 : i32, i32
  }
  func.func @transform_16(%arg0: i32, %arg1: i32) -> (i32, i32) {
    %c0_i32 = arith.constant 0 : i32
    %c0_i32_0 = arith.constant 0 : i32
    return %arg0, %c0_i32 : i32, i32
  }
}

</mosaic_0001>

<llo_original>
// kernel: decoder_generate.1
$region0: #{decoder_generate.1}
  #allocation0 [shape = 'u32[]', space=smem, size = 0x4, offset = 0x4, fixed_abs, tag = 'smem constant byte address 0x4 - core index']
  #allocation1 [shape = 'u32[72,128]{1,0:T(1,128)}', space=vmem, size = 0x9000, scoped, tag = 'internal scratch']
  #allocation2 [shape = 'f32[8,128]{1,0:T(8,128)}', space=vmem, size = 0x1000, scoped, tag = 'scratch operand']
  %s0 = inlined_call_operand.hbm [shape: f32[16,8,32], index: 0, kind: input, shape index: {}]
  %s1 = inlined_call_operand.vmem [shape: f32[1,32], index: 1, kind: input, shape index: {}]
  %s2 = inlined_call_operand.vmem [shape: bf16[128,32], index: 2, kind: input, shape index: {}]
  %s3 = inlined_call_operand.vmem [shape: f32[1,32], index: 3, kind: input, shape index: {}]
  %s4 = inlined_call_operand.vmem [shape: bf16[32,32], index: 4, kind: input, shape index: {}]
  %s5 = inlined_call_operand.vmem [shape: f32[1,32], index: 5, kind: input, shape index: {}]
  %s6 = inlined_call_operand.vmem [shape: bf16[32,128], index: 6, kind: input, shape index: {}]
  %s7 = inlined_call_operand.vmem [shape: bf16[32,128], index: 7, kind: input, shape index: {}]
  %s8 = inlined_call_operand.vmem [shape: bf16[32,128], index: 8, kind: input, shape index: {}]
  %s9 = inlined_call_operand.hbm [shape: f32[1,128], index: 9, kind: input, shape index: {}]
  %s10 = inlined_call_operand.vmem [shape: bf16[32,128], index: 10, kind: input, shape index: {}]
  %s11 = inlined_call_operand.hbm [shape: f32[1,128], index: 11, kind: input, shape index: {}]
  %s12 = inlined_call_operand.hbm [shape: f32[8,32], index: 12, kind: input, shape index: {}]
  %s13 = inlined_call_operand.hbm [shape: f32[8,32], index: 13, kind: input, shape index: {}]
  %s14 = inlined_call_operand.vmem [shape: f32[16,8,128], index: 14, kind: output, shape index: {0}]
  %s15 = inlined_call_operand.hbm [shape: f32[8,32], index: 15, kind: output, shape index: {1}]
  %s16 = inlined_call_operand.hbm [shape: f32[8,32], index: 16, kind: output, shape index: {2}]
  %17 = xla_tuple %s14, %s15, %s16
  %s18 = sld [smem:[#allocation0]]
  $region129: #{decoder_generate.1} parent=0
    _
  %s20 = ssub.s32 1, %s18
  %s21 = scalar_select 0, %s20, %s18
  $region1: #{decoder_generate.1} parent=0
    #allocation3 [shape = 'u8[65536]{0}', space=vmem, size = 0x10000, scoped, tag = 'input window, operand 0']
    #allocation4 [shape = 's32[2]{0}', space=sflag, size = 0x8, scoped, tag = 'scoped memory for decoder_generate.1']
    #allocation5 [shape = 's32[2]{0}', space=sflag, size = 0x8, scoped, tag = 'scoped memory for decoder_generate.1']
    #allocation6 [shape = 'u8[512]{0}', space=vmem, size = 0x400, scoped, tag = 'input window, operand 9, single buffered']
    #allocation7 [shape = 's32[1]{0}', space=sflag, size = 0x4, scoped, tag = 'scoped memory for decoder_generate.1']
    #allocation8 [shape = 'u8[512]{0}', space=vmem, size = 0x400, scoped, tag = 'input window, operand 11, single buffered']
    #allocation9 [shape = 'u8[4096]{0}', space=vmem, size = 0x1000, scoped, tag = 'input window, operand 12, single buffered']
    #allocation10 [shape = 's32[1]{0}', space=sflag, size = 0x4, scoped, tag = 'scoped memory for decoder_generate.1']
    #allocation11 [shape = 'u8[4096]{0}', space=vmem, size = 0x1000, scoped, tag = 'input window, operand 13, single buffered']
    #allocation12 [shape = 'u8[4096]{0}', space=vmem, size = 0x1000, scoped, tag = 'output window, operand 1, single buffered']
    #allocation13 [shape = 'u8[4096]{0}', space=vmem, size = 0x1000, scoped, tag = 'output window, operand 2, single buffered']
    #allocation14 [shape = 's32[1]{0}', space=sflag, size = 0x4, scoped, tag = 'scoped memory for decoder_generate.1']
    %22 = vsyncpa [#allocation4], 0
    %s23 = scalar_lea.sflag [#allocation4], 1
    %24 = vsyncpa %s23, 0
    %25 = vsyncpa [#allocation7], 0
    %26 = vsyncpa [#allocation10], 0
    %27 = vsyncpa [#allocation5], 0
    %28 = vsyncpa [#allocation14], 0
    loop: start=0, step=1, limit=4
    $region2: #{decoder_generate.1} parent=1 // loop_pre_header
      _
    $region3: #{decoder_generate.1} parent=1 // loop_header
      %s30 = sphi 0, %s34
      %p31 = scmp.ge.s32.totalorder %s30, 4
      %s37 = sphi 0, %s49
      %s38 = sphi 0, %s45
      %s39 = sphi 0, %s37
      %s40 = sphi 0, %s38
      %s41 = sphi 0, %s39
      %s42 = sphi 0, %s40
      %s54 = sphi 0, %s56
      %s57 = sphi 0, %s54
      %s58 = sphi 0, %s57
      %s74 = sphi 0, %s58
      %s78 = sphi 0, %s78
      %s80 = sphi 0, %s78
      %s81 = sphi 0, %s80
      %s95 = sphi 0, %s81
      %s99 = sphi 0, %s99
      %s101 = sphi 0, %s99
      %s102 = sphi 0, %s101
      %s116 = sphi 0, %s102
      %s120 = sphi 0, %s120
      %s122 = sphi 0, %s120
      %s123 = sphi 0, %s122
      %s137 = sphi 0, %s123
      %s141 = sphi 0, %s141
      %s143 = sphi 0, %s141
      %s144 = sphi 0, %s143
      %s158 = sphi 0, %s144
      %s162 = sphi 0, %s162
      %s164 = sphi 0, %s162
      %s165 = sphi 0, %s164
      %s179 = sphi 0, %s165
      %s183 = sphi 0, %s183
      %s185 = sphi 0, %s183
      %s186 = sphi 0, %s185
      %s200 = sphi 0, %s186
      %s204 = sphi 0, %s204
      %s206 = sphi 0, %s204
      %s207 = sphi 0, %s206
      %s221 = sphi 0, %s207
      %s225 = sphi 0, %s225
      %s227 = sphi 0, %s225
      %s228 = sphi 0, %s227
      %s242 = sphi 0, %s228
      %s246 = sphi 0, %s246
      %s248 = sphi 0, %s246
      %s249 = sphi 0, %s248
      %s263 = sphi 0, %s249
      %s267 = sphi 0, %s267
      %s269 = sphi 0, %s267
      %s270 = sphi 0, %s269
      %s284 = sphi 0, %s270
      %s288 = sphi 0, %s288
      %s290 = sphi 0, %s288
      %s291 = sphi 0, %s290
      %s305 = sphi 0, %s291
      %s311 = sphi 0, %s313
      %s314 = sphi 0, %s311
      %s315 = sphi 0, %s314
      %s331 = sphi 0, %s315
      %s337 = sphi 0, %s339
      %s340 = sphi 0, %s337
      %s341 = sphi 0, %s340
      %s357 = sphi 0, %s341
      %s365 = sphi 0, %s367
      %s368 = sphi 0, %s365
      %s369 = sphi 0, %s368
      %s385 = sphi 0, %s369
      %s391 = sphi 0, %s393
      %s394 = sphi 0, %s391
      %s395 = sphi 0, %s394
      %s411 = sphi 0, %s395
      %s417 = sphi 0, %s419
      %s420 = sphi 0, %s417
      %s421 = sphi 0, %s420
      %s437 = sphi 0, %s421
    $region4: #{decoder_generate.1} parent=1 // loop_header_branch
      %33 = sbr.rel (%p31) target = $region8
    $region5: #{decoder_generate.1} parent=1 // loop_body
      %s35 = ssub.s32 %s30, 1
      %s36 = ssub.s32 %s30, 2
      %s43 = sadd.s32 1, %s38
      %p44 = scmp.ge.s32.totalorder %s43, 2
      %s45 = scalar_select %p44, 0, %s43
      %s46 = sadd.s32 1, %s37
      %s47 = scalar_select %p44, %s46, %s37
      %p48 = scmp.ge.s32.totalorder %s47, 1
      %s49 = scalar_select %p48, 0, %s47
      %s50 = ssub.s32 %s38, %s45
      %s51 = ssub.s32 %s37, %s49
      %s52 = sor.u32 %s50, %s51
      %p53 = scmp.eq.s32.totalorder %s52, 0
      %s55 = sadd.s32 %s54, 1
      %s56 = scalar_select %p53, %s54, %s55
      %p59 = pneg %p53
      %p60 = scmp.eq.s32.totalorder %s30, 1
      %p61 = por %p59, %p60
      %p62 = scmp.ne.s32.totalorder %s54, %s57
      %p63 = scmp.eq.s32.totalorder %s30, 0
      %p64 = por %p62, %p63
      %p65 = scmp.ne.s32.totalorder %s54, %s57
      %p66 = scmp.eq.s32.totalorder %s35, 1
      %p67 = por %p65, %p66
      %p68 = scmp.ne.s32.totalorder %s57, %s58
      %p69 = scmp.eq.s32.totalorder %s35, 0
      %p70 = por %p68, %p69
      %p71 = scmp.ne.s32.totalorder %s57, %s58
      %p72 = scmp.eq.s32.totalorder %s36, 1
      %p73 = por %p71, %p72
      %p75 = scmp.ne.s32.totalorder %s58, %s74
      %p76 = scmp.eq.s32.totalorder %s36, 0
      %p77 = por %p75, %p76
      %s79 = sadd.s32 %s78, 1
      %p82 = scmp.eq.s32.totalorder %s30, 1
      %p83 = scmp.ne.s32.totalorder %s78, %s80
      %p84 = scmp.eq.s32.totalorder %s30, 0
      %p85 = por %p83, %p84
      %p86 = scmp.ne.s32.totalorder %s78, %s80
      %p87 = scmp.eq.s32.totalorder %s35, 1
      %p88 = por %p86, %p87
      %p89 = scmp.ne.s32.totalorder %s80, %s81
      %p90 = scmp.eq.s32.totalorder %s35, 0
      %p91 = por %p89, %p90
      %p92 = scmp.ne.s32.totalorder %s80, %s81
      %p93 = scmp.eq.s32.totalorder %s36, 1
      %p94 = por %p92, %p93
      %p96 = scmp.ne.s32.totalorder %s81, %s95
      %p97 = scmp.eq.s32.totalorder %s36, 0
      %p98 = por %p96, %p97
      %s100 = sadd.s32 %s99, 1
      %p103 = scmp.eq.s32.totalorder %s30, 1
      %p104 = scmp.ne.s32.totalorder %s99, %s101
      %p105 = scmp.eq.s32.totalorder %s30, 0
      %p106 = por %p104, %p105
      %p107 = scmp.ne.s32.totalorder %s99, %s101
      %p108 = scmp.eq.s32.totalorder %s35, 1
      %p109 = por %p107, %p108
      %p110 = scmp.ne.s32.totalorder %s101, %s102
      %p111 = scmp.eq.s32.totalorder %s35, 0
      %p112 = por %p110, %p111
      %p113 = scmp.ne.s32.totalorder %s101, %s102
      %p114 = scmp.eq.s32.totalorder %s36, 1
      %p115 = por %p113, %p114
      %p117 = scmp.ne.s32.totalorder %s102, %s116
      %p118 = scmp.eq.s32.totalorder %s36, 0
      %p119 = por %p117, %p118
      %s121 = sadd.s32 %s120, 1
      %p124 = scmp.eq.s32.totalorder %s30, 1
      %p125 = scmp.ne.s32.totalorder %s120, %s122
      %p126 = scmp.eq.s32.totalorder %s30, 0
      %p127 = por %p125, %p126
      %p128 = scmp.ne.s32.totalorder %s120, %s122
      %p129 = scmp.eq.s32.totalorder %s35, 1
      %p130 = por %p128, %p129
      %p131 = scmp.ne.s32.totalorder %s122, %s123
      %p132 = scmp.eq.s32.totalorder %s35, 0
      %p133 = por %p131, %p132
      %p134 = scmp.ne.s32.totalorder %s122, %s123
      %p135 = scmp.eq.s32.totalorder %s36, 1
      %p136 = por %p134, %p135
      %p138 = scmp.ne.s32.totalorder %s123, %s137
      %p139 = scmp.eq.s32.totalorder %s36, 0
      %p140 = por %p138, %p139
      %s142 = sadd.s32 %s141, 1
      %p145 = scmp.eq.s32.totalorder %s30, 1
      %p146 = scmp.ne.s32.totalorder %s141, %s143
      %p147 = scmp.eq.s32.totalorder %s30, 0
      %p148 = por %p146, %p147
      %p149 = scmp.ne.s32.totalorder %s141, %s143
      %p150 = scmp.eq.s32.totalorder %s35, 1
      %p151 = por %p149, %p150
      %p152 = scmp.ne.s32.totalorder %s143, %s144
      %p153 = scmp.eq.s32.totalorder %s35, 0
      %p154 = por %p152, %p153
      %p155 = scmp.ne.s32.totalorder %s143, %s144
      %p156 = scmp.eq.s32.totalorder %s36, 1
      %p157 = por %p155, %p156
      %p159 = scmp.ne.s32.totalorder %s144, %s158
      %p160 = scmp.eq.s32.totalorder %s36, 0
      %p161 = por %p159, %p160
      %s163 = sadd.s32 %s162, 1
      %p166 = scmp.eq.s32.totalorder %s30, 1
      %p167 = scmp.ne.s32.totalorder %s162, %s164
      %p168 = scmp.eq.s32.totalorder %s30, 0
      %p169 = por %p167, %p168
      %p170 = scmp.ne.s32.totalorder %s162, %s164
      %p171 = scmp.eq.s32.totalorder %s35, 1
      %p172 = por %p170, %p171
      %p173 = scmp.ne.s32.totalorder %s164, %s165
      %p174 = scmp.eq.s32.totalorder %s35, 0
      %p175 = por %p173, %p174
      %p176 = scmp.ne.s32.totalorder %s164, %s165
      %p177 = scmp.eq.s32.totalorder %s36, 1
      %p178 = por %p176, %p177
      %p180 = scmp.ne.s32.totalorder %s165, %s179
      %p181 = scmp.eq.s32.totalorder %s36, 0
      %p182 = por %p180, %p181
      %s184 = sadd.s32 %s183, 1
      %p187 = scmp.eq.s32.totalorder %s30, 1
      %p188 = scmp.ne.s32.totalorder %s183, %s185
      %p189 = scmp.eq.s32.totalorder %s30, 0
      %p190 = por %p188, %p189
      %p191 = scmp.ne.s32.totalorder %s183, %s185
      %p192 = scmp.eq.s32.totalorder %s35, 1
      %p193 = por %p191, %p192
      %p194 = scmp.ne.s32.totalorder %s185, %s186
      %p195 = scmp.eq.s32.totalorder %s35, 0
      %p196 = por %p194, %p195
      %p197 = scmp.ne.s32.totalorder %s185, %s186
      %p198 = scmp.eq.s32.totalorder %s36, 1
      %p199 = por %p197, %p198
      %p201 = scmp.ne.s32.totalorder %s186, %s200
      %p202 = scmp.eq.s32.totalorder %s36, 0
      %p203 = por %p201, %p202
      %s205 = sadd.s32 %s204, 1
      %p208 = scmp.eq.s32.totalorder %s30, 1
      %p209 = scmp.ne.s32.totalorder %s204, %s206
      %p210 = scmp.eq.s32.totalorder %s30, 0
      %p211 = por %p209, %p210
      %p212 = scmp.ne.s32.totalorder %s204, %s206
      %p213 = scmp.eq.s32.totalorder %s35, 1
      %p214 = por %p212, %p213
      %p215 = scmp.ne.s32.totalorder %s206, %s207
      %p216 = scmp.eq.s32.totalorder %s35, 0
      %p217 = por %p215, %p216
      %p218 = scmp.ne.s32.totalorder %s206, %s207
      %p219 = scmp.eq.s32.totalorder %s36, 1
      %p220 = por %p218, %p219
      %p222 = scmp.ne.s32.totalorder %s207, %s221
      %p223 = scmp.eq.s32.totalorder %s36, 0
      %p224 = por %p222, %p223
      %s226 = sadd.s32 %s225, 1
      %p229 = scmp.eq.s32.totalorder %s30, 1
      %p230 = scmp.ne.s32.totalorder %s225, %s227
      %p231 = scmp.eq.s32.totalorder %s30, 0
      %p232 = por %p230, %p231
      %p233 = scmp.ne.s32.totalorder %s225, %s227
      %p234 = scmp.eq.s32.totalorder %s35, 1
      %p235 = por %p233, %p234
      %p236 = scmp.ne.s32.totalorder %s227, %s228
      %p237 = scmp.eq.s32.totalorder %s35, 0
      %p238 = por %p236, %p237
      %p239 = scmp.ne.s32.totalorder %s227, %s228
      %p240 = scmp.eq.s32.totalorder %s36, 1
      %p241 = por %p239, %p240
      %p243 = scmp.ne.s32.totalorder %s228, %s242
      %p244 = scmp.eq.s32.totalorder %s36, 0
      %p245 = por %p243, %p244
      %s247 = sadd.s32 %s246, 1
      %p250 = scmp.eq.s32.totalorder %s30, 1
      %p251 = scmp.ne.s32.totalorder %s246, %s248
      %p252 = scmp.eq.s32.totalorder %s30, 0
      %p253 = por %p251, %p252
      %p254 = scmp.ne.s32.totalorder %s246, %s248
      %p255 = scmp.eq.s32.totalorder %s35, 1
      %p256 = por %p254, %p255
      %p257 = scmp.ne.s32.totalorder %s248, %s249
      %p258 = scmp.eq.s32.totalorder %s35, 0
      %p259 = por %p257, %p258
      %p260 = scmp.ne.s32.totalorder %s248, %s249
      %p261 = scmp.eq.s32.totalorder %s36, 1
      %p262 = por %p260, %p261
      %p264 = scmp.ne.s32.totalorder %s249, %s263
      %p265 = scmp.eq.s32.totalorder %s36, 0
      %p266 = por %p264, %p265
      %s268 = sadd.s32 %s267, 1
      %p271 = scmp.eq.s32.totalorder %s30, 1
      %p272 = scmp.ne.s32.totalorder %s267, %s269
      %p273 = scmp.eq.s32.totalorder %s30, 0
      %p274 = por %p272, %p273
      %p275 = scmp.ne.s32.totalorder %s267, %s269
      %p276 = scmp.eq.s32.totalorder %s35, 1
      %p277 = por %p275, %p276
      %p278 = scmp.ne.s32.totalorder %s269, %s270
      %p279 = scmp.eq.s32.totalorder %s35, 0
      %p280 = por %p278, %p279
      %p281 = scmp.ne.s32.totalorder %s269, %s270
      %p282 = scmp.eq.s32.totalorder %s36, 1
      %p283 = por %p281, %p282
      %p285 = scmp.ne.s32.totalorder %s270, %s284
      %p286 = scmp.eq.s32.totalorder %s36, 0
      %p287 = por %p285, %p286
      %s289 = sadd.s32 %s288, 1
      %p292 = scmp.eq.s32.totalorder %s30, 1
      %p293 = scmp.ne.s32.totalorder %s288, %s290
      %p294 = scmp.eq.s32.totalorder %s30, 0
      %p295 = por %p293, %p294
      %p296 = scmp.ne.s32.totalorder %s288, %s290
      %p297 = scmp.eq.s32.totalorder %s35, 1
      %p298 = por %p296, %p297
      %p299 = scmp.ne.s32.totalorder %s290, %s291
      %p300 = scmp.eq.s32.totalorder %s35, 0
      %p301 = por %p299, %p300
      %p302 = scmp.ne.s32.totalorder %s290, %s291
      %p303 = scmp.eq.s32.totalorder %s36, 1
      %p304 = por %p302, %p303
      %p306 = scmp.ne.s32.totalorder %s291, %s305
      %p307 = scmp.eq.s32.totalorder %s36, 0
      %p308 = por %p306, %p307
      %s309 = ssub.s32 %s37, %s49
      %p310 = scmp.eq.s32.totalorder %s309, 0
      %s312 = sadd.s32 %s311, 1
      %s313 = scalar_select %p310, %s311, %s312
      %p316 = pneg %p310
      %p317 = scmp.eq.s32.totalorder %s30, 1
      %p318 = por %p316, %p317
      %p319 = scmp.ne.s32.totalorder %s311, %s314
      %p320 = scmp.eq.s32.totalorder %s30, 0
      %p321 = por %p319, %p320
      %p322 = scmp.ne.s32.totalorder %s311, %s314
      %p323 = scmp.eq.s32.totalorder %s35, 1
      %p324 = por %p322, %p323
      %p325 = scmp.ne.s32.totalorder %s314, %s315
      %p326 = scmp.eq.s32.totalorder %s35, 0
      %p327 = por %p325, %p326
      %p328 = scmp.ne.s32.totalorder %s314, %s315
      %p329 = scmp.eq.s32.totalorder %s36, 1
      %p330 = por %p328, %p329
      %p332 = scmp.ne.s32.totalorder %s315, %s331
      %p333 = scmp.eq.s32.totalorder %s36, 0
      %p334 = por %p332, %p333
      %s335 = ssub.s32 %s37, %s49
      %p336 = scmp.eq.s32.totalorder %s335, 0
      %s338 = sadd.s32 %s337, 1
      %s339 = scalar_select %p336, %s337, %s338
      %p342 = pneg %p336
      %p343 = scmp.eq.s32.totalorder %s30, 1
      %p344 = por %p342, %p343
      %p345 = scmp.ne.s32.totalorder %s337, %s340
      %p346 = scmp.eq.s32.totalorder %s30, 0
      %p347 = por %p345, %p346
      %p348 = scmp.ne.s32.totalorder %s337, %s340
      %p349 = scmp.eq.s32.totalorder %s35, 1
      %p350 = por %p348, %p349
      %p351 = scmp.ne.s32.totalorder %s340, %s341
      %p352 = scmp.eq.s32.totalorder %s35, 0
      %p353 = por %p351, %p352
      %p354 = scmp.ne.s32.totalorder %s340, %s341
      %p355 = scmp.eq.s32.totalorder %s36, 1
      %p356 = por %p354, %p355
      %p358 = scmp.ne.s32.totalorder %s341, %s357
      %p359 = scmp.eq.s32.totalorder %s36, 0
      %p360 = por %p358, %p359
      %s361 = ssub.s32 %s38, %s45
      %s362 = ssub.s32 %s37, %s49
      %s363 = sor.u32 %s361, %s362
      %p364 = scmp.eq.s32.totalorder %s363, 0
      %s366 = sadd.s32 %s365, 1
      %s367 = scalar_select %p364, %s365, %s366
      %p370 = pneg %p364
      %p371 = scmp.eq.s32.totalorder %s30, 1
      %p372 = por %p370, %p371
      %p373 = scmp.ne.s32.totalorder %s365, %s368
      %p374 = scmp.eq.s32.totalorder %s30, 0
      %p375 = por %p373, %p374
      %p376 = scmp.ne.s32.totalorder %s365, %s368
      %p377 = scmp.eq.s32.totalorder %s35, 1
      %p378 = por %p376, %p377
      %p379 = scmp.ne.s32.totalorder %s368, %s369
      %p380 = scmp.eq.s32.totalorder %s35, 0
      %p381 = por %p379, %p380
      %p382 = scmp.ne.s32.totalorder %s368, %s369
      %p383 = scmp.eq.s32.totalorder %s36, 1
      %p384 = por %p382, %p383
      %p386 = scmp.ne.s32.totalorder %s369, %s385
      %p387 = scmp.eq.s32.totalorder %s36, 0
      %p388 = por %p386, %p387
      %s389 = ssub.s32 %s37, %s49
      %p390 = scmp.eq.s32.totalorder %s389, 0
      %s392 = sadd.s32 %s391, 1
      %s393 = scalar_select %p390, %s391, %s392
      %p396 = pneg %p390
      %p397 = scmp.eq.s32.totalorder %s30, 1
      %p398 = por %p396, %p397
      %p399 = scmp.ne.s32.totalorder %s391, %s394
      %p400 = scmp.eq.s32.totalorder %s30, 0
      %p401 = por %p399, %p400
      %p402 = scmp.ne.s32.totalorder %s391, %s394
      %p403 = scmp.eq.s32.totalorder %s35, 1
      %p404 = por %p402, %p403
      %p405 = scmp.ne.s32.totalorder %s394, %s395
      %p406 = scmp.eq.s32.totalorder %s35, 0
      %p407 = por %p405, %p406
      %p408 = scmp.ne.s32.totalorder %s394, %s395
      %p409 = scmp.eq.s32.totalorder %s36, 1
      %p410 = por %p408, %p409
      %p412 = scmp.ne.s32.totalorder %s395, %s411
      %p413 = scmp.eq.s32.totalorder %s36, 0
      %p414 = por %p412, %p413
      %s415 = ssub.s32 %s37, %s49
      %p416 = scmp.eq.s32.totalorder %s415, 0
      %s418 = sadd.s32 %s417, 1
      %s419 = scalar_select %p416, %s417, %s418
      %p422 = pneg %p416
      %p423 = scmp.eq.s32.totalorder %s30, 1
      %p424 = por %p422, %p423
      %p425 = scmp.ne.s32.totalorder %s417, %s420
      %p426 = scmp.eq.s32.totalorder %s30, 0
      %p427 = por %p425, %p426
      %p428 = scmp.ne.s32.totalorder %s417, %s420
      %p429 = scmp.eq.s32.totalorder %s35, 1
      %p430 = por %p428, %p429
      %p431 = scmp.ne.s32.totalorder %s420, %s421
      %p432 = scmp.eq.s32.totalorder %s35, 0
      %p433 = por %p431, %p432
      %p434 = scmp.ne.s32.totalorder %s420, %s421
      %p435 = scmp.eq.s32.totalorder %s36, 1
      %p436 = por %p434, %p435
      %p438 = scmp.ne.s32.totalorder %s421, %s437
      %p439 = scmp.eq.s32.totalorder %s36, 0
      %p440 = por %p438, %p439
      %p441 = scmp.le.s32.totalorder 1, %s30
      %p442 = scmp.lt.s32.totalorder %s30, 3
      %p443 = pnand %p441, %p442
      %p444 = pneg %p443
      // Predicated region
      $region9: #{decoder_generate.1} parent=5 // pred_check
        _
      $region10: #{decoder_generate.1} parent=5 // pred_check_branch
        %446 = sbr.rel (%p443) target = $region12
      $region11: #{decoder_generate.1} parent=5 // pred_region
        %s447 = ssub.s32 %s30, 1
        // Predicated region
        $region13: #{decoder_generate.1} parent=11 // pred_check
          %p448 = pneg %p91
        $region14: #{decoder_generate.1} parent=11 // pred_check_branch
          %450 = sbr.rel (%p448) target = $region16
        $region15: #{decoder_generate.1} parent=11 // pred_region
          _
        $region16: #{decoder_generate.1} parent=11 // pred_fallthru
          _
        // Predicated region
        $region17: #{decoder_generate.1} parent=11 // pred_check
          %p451 = pneg %p112
        $region18: #{decoder_generate.1} parent=11 // pred_check_branch
          %453 = sbr.rel (%p451) target = $region20
        $region19: #{decoder_generate.1} parent=11 // pred_region
          _
        $region20: #{decoder_generate.1} parent=11 // pred_fallthru
          _
        // Predicated region
        $region21: #{decoder_generate.1} parent=11 // pred_check
          %p454 = pneg %p133
        $region22: #{decoder_generate.1} parent=11 // pred_check_branch
          %456 = sbr.rel (%p454) target = $region24
        $region23: #{decoder_generate.1} parent=11 // pred_region
          _
        $region24: #{decoder_generate.1} parent=11 // pred_fallthru
          _
        // Predicated region
        $region25: #{decoder_generate.1} parent=11 // pred_check
          %p457 = pneg %p154
        $region26: #{decoder_generate.1} parent=11 // pred_check_branch
          %459 = sbr.rel (%p457) target = $region28
        $region27: #{decoder_generate.1} parent=11 // pred_region
          _
        $region28: #{decoder_generate.1} parent=11 // pred_fallthru
          _
        // Predicated region
        $region29: #{decoder_generate.1} parent=11 // pred_check
          %p460 = pneg %p175
        $region30: #{decoder_generate.1} parent=11 // pred_check_branch
          %462 = sbr.rel (%p460) target = $region32
        $region31: #{decoder_generate.1} parent=11 // pred_region
          _
        $region32: #{decoder_generate.1} parent=11 // pred_fallthru
          _
        // Predicated region
        $region33: #{decoder_generate.1} parent=11 // pred_check
          %p463 = pneg %p196
        $region34: #{decoder_generate.1} parent=11 // pred_check_branch
          %465 = sbr.rel (%p463) target = $region36
        $region35: #{decoder_generate.1} parent=11 // pred_region
          _
        $region36: #{decoder_generate.1} parent=11 // pred_fallthru
          _
        // Predicated region
        $region37: #{decoder_generate.1} parent=11 // pred_check
          %p466 = pneg %p217
        $region38: #{decoder_generate.1} parent=11 // pred_check_branch
          %468 = sbr.rel (%p466) target = $region40
        $region39: #{decoder_generate.1} parent=11 // pred_region
          _
        $region40: #{decoder_generate.1} parent=11 // pred_fallthru
          _
        // Predicated region
        $region41: #{decoder_generate.1} parent=11 // pred_check
          %p469 = pneg %p238
        $region42: #{decoder_generate.1} parent=11 // pred_check_branch
          %471 = sbr.rel (%p469) target = $region44
        $region43: #{decoder_generate.1} parent=11 // pred_region
          _
        $region44: #{decoder_generate.1} parent=11 // pred_fallthru
          _
        // Predicated region
        $region45: #{decoder_generate.1} parent=11 // pred_check
          %p472 = pneg %p259
        $region46: #{decoder_generate.1} parent=11 // pred_check_branch
          %474 = sbr.rel (%p472) target = $region48
        $region47: #{decoder_generate.1} parent=11 // pred_region
          %476 = vsyncadd [#allocation7], 0
          %s478 = sshll.u32 %s9, 4
          %s479 = int_to_ptr.hbm [resolvable:$true] %s478
          %s480 = sshll.u32 [#allocation6], 4
          %s481 = int_to_ptr.vmem [resolvable:$true] %s480
          %483 = dma.hbm_to_vmem [thread:$0]  %s479, 16, %s481, [#allocation7]
        $region48: #{decoder_generate.1} parent=11 // pred_fallthru
          _
        // Predicated region
        $region49: #{decoder_generate.1} parent=11 // pred_check
          %p484 = pneg %p280
        $region50: #{decoder_generate.1} parent=11 // pred_check_branch
          %486 = sbr.rel (%p484) target = $region52
        $region51: #{decoder_generate.1} parent=11 // pred_region
          _
        $region52: #{decoder_generate.1} parent=11 // pred_fallthru
          _
        // Predicated region
        $region53: #{decoder_generate.1} parent=11 // pred_check
          %p487 = pneg %p301
        $region54: #{decoder_generate.1} parent=11 // pred_check_branch
          %489 = sbr.rel (%p487) target = $region56
        $region55: #{decoder_generate.1} parent=11 // pred_region
          %491 = vsyncadd [#allocation7], 0
          %s493 = sshll.u32 %s11, 4
          %s494 = int_to_ptr.hbm [resolvable:$true] %s493
          %s495 = sshll.u32 [#allocation8], 4
          %s496 = int_to_ptr.vmem [resolvable:$true] %s495
          %498 = dma.hbm_to_vmem [thread:$0]  %s494, 16, %s496, [#allocation7]
        $region56: #{decoder_generate.1} parent=11 // pred_fallthru
          _
        // Predicated region
        $region57: #{decoder_generate.1} parent=11 // pred_check
          %p499 = pneg %p327
        $region58: #{decoder_generate.1} parent=11 // pred_check_branch
          %501 = sbr.rel (%p499) target = $region60
        $region59: #{decoder_generate.1} parent=11 // pred_region
          %503 = vsyncadd [#allocation10], 0
          %s504 = smul.addr %s39, 8
          %s505 = scalar_lea.hbm %s12, %s504
          %s507 = sshll.u32 %s505, 4
          %s508 = int_to_ptr.hbm [resolvable:$true] %s507
          %s509 = sshll.u32 [#allocation9], 4
          %s510 = int_to_ptr.vmem [resolvable:$true] %s509
          %512 = dma.hbm_to_vmem [thread:$0]  %s508, 128, %s510, [#allocation10]
        $region60: #{decoder_generate.1} parent=11 // pred_fallthru
          _
        // Predicated region
        $region61: #{decoder_generate.1} parent=11 // pred_check
          %p513 = pneg %p353
        $region62: #{decoder_generate.1} parent=11 // pred_check_branch
          %515 = sbr.rel (%p513) target = $region64
        $region63: #{decoder_generate.1} parent=11 // pred_region
          %517 = vsyncadd [#allocation10], 0
          %s518 = smul.addr %s39, 8
          %s519 = scalar_lea.hbm %s13, %s518
          %s521 = sshll.u32 %s519, 4
          %s522 = int_to_ptr.hbm [resolvable:$true] %s521
          %s523 = sshll.u32 [#allocation11], 4
          %s524 = int_to_ptr.vmem [resolvable:$true] %s523
          %526 = dma.hbm_to_vmem [thread:$0]  %s522, 128, %s524, [#allocation10]
        $region64: #{decoder_generate.1} parent=11 // pred_fallthru
          _
      $region12: #{decoder_generate.1} parent=5 // pred_fallthru
        _
      %p527 = scmp.lt.s32.totalorder %s30, 2
      // Predicated region
      $region65: #{decoder_generate.1} parent=5 // pred_check
        %p528 = pneg %p527
      $region66: #{decoder_generate.1} parent=5 // pred_check_branch
        %530 = sbr.rel (%p528) target = $region68
      $region67: #{decoder_generate.1} parent=5 // pred_region
        // Predicated region
        $region69: #{decoder_generate.1} parent=67 // pred_check
          %p531 = pneg %p64
        $region70: #{decoder_generate.1} parent=67 // pred_check_branch
          %533 = sbr.rel (%p531) target = $region72
        $region71: #{decoder_generate.1} parent=67 // pred_region
          %s534 = sand.u32 %s54, 1
          %s535 = scalar_lea.sflag [#allocation4], %s534
          %s536 = sand.u32 %s54, 1
          %s537 = smul.addr %s536, 64
          %s538 = scalar_lea.vmem [#allocation3], %s537
          %s539 = smul.u32 8, %s38
          %541 = vsyncadd %s535, 0
          %s542 = sadd.s32 %s37, %s539
          %s543 = smul.addr %s542, 8
          %s544 = scalar_lea.hbm %s0, %s543
          %s545 = sshll.u32 %s544, 4
          %s546 = int_to_ptr.hbm [resolvable:$true] %s545
          %s547 = sshll.u32 %s538, 4
          %s548 = int_to_ptr.vmem [resolvable:$true] %s547
          %553 = dma.hbm_to_vmem [thread:$0]  %s546, 1024, %s548, %s535, 128, 128, 8
        $region72: #{decoder_generate.1} parent=67 // pred_fallthru
          _
      $region68: #{decoder_generate.1} parent=5 // pred_fallthru
        _
      %p554 = scmp.le.s32.totalorder 1, %s30
      %p555 = scmp.lt.s32.totalorder %s30, 3
      %p556 = pnand %p554, %p555
      %p557 = pneg %p556
      // Predicated region
      $region73: #{decoder_generate.1} parent=5 // pred_check
        _
      $region74: #{decoder_generate.1} parent=5 // pred_check_branch
        %559 = sbr.rel (%p556) target = $region76
      $region75: #{decoder_generate.1} parent=5 // pred_region
        %s560 = ssub.s32 %s30, 1
        %s561 = sand.u32 %s57, 1
        %s562 = scalar_lea.sflag [#allocation4], %s561
        %s563 = sand.u32 %s57, 1
        %s564 = smul.addr %s563, 64
        %s565 = scalar_lea.vmem [#allocation3], %s564
        // Predicated region
        $region77: #{decoder_generate.1} parent=75 // pred_check
          %p566 = pneg %p70
        $region78: #{decoder_generate.1} parent=75 // pred_check_branch
          %568 = sbr.rel (%p566) target = $region80
        $region79: #{decoder_generate.1} parent=75 // pred_region
          %570 = dma.done %s562, 1024
        $region80: #{decoder_generate.1} parent=75 // pred_fallthru
          _
        // Predicated region
        $region81: #{decoder_generate.1} parent=75 // pred_check
          %p571 = pneg %p259
        $region82: #{decoder_generate.1} parent=75 // pred_check_branch
          %573 = sbr.rel (%p571) target = $region84
        $region83: #{decoder_generate.1} parent=75 // pred_region
          %575 = dma.done [#allocation7], 16
        $region84: #{decoder_generate.1} parent=75 // pred_fallthru
          _
        // Predicated region
        $region85: #{decoder_generate.1} parent=75 // pred_check
          %p576 = pneg %p301
        $region86: #{decoder_generate.1} parent=75 // pred_check_branch
          %578 = sbr.rel (%p576) target = $region88
        $region87: #{decoder_generate.1} parent=75 // pred_region
          %580 = dma.done [#allocation7], 16
        $region88: #{decoder_generate.1} parent=75 // pred_fallthru
          _
        // Predicated region
        $region89: #{decoder_generate.1} parent=75 // pred_check
          %p581 = pneg %p327
        $region90: #{decoder_generate.1} parent=75 // pred_check_branch
          %583 = sbr.rel (%p581) target = $region92
        $region91: #{decoder_generate.1} parent=75 // pred_region
          %585 = dma.done [#allocation10], 128
        $region92: #{decoder_generate.1} parent=75 // pred_fallthru
          _
        // Predicated region
        $region93: #{decoder_generate.1} parent=75 // pred_check
          %p586 = pneg %p353
        $region94: #{decoder_generate.1} parent=75 // pred_check_branch
          %588 = sbr.rel (%p586) target = $region96
        $region95: #{decoder_generate.1} parent=75 // pred_region
          %590 = dma.done [#allocation10], 128
        $region96: #{decoder_generate.1} parent=75 // pred_fallthru
          _
        %s591 = sand.u32 %s57, 1
        %s592 = scalar_lea.sflag [#allocation4], %s591
        %s593 = sand.u32 %s57, 1
        %s594 = smul.addr %s593, 64
        %s595 = scalar_lea.vmem [#allocation3], %s594
        %p596 = pneg %p70
        %p597 = pneg %p67
        %p598 = pneg %p91
        %p599 = pneg %p88
        %p600 = pneg %p112
        %p601 = pneg %p109
        %p602 = pneg %p133
        %p603 = pneg %p130
        %p604 = pneg %p154
        %p605 = pneg %p151
        %p606 = pneg %p175
        %p607 = pneg %p172
        %p608 = pneg %p196
        %p609 = pneg %p193
        %p610 = pneg %p217
        %p611 = pneg %p214
        %p612 = pneg %p238
        %p613 = pneg %p235
        %p614 = pneg %p259
        %p615 = pneg %p256
        %p616 = pneg %p280
        %p617 = pneg %p277
        %p618 = pneg %p301
        %p619 = pneg %p298
        %p620 = pneg %p327
        %p621 = pneg %p324
        %p622 = pneg %p353
        %p623 = pneg %p350
        %p624 = pneg %p381
        %p625 = pneg %p378
        %s626 = smul.u32 8, %s40
        %p627 = scmp.lt.s32.totalorder %s626, 15
        %s628 = scalar_select %p627, %s626, 15
        %p629 = scmp.lt.s32.totalorder %s39, 0
        %s630 = scalar_select %p629, %s39, 0
        %s631 = sadd.s32 %s630, %s628
        %s632 = smul.addr %s631, 8
        %s633 = scalar_lea.vmem %s14, %s632
        %p634 = pneg %p407
        %p635 = pneg %p404
        %p636 = pneg %p433
        %p637 = pneg %p430
        %s638 = smul.u32 8, %s40
        %s639 = smul.u32 8, %s40
        %p640 = scmp.lt.s32.totalorder %s639, 15
        %s641 = scalar_select %p640, %s639, 15
        %p642 = scmp.lt.s32.totalorder %s39, 0
        %s643 = scalar_select %p642, %s39, 0
        %s644 = sadd.s32 %s643, %s641
        %s645 = smul.addr %s644, 8
        %s646 = scalar_lea.vmem %s14, %s645
        %s647 = smul.u32 8, %s40
        %p649 = scmp.eq.s32.totalorder %s40, 0
        // Predicated region
        $region97: #{decoder_generate.1} parent=75 // pred_check
          %p650 = pneg %p649
        $region98: #{decoder_generate.1} parent=75 // pred_check_branch
          %652 = sbr.rel (%p650) target = $region100
        $region99: #{decoder_generate.1} parent=75 // pred_region
          %v653 = vld [vmem:[#allocation9] sm:$0xff]
          %vm654 = vcmask 261120
          %655 = vst.msk [vmem:[#allocation12] sm:$0xff] %vm654, %v653
          %v656 = vld [vmem:[#allocation11] sm:$0xff]
          %657 = vst.msk [vmem:[#allocation13] sm:$0xff] %vm654, %v656
          %658 = vst [vmem:[#allocation2] sm:$0xff] 0.0
        $region100: #{decoder_generate.1} parent=75 // pred_fallthru
          _
        %v659 = vld [vmem:[%s1] sm:$0x1]
        %v661 = vperm.slane %v659, 0
        %v663 = vld [vmem:[#allocation2] sm:$0xff]
        %v664 = vpack.c.bf16 %v663, %v663
        %v665 = vld [vmem:[%s2] sm:$0xf]
        %v666 = vld [vmem:[%s2 + $0x4] sm:$0xf]
        %v667 = vld [vmem:[%s2 + $0x8] sm:$0xf]
        %v668 = vld [vmem:[%s2 + $0xc] sm:$0xf]
        %v669 = vld [vmem:[%s2 + $0x10] sm:$0xf]
        %v670 = vld [vmem:[%s2 + $0x14] sm:$0xf]
        %v671 = vld [vmem:[%s2 + $0x18] sm:$0xf]
        %v672 = vld [vmem:[%s2 + $0x1c] sm:$0xf]
        %v673 = vld [vmem:[%s2 + $0x20] sm:$0xf]
        %v674 = vld [vmem:[%s2 + $0x24] sm:$0xf]
        %v675 = vld [vmem:[%s2 + $0x28] sm:$0xf]
        %v676 = vld [vmem:[%s2 + $0x2c] sm:$0xf]
        %v677 = vld [vmem:[%s2 + $0x30] sm:$0xf]
        %v678 = vld [vmem:[%s2 + $0x34] sm:$0xf]
        %v679 = vld [vmem:[%s2 + $0x38] sm:$0xf]
        %v680 = vld [vmem:[%s2 + $0x3c] sm:$0xf]
        %v681 = vld [vmem:[%s3] sm:$0x1]
        %v683 = vperm.slane %v681, 0
        %v701 = vunpack.c.l.b16 %v665
        %v702 = vunpack.c.l.b16 %v666
        %v703 = vunpack.c.l.b16 %v667
        %v704 = vunpack.c.l.b16 %v668
        %v705 = vunpack.c.l.b16 %v669
        %v706 = vunpack.c.l.b16 %v670
        %v707 = vunpack.c.l.b16 %v671
        %v708 = vunpack.c.l.b16 %v672
        %v709 = vunpack.c.l.b16 %v673
        %v710 = vunpack.c.l.b16 %v674
        %v711 = vunpack.c.l.b16 %v675
        %v712 = vunpack.c.l.b16 %v676
        %v713 = vunpack.c.l.b16 %v677
        %v714 = vunpack.c.l.b16 %v678
        %v715 = vunpack.c.l.b16 %v679
        %v716 = vunpack.c.l.b16 %v680
        %v717 = vpack.c.b16 %v702, %v701
        %v718 = vpack.c.b16 %v704, %v703
        %v719 = vpack.c.b16 %v706, %v705
        %v720 = vpack.c.b16 %v708, %v707
        %v721 = vpack.c.b16 %v710, %v709
        %v722 = vpack.c.b16 %v712, %v711
        %v723 = vpack.c.b16 %v714, %v713
        %v724 = vpack.c.b16 %v716, %v715
        %733 = vmatpush.bf16.msra.mxu0 %v724
        %734 = vmatpush.bf16.msra.mxu0 %v723
        %735 = vmatpush.bf16.msra.mxu0 %v722
        %736 = vmatpush.bf16.msra.mxu0 %v721
        %737 = vmatpush.bf16.msra.mxu0 %v720
        %738 = vmatpush.bf16.msra.mxu0 %v719
        %739 = vmatpush.bf16.msra.mxu0 %v718
        %740 = vmatpush.bf16.msra.mxu0 %v717
        %741 = vmatmul.bf16.gmra.mxu0 %v664
        %v742 = vpop.f32.mrf.mxu0
        %v743 = vadd.f32 %v683, %v742
        %v744 = vpop.f32.mrf.mxu0
        %745 = vdwg.mxu0
        %v746 = vmax.f32 %v743, 0.0
        %v747 = vpack.c.bf16 %v746, %v746
        %v748 = vld [vmem:[%s4] sm:$0xf]
        %v749 = vld [vmem:[%s4 + $0x4] sm:$0xf]
        %v750 = vld [vmem:[%s4 + $0x8] sm:$0xf]
        %v751 = vld [vmem:[%s4 + $0xc] sm:$0xf]
        %v752 = vld [vmem:[%s5] sm:$0x1]
        %v754 = vperm.slane %v752, 0
        %v760 = vunpack.c.l.b16 %v748
        %v761 = vunpack.c.l.b16 %v749
        %v762 = vunpack.c.l.b16 %v750
        %v763 = vunpack.c.l.b16 %v751
        %v764 = vpack.c.b16 %v761, %v760
        %v765 = vpack.c.b16 %v763, %v762
        %vm768 = vcmask 261120
        %v770 = vsel %vm768, %v747, 0
        %772 = vmatpush.bf16.msra.mxu0 0
        %773 = vmatpush.bf16.msra.mxu0 0
        %774 = vmatpush.bf16.msra.mxu0 0
        %775 = vmatpush.bf16.msra.mxu0 0
        %776 = vmatpush.bf16.msra.mxu0 0
        %777 = vmatpush.bf16.msra.mxu0 0
        %778 = vmatpush.bf16.msra.mxu0 %v765
        %779 = vmatpush.bf16.msra.mxu0 %v764
        %780 = vmatmul.bf16.gmra.mxu0 %v770
        %v781 = vpop.f32.mrf.mxu0
        %v782 = vadd.f32 %v754, %v781
        %v783 = vpop.f32.mrf.mxu0
        %784 = vdwg.mxu0
        %v785 = vmax.f32 %v782, 0.0
        %s786 = scalar_select %p649, 1, 0
        %v787 = vstv %s786
        %vm788 = vcmp.eq.s32.totalorder %v787, 1
        %v789 = vsel %vm788, %v661, %v785
        %v790 = vld [vmem:[%s565] sm:$0xff]
        %v791 = vpack.c.bf16 %v789, %v789
        %v792 = vld [vmem:[%s6] sm:$0xf]
        %v793 = vld [vmem:[%s6 + $0x4] sm:$0xf]
        %v794 = vld [vmem:[%s6 + $0x8] sm:$0xf]
        %v795 = vld [vmem:[%s6 + $0xc] sm:$0xf]
        %v796 = vpack.c.bf16 %v790, %v790
        %v797 = vld [vmem:[%s7] sm:$0xf]
        %v798 = vld [vmem:[%s7 + $0x4] sm:$0xf]
        %v799 = vld [vmem:[%s7 + $0x8] sm:$0xf]
        %v800 = vld [vmem:[%s7 + $0xc] sm:$0xf]
        %v805 = vunpack.c.l.b16 %v797
        %v806 = vunpack.c.l.b16 %v798
        %v807 = vunpack.c.l.b16 %v799
        %v808 = vunpack.c.l.b16 %v800
        %v809 = vpack.c.b16 %v806, %v805
        %v810 = vpack.c.b16 %v808, %v807
        %v814 = vsel %vm768, %v796, 0
        %816 = vmatpush.bf16.msra.mxu0 0
        %817 = vmatpush.bf16.msra.mxu0 0
        %818 = vmatpush.bf16.msra.mxu0 0
        %819 = vmatpush.bf16.msra.mxu0 0
        %820 = vmatpush.bf16.msra.mxu0 0
        %821 = vmatpush.bf16.msra.mxu0 0
        %822 = vmatpush.bf16.msra.mxu0 %v810
        %823 = vmatpush.bf16.msra.mxu0 %v809
        %824 = vmatmul.bf16.gmra.mxu0 %v814
        %v825 = vpop.f32.mrf.mxu0
        %v826 = vadd.f32 0.0, %v825
        %v827 = vpop.f32.mrf.mxu0
        %828 = vdwg.mxu0
        %v833 = vunpack.c.l.b16 %v792
        %v834 = vunpack.c.l.b16 %v793
        %v835 = vunpack.c.l.b16 %v794
        %v836 = vunpack.c.l.b16 %v795
        %v837 = vpack.c.b16 %v834, %v833
        %v838 = vpack.c.b16 %v836, %v835
        %v842 = vsel %vm768, %v791, 0
        %844 = vmatpush.bf16.msra.mxu0 0
        %845 = vmatpush.bf16.msra.mxu0 0
        %846 = vmatpush.bf16.msra.mxu0 0
        %847 = vmatpush.bf16.msra.mxu0 0
        %848 = vmatpush.bf16.msra.mxu0 0
        %849 = vmatpush.bf16.msra.mxu0 0
        %850 = vmatpush.bf16.msra.mxu0 %v838
        %851 = vmatpush.bf16.msra.mxu0 %v837
        %852 = vmatmul.bf16.gmra.mxu0 %v842
        %v853 = vpop.f32.mrf.mxu0
        %v854 = vadd.f32 %v826, %v853
        %v855 = vpop.f32.mrf.mxu0
        %856 = vdwg.mxu0
        %v857 = vld [vmem:[#allocation12] sm:$0xff]
        %v858 = vpack.c.bf16 %v857, %v857
        %v859 = vld [vmem:[%s8] sm:$0xf]
        %v860 = vld [vmem:[%s8 + $0x4] sm:$0xf]
        %v861 = vld [vmem:[%s8 + $0x8] sm:$0xf]
        %v862 = vld [vmem:[%s8 + $0xc] sm:$0xf]
        %v867 = vunpack.c.l.b16 %v859
        %v868 = vunpack.c.l.b16 %v860
        %v869 = vunpack.c.l.b16 %v861
        %v870 = vunpack.c.l.b16 %v862
        %v871 = vpack.c.b16 %v868, %v867
        %v872 = vpack.c.b16 %v870, %v869
        %v876 = vsel %vm768, %v858, 0
        %878 = vmatpush.bf16.msra.mxu0 0
        %879 = vmatpush.bf16.msra.mxu0 0
        %880 = vmatpush.bf16.msra.mxu0 0
        %881 = vmatpush.bf16.msra.mxu0 0
        %882 = vmatpush.bf16.msra.mxu0 0
        %883 = vmatpush.bf16.msra.mxu0 0
        %884 = vmatpush.bf16.msra.mxu0 %v872
        %885 = vmatpush.bf16.msra.mxu0 %v871
        %886 = vmatmul.bf16.gmra.mxu0 %v876
        %v887 = vpop.f32.mrf.mxu0
        %v888 = vadd.f32 0.0, %v887
        %v889 = vpop.f32.mrf.mxu0
        %890 = vdwg.mxu0
        %v891 = vadd.f32 %v854, %v888
        %v892 = vld [vmem:[#allocation6] sm:$0x1]
        %v894 = vperm.slane %v892, 0
        %v896 = vadd.f32 %v891, %v894
        %v897 = vxor.u32 %v896, 2147483648
        %v898 = vmul.f32 %v897, 1.442695
        %v899 = vpow.pop %v898
        %v900 = vadd.f32 %v899, 1.0
        %v901 = vrcp.pop %v900
        %v902 = vmul.f32 %v900, %v901
        %v903 = vsub.f32 1.0, %v902
        %v904 = vmul.f32 %v901, %v903
        %v905 = vadd.f32 %v901, %v904
        %vm906 = vweird.f32 %v900
        %vm907 = vweird.f32 %v901
        %vm908 = vmor %vm906, %vm907
        %v909 = vsel %vm908, %v901, %v905
        %v910 = vand.u32 2147483647, %v900
        %vm911 = vcmp.eq.f32.partialorder %v910, 8.507059e+37
        %v912 = vand.u32 %v900, 2147483648
        %v913 = vor.u32 1.1754944e-38, %v912
        %v914 = vsel %vm911, %v913, %v909
        %v915 = vmul.f32 1.0, %v914
        %v916 = vtanh.pop %v896
        %v917 = vld [vmem:[#allocation13] sm:$0xff]
        %919 = vrot.lane.b32.xlu0 %v917, 32
        %v920 = vpop.permute.xlu0 %919
        %v922 = vmul.f32 %v915, %v920
        %924 = vrot.lane.b32.xlu0 %v916, 64
        %v925 = vpop.permute.xlu0 %924
        %v927 = vmul.f32 %v915, %v925
        %929 = vrot.lane.b32.xlu0 %v927, 32
        %v930 = vpop.permute.xlu0 %929
        %v932 = vadd.f32 %v922, %v930
        %v933 = vtanh.pop %v932
        %935 = vrot.lane.b32.xlu0 %v933, 64
        %v936 = vpop.permute.xlu0 %935
        %v938 = vmul.f32 %v915, %v936
        %940 = vrot.lane.b32.xlu0 %v932, 96
        %v941 = vpop.permute.xlu0 %940
        %943 = vst.msk [vmem:[#allocation13] sm:$0xff] %vm768, %v941
        %945 = vrot.lane.b32.xlu0 %v938, 32
        %v946 = vpop.permute.xlu0 %945
        %948 = vst.msk [vmem:[#allocation12] sm:$0xff] %vm768, %v946
        %v949 = vpack.c.bf16 %v938, %v938
        %v950 = vld [vmem:[%s10] sm:$0xf]
        %v951 = vld [vmem:[%s10 + $0x4] sm:$0xf]
        %v952 = vld [vmem:[%s10 + $0x8] sm:$0xf]
        %v953 = vld [vmem:[%s10 + $0xc] sm:$0xf]
        %v954 = vld [vmem:[#allocation8] sm:$0x1]
        %v956 = vperm.slane %v954, 0
        %959 = vrot.lane.b32.xlu0 %v949, 32
        %v960 = vpop.permute.xlu0 %959
        %v965 = vunpack.c.l.b16 %v950
        %v966 = vunpack.c.l.b16 %v951
        %v967 = vunpack.c.l.b16 %v952
        %v968 = vunpack.c.l.b16 %v953
        %v969 = vpack.c.b16 %v966, %v965
        %v970 = vpack.c.b16 %v968, %v967
        %v974 = vsel %vm768, %v960, 0
        %976 = vmatpush.bf16.msra.mxu0 0
        %977 = vmatpush.bf16.msra.mxu0 0
        %978 = vmatpush.bf16.msra.mxu0 0
        %979 = vmatpush.bf16.msra.mxu0 0
        %980 = vmatpush.bf16.msra.mxu0 0
        %981 = vmatpush.bf16.msra.mxu0 0
        %982 = vmatpush.bf16.msra.mxu0 %v970
        %983 = vmatpush.bf16.msra.mxu0 %v969
        %984 = vmatmul.bf16.gmra.mxu0 %v974
        %v985 = vpop.f32.mrf.mxu0
        %v986 = vadd.f32 %v956, %v985
        %v987 = vpop.f32.mrf.mxu0
        %988 = vdwg.mxu0
        %v989 = vlaneseq
        %v990 = vand.u32 %v989, 127
        %vm991 = vcmp.eq.s32.totalorder %v990, 16
        %v992 = vxor.u32 %v986, 2147483648
        %v993 = vmul.f32 %v992, 1.442695
        %v994 = vpow.pop %v993
        %v995 = vadd.f32 %v994, 1.0
        %v996 = vrcp.pop %v995
        %v997 = vmul.f32 %v995, %v996
        %v998 = vsub.f32 1.0, %v997
        %v999 = vmul.f32 %v996, %v998
        %v1000 = vadd.f32 %v996, %v999
        %vm1001 = vweird.f32 %v995
        %vm1002 = vweird.f32 %v996
        %vm1003 = vmor %vm1001, %vm1002
        %v1004 = vsel %vm1003, %v996, %v1000
        %v1005 = vand.u32 2147483647, %v995
        %vm1006 = vcmp.eq.f32.partialorder %v1005, 8.507059e+37
        %v1007 = vand.u32 %v995, 2147483648
        %v1008 = vor.u32 1.1754944e-38, %v1007
        %v1009 = vsel %vm1006, %v1008, %v1004
        %v1010 = vmul.f32 1.0, %v1009
        %v1011 = vsel %vm991, %v1010, %v986
        %1012 = vst [vmem:[%s646] sm:$0xff] %v1011
        %1013 = vst [vmem:[#allocation2] sm:$0xff] %v1011
        %v1014 = vld [vmem:[#allocation2] sm:$0xff]
        %v1015 = vpack.c.bf16 %v1014, %v1014
        %v1016 = vld [vmem:[%s2] sm:$0xf]
        %v1017 = vld [vmem:[%s2 + $0x4] sm:$0xf]
        %v1018 = vld [vmem:[%s2 + $0x8] sm:$0xf]
        %v1019 = vld [vmem:[%s2 + $0xc] sm:$0xf]
        %v1020 = vld [vmem:[%s2 + $0x10] sm:$0xf]
        %v1021 = vld [vmem:[%s2 + $0x14] sm:$0xf]
        %v1022 = vld [vmem:[%s2 + $0x18] sm:$0xf]
        %v1023 = vld [vmem:[%s2 + $0x1c] sm:$0xf]
        %v1024 = vld [vmem:[%s2 + $0x20] sm:$0xf]
        %v1025 = vld [vmem:[%s2 + $0x24] sm:$0xf]
        %v1026 = vld [vmem:[%s2 + $0x28] sm:$0xf]
        %v1027 = vld [vmem:[%s2 + $0x2c] sm:$0xf]
        %v1028 = vld [vmem:[%s2 + $0x30] sm:$0xf]
        %v1029 = vld [vmem:[%s2 + $0x34] sm:$0xf]
        %v1030 = vld [vmem:[%s2 + $0x38] sm:$0xf]
        %v1031 = vld [vmem:[%s2 + $0x3c] sm:$0xf]
        %v1032 = vld [vmem:[%s3] sm:$0x1]
        %v1034 = vperm.slane %v1032, 0
        %v1052 = vunpack.c.l.b16 %v1016
        %v1053 = vunpack.c.l.b16 %v1017
        %v1054 = vunpack.c.l.b16 %v1018
        %v1055 = vunpack.c.l.b16 %v1019
        %v1056 = vunpack.c.l.b16 %v1020
        %v1057 = vunpack.c.l.b16 %v1021
        %v1058 = vunpack.c.l.b16 %v1022
        %v1059 = vunpack.c.l.b16 %v1023
        %v1060 = vunpack.c.l.b16 %v1024
        %v1061 = vunpack.c.l.b16 %v1025
        %v1062 = vunpack.c.l.b16 %v1026
        %v1063 = vunpack.c.l.b16 %v1027
        %v1064 = vunpack.c.l.b16 %v1028
        %v1065 = vunpack.c.l.b16 %v1029
        %v1066 = vunpack.c.l.b16 %v1030
        %v1067 = vunpack.c.l.b16 %v1031
        %v1068 = vpack.c.b16 %v1053, %v1052
        %v1069 = vpack.c.b16 %v1055, %v1054
        %v1070 = vpack.c.b16 %v1057, %v1056
        %v1071 = vpack.c.b16 %v1059, %v1058
        %v1072 = vpack.c.b16 %v1061, %v1060
        %v1073 = vpack.c.b16 %v1063, %v1062
        %v1074 = vpack.c.b16 %v1065, %v1064
        %v1075 = vpack.c.b16 %v1067, %v1066
        %1084 = vmatpush.bf16.msra.mxu0 %v1075
        %1085 = vmatpush.bf16.msra.mxu0 %v1074
        %1086 = vmatpush.bf16.msra.mxu0 %v1073
        %1087 = vmatpush.bf16.msra.mxu0 %v1072
        %1088 = vmatpush.bf16.msra.mxu0 %v1071
        %1089 = vmatpush.bf16.msra.mxu0 %v1070
        %1090 = vmatpush.bf16.msra.mxu0 %v1069
        %1091 = vmatpush.bf16.msra.mxu0 %v1068
        %1092 = vmatmul.bf16.gmra.mxu0 %v1015
        %v1093 = vpop.f32.mrf.mxu0
        %v1094 = vadd.f32 %v1034, %v1093
        %v1095 = vpop.f32.mrf.mxu0
        %1096 = vdwg.mxu0
        %v1097 = vmax.f32 %v1094, 0.0
        %v1098 = vpack.c.bf16 %v1097, %v1097
        %v1099 = vld [vmem:[%s4] sm:$0xf]
        %v1100 = vld [vmem:[%s4 + $0x4] sm:$0xf]
        %v1101 = vld [vmem:[%s4 + $0x8] sm:$0xf]
        %v1102 = vld [vmem:[%s4 + $0xc] sm:$0xf]
        %v1103 = vld [vmem:[%s5] sm:$0x1]
        %v1105 = vperm.slane %v1103, 0
        %v1111 = vunpack.c.l.b16 %v1099
        %v1112 = vunpack.c.l.b16 %v1100
        %v1113 = vunpack.c.l.b16 %v1101
        %v1114 = vunpack.c.l.b16 %v1102
        %v1115 = vpack.c.b16 %v1112, %v1111
        %v1116 = vpack.c.b16 %v1114, %v1113
        %v1120 = vsel %vm768, %v1098, 0
        %1122 = vmatpush.bf16.msra.mxu0 0
        %1123 = vmatpush.bf16.msra.mxu0 0
        %1124 = vmatpush.bf16.msra.mxu0 0
        %1125 = vmatpush.bf16.msra.mxu0 0
        %1126 = vmatpush.bf16.msra.mxu0 0
        %1127 = vmatpush.bf16.msra.mxu0 0
        %1128 = vmatpush.bf16.msra.mxu0 %v1116
        %1129 = vmatpush.bf16.msra.mxu0 %v1115
        %1130 = vmatmul.bf16.gmra.mxu0 %v1120
        %v1131 = vpop.f32.mrf.mxu0
        %v1132 = vadd.f32 %v1105, %v1131
        %v1133 = vpop.f32.mrf.mxu0
        %1134 = vdwg.mxu0
        %v1135 = vmax.f32 %v1132, 0.0
        %s1136 = scalar_lea.vmem %s565, 8 [#allocation3]
        %v1137 = vld [vmem:[%s1136] sm:$0xff]
        %v1138 = vpack.c.bf16 %v1135, %v1135
        %v1139 = vld [vmem:[%s6] sm:$0xf]
        %v1140 = vld [vmem:[%s6 + $0x4] sm:$0xf]
        %v1141 = vld [vmem:[%s6 + $0x8] sm:$0xf]
        %v1142 = vld [vmem:[%s6 + $0xc] sm:$0xf]
        %v1143 = vpack.c.bf16 %v1137, %v1137
        %v1144 = vld [vmem:[%s7] sm:$0xf]
        %v1145 = vld [vmem:[%s7 + $0x4] sm:$0xf]
        %v1146 = vld [vmem:[%s7 + $0x8] sm:$0xf]
        %v1147 = vld [vmem:[%s7 + $0xc] sm:$0xf]
        %v1152 = vunpack.c.l.b16 %v1144
        %v1153 = vunpack.c.l.b16 %v1145
        %v1154 = vunpack.c.l.b16 %v1146
        %v1155 = vunpack.c.l.b16 %v1147
        %v1156 = vpack.c.b16 %v1153, %v1152
        %v1157 = vpack.c.b16 %v1155, %v1154
        %v1161 = vsel %vm768, %v1143, 0
        %1163 = vmatpush.bf16.msra.mxu0 0
        %1164 = vmatpush.bf16.msra.mxu0 0
        %1165 = vmatpush.bf16.msra.mxu0 0
        %1166 = vmatpush.bf16.msra.mxu0 0
        %1167 = vmatpush.bf16.msra.mxu0 0
        %1168 = vmatpush.bf16.msra.mxu0 0
        %1169 = vmatpush.bf16.msra.mxu0 %v1157
        %1170 = vmatpush.bf16.msra.mxu0 %v1156
        %1171 = vmatmul.bf16.gmra.mxu0 %v1161
        %v1172 = vpop.f32.mrf.mxu0
        %v1173 = vadd.f32 0.0, %v1172
        %v1174 = vpop.f32.mrf.mxu0
        %1175 = vdwg.mxu0
        %v1180 = vunpack.c.l.b16 %v1139
        %v1181 = vunpack.c.l.b16 %v1140
        %v1182 = vunpack.c.l.b16 %v1141
        %v1183 = vunpack.c.l.b16 %v1142
        %v1184 = vpack.c.b16 %v1181, %v1180
        %v1185 = vpack.c.b16 %v1183, %v1182
        %v1189 = vsel %vm768, %v1138, 0
        %1191 = vmatpush.bf16.msra.mxu0 0
        %1192 = vmatpush.bf16.msra.mxu0 0
        %1193 = vmatpush.bf16.msra.mxu0 0
        %1194 = vmatpush.bf16.msra.mxu0 0
        %1195 = vmatpush.bf16.msra.mxu0 0
        %1196 = vmatpush.bf16.msra.mxu0 0
        %1197 = vmatpush.bf16.msra.mxu0 %v1185
        %1198 = vmatpush.bf16.msra.mxu0 %v1184
        %1199 = vmatmul.bf16.gmra.mxu0 %v1189
        %v1200 = vpop.f32.mrf.mxu0
        %v1201 = vadd.f32 %v1173, %v1200
        %v1202 = vpop.f32.mrf.mxu0
        %1203 = vdwg.mxu0
        %v1204 = vld [vmem:[#allocation12] sm:$0xff]
        %v1205 = vpack.c.bf16 %v1204, %v1204
        %v1206 = vld [vmem:[%s8] sm:$0xf]
        %v1207 = vld [vmem:[%s8 + $0x4] sm:$0xf]
        %v1208 = vld [vmem:[%s8 + $0x8] sm:$0xf]
        %v1209 = vld [vmem:[%s8 + $0xc] sm:$0xf]
        %v1214 = vunpack.c.l.b16 %v1206
        %v1215 = vunpack.c.l.b16 %v1207
        %v1216 = vunpack.c.l.b16 %v1208
        %v1217 = vunpack.c.l.b16 %v1209
        %v1218 = vpack.c.b16 %v1215, %v1214
        %v1219 = vpack.c.b16 %v1217, %v1216
        %v1223 = vsel %vm768, %v1205, 0
        %1225 = vmatpush.bf16.msra.mxu0 0
        %1226 = vmatpush.bf16.msra.mxu0 0
        %1227 = vmatpush.bf16.msra.mxu0 0
        %1228 = vmatpush.bf16.msra.mxu0 0
        %1229 = vmatpush.bf16.msra.mxu0 0
        %1230 = vmatpush.bf16.msra.mxu0 0
        %1231 = vmatpush.bf16.msra.mxu0 %v1219
        %1232 = vmatpush.bf16.msra.mxu0 %v1218
        %1233 = vmatmul.bf16.gmra.mxu0 %v1223
        %v1234 = vpop.f32.mrf.mxu0
        %v1235 = vadd.f32 0.0, %v1234
        %v1236 = vpop.f32.mrf.mxu0
        %1237 = vdwg.mxu0
        %v1238 = vadd.f32 %v1201, %v1235
        %v1239 = vld [vmem:[#allocation6] sm:$0x1]
        %v1241 = vperm.slane %v1239, 0
        %v1243 = vadd.f32 %v1238, %v1241
        %v1244 = vxor.u32 %v1243, 2147483648
        %v1245 = vmul.f32 %v1244, 1.442695
        %v1246 = vpow.pop %v1245
        %v1247 = vadd.f32 %v1246, 1.0
        %v1248 = vrcp.pop %v1247
        %v1249 = vmul.f32 %v1247, %v1248
        %v1250 = vsub.f32 1.0, %v1249
        %v1251 = vmul.f32 %v1248, %v1250
        %v1252 = vadd.f32 %v1248, %v1251
        %vm1253 = vweird.f32 %v1247
        %vm1254 = vweird.f32 %v1248
        %vm1255 = vmor %vm1253, %vm1254
        %v1256 = vsel %vm1255, %v1248, %v1252
        %v1257 = vand.u32 2147483647, %v1247
        %vm1258 = vcmp.eq.f32.partialorder %v1257, 8.507059e+37
        %v1259 = vand.u32 %v1247, 2147483648
        %v1260 = vor.u32 1.1754944e-38, %v1259
        %v1261 = vsel %vm1258, %v1260, %v1256
        %v1262 = vmul.f32 1.0, %v1261
        %v1263 = vtanh.pop %v1243
        %v1264 = vld [vmem:[#allocation13] sm:$0xff]
        %1266 = vrot.lane.b32.xlu0 %v1264, 32
        %v1267 = vpop.permute.xlu0 %1266
        %v1269 = vmul.f32 %v1262, %v1267
        %1271 = vrot.lane.b32.xlu0 %v1263, 64
        %v1272 = vpop.permute.xlu0 %1271
        %v1274 = vmul.f32 %v1262, %v1272
        %1276 = vrot.lane.b32.xlu0 %v1274, 32
        %v1277 = vpop.permute.xlu0 %1276
        %v1279 = vadd.f32 %v1269, %v1277
        %v1280 = vtanh.pop %v1279
        %1282 = vrot.lane.b32.xlu0 %v1280, 64
        %v1283 = vpop.permute.xlu0 %1282
        %v1285 = vmul.f32 %v1262, %v1283
        %1287 = vrot.lane.b32.xlu0 %v1279, 96
        %v1288 = vpop.permute.xlu0 %1287
        %1290 = vst.msk [vmem:[#allocation13] sm:$0xff] %vm768, %v1288
        %1292 = vrot.lane.b32.xlu0 %v1285, 32
        %v1293 = vpop.permute.xlu0 %1292
        %1295 = vst.msk [vmem:[#allocation12] sm:$0xff] %vm768, %v1293
        %v1296 = vpack.c.bf16 %v1285, %v1285
        %v1297 = vld [vmem:[%s10] sm:$0xf]
        %v1298 = vld [vmem:[%s10 + $0x4] sm:$0xf]
        %v1299 = vld [vmem:[%s10 + $0x8] sm:$0xf]
        %v1300 = vld [vmem:[%s10 + $0xc] sm:$0xf]
        %v1301 = vld [vmem:[#allocation8] sm:$0x1]
        %v1303 = vperm.slane %v1301, 0
        %1306 = vrot.lane.b32.xlu0 %v1296, 32
        %v1307 = vpop.permute.xlu0 %1306
        %v1312 = vunpack.c.l.b16 %v1297
        %v1313 = vunpack.c.l.b16 %v1298
        %v1314 = vunpack.c.l.b16 %v1299
        %v1315 = vunpack.c.l.b16 %v1300
        %v1316 = vpack.c.b16 %v1313, %v1312
        %v1317 = vpack.c.b16 %v1315, %v1314
        %v1321 = vsel %vm768, %v1307, 0
        %1323 = vmatpush.bf16.msra.mxu0 0
        %1324 = vmatpush.bf16.msra.mxu0 0
        %1325 = vmatpush.bf16.msra.mxu0 0
        %1326 = vmatpush.bf16.msra.mxu0 0
        %1327 = vmatpush.bf16.msra.mxu0 0
        %1328 = vmatpush.bf16.msra.mxu0 0
        %1329 = vmatpush.bf16.msra.mxu0 %v1317
        %1330 = vmatpush.bf16.msra.mxu0 %v1316
        %1331 = vmatmul.bf16.gmra.mxu0 %v1321
        %v1332 = vpop.f32.mrf.mxu0
        %v1333 = vadd.f32 %v1303, %v1332
        %v1334 = vpop.f32.mrf.mxu0
        %1335 = vdwg.mxu0
        %v1336 = vxor.u32 %v1333, 2147483648
        %v1337 = vmul.f32 %v1336, 1.442695
        %v1338 = vpow.pop %v1337
        %v1339 = vadd.f32 %v1338, 1.0
        %v1340 = vrcp.pop %v1339
        %v1341 = vmul.f32 %v1339, %v1340
        %v1342 = vsub.f32 1.0, %v1341
        %v1343 = vmul.f32 %v1340, %v1342
        %v1344 = vadd.f32 %v1340, %v1343
        %vm1345 = vweird.f32 %v1339
        %vm1346 = vweird.f32 %v1340
        %vm1347 = vmor %vm1345, %vm1346
        %v1348 = vsel %vm1347, %v1340, %v1344
        %v1349 = vand.u32 2147483647, %v1339
        %vm1350 = vcmp.eq.f32.partialorder %v1349, 8.507059e+37
        %v1351 = vand.u32 %v1339, 2147483648
        %v1352 = vor.u32 1.1754944e-38, %v1351
        %v1353 = vsel %vm1350, %v1352, %v1348
        %v1354 = vmul.f32 1.0, %v1353
        %v1355 = vsel %vm991, %v1354, %v1333
        %s1356 = scalar_lea.vmem %s646, 8
        %1357 = vst [vmem:[%s1356] sm:$0xff] %v1355
        %1358 = vst [vmem:[#allocation2] sm:$0xff] %v1355
        %v1359 = vld [vmem:[#allocation2] sm:$0xff]
        %v1360 = vpack.c.bf16 %v1359, %v1359
        %v1361 = vld [vmem:[%s2] sm:$0xf]
        %v1362 = vld [vmem:[%s2 + $0x4] sm:$0xf]
        %v1363 = vld [vmem:[%s2 + $0x8] sm:$0xf]
        %v1364 = vld [vmem:[%s2 + $0xc] sm:$0xf]
        %v1365 = vld [vmem:[%s2 + $0x10] sm:$0xf]
        %v1366 = vld [vmem:[%s2 + $0x14] sm:$0xf]
        %v1367 = vld [vmem:[%s2 + $0x18] sm:$0xf]
        %v1368 = vld [vmem:[%s2 + $0x1c] sm:$0xf]
        %v1369 = vld [vmem:[%s2 + $0x20] sm:$0xf]
        %v1370 = vld [vmem:[%s2 + $0x24] sm:$0xf]
        %v1371 = vld [vmem:[%s2 + $0x28] sm:$0xf]
        %v1372 = vld [vmem:[%s2 + $0x2c] sm:$0xf]
        %v1373 = vld [vmem:[%s2 + $0x30] sm:$0xf]
        %v1374 = vld [vmem:[%s2 + $0x34] sm:$0xf]
        %v1375 = vld [vmem:[%s2 + $0x38] sm:$0xf]
        %v1376 = vld [vmem:[%s2 + $0x3c] sm:$0xf]
        %v1377 = vld [vmem:[%s3] sm:$0x1]
        %v1379 = vperm.slane %v1377, 0
        %v1397 = vunpack.c.l.b16 %v1361
        %v1398 = vunpack.c.l.b16 %v1362
        %v1399 = vunpack.c.l.b16 %v1363
        %v1400 = vunpack.c.l.b16 %v1364
        %v1401 = vunpack.c.l.b16 %v1365
        %v1402 = vunpack.c.l.b16 %v1366
        %v1403 = vunpack.c.l.b16 %v1367
        %v1404 = vunpack.c.l.b16 %v1368
        %v1405 = vunpack.c.l.b16 %v1369
        %v1406 = vunpack.c.l.b16 %v1370
        %v1407 = vunpack.c.l.b16 %v1371
        %v1408 = vunpack.c.l.b16 %v1372
        %v1409 = vunpack.c.l.b16 %v1373
        %v1410 = vunpack.c.l.b16 %v1374
        %v1411 = vunpack.c.l.b16 %v1375
        %v1412 = vunpack.c.l.b16 %v1376
        %v1413 = vpack.c.b16 %v1398, %v1397
        %v1414 = vpack.c.b16 %v1400, %v1399
        %v1415 = vpack.c.b16 %v1402, %v1401
        %v1416 = vpack.c.b16 %v1404, %v1403
        %v1417 = vpack.c.b16 %v1406, %v1405
        %v1418 = vpack.c.b16 %v1408, %v1407
        %v1419 = vpack.c.b16 %v1410, %v1409
        %v1420 = vpack.c.b16 %v1412, %v1411
        %1429 = vmatpush.bf16.msra.mxu0 %v1420
        %1430 = vmatpush.bf16.msra.mxu0 %v1419
        %1431 = vmatpush.bf16.msra.mxu0 %v1418
        %1432 = vmatpush.bf16.msra.mxu0 %v1417
        %1433 = vmatpush.bf16.msra.mxu0 %v1416
        %1434 = vmatpush.bf16.msra.mxu0 %v1415
        %1435 = vmatpush.bf16.msra.mxu0 %v1414
        %1436 = vmatpush.bf16.msra.mxu0 %v1413
        %1437 = vmatmul.bf16.gmra.mxu0 %v1360
        %v1438 = vpop.f32.mrf.mxu0
        %v1439 = vadd.f32 %v1379, %v1438
        %v1440 = vpop.f32.mrf.mxu0
        %1441 = vdwg.mxu0
        %v1442 = vmax.f32 %v1439, 0.0
        %v1443 = vpack.c.bf16 %v1442, %v1442
        %v1444 = vld [vmem:[%s4] sm:$0xf]
        %v1445 = vld [vmem:[%s4 + $0x4] sm:$0xf]
        %v1446 = vld [vmem:[%s4 + $0x8] sm:$0xf]
        %v1447 = vld [vmem:[%s4 + $0xc] sm:$0xf]
        %v1448 = vld [vmem:[%s5] sm:$0x1]
        %v1450 = vperm.slane %v1448, 0
        %v1456 = vunpack.c.l.b16 %v1444
        %v1457 = vunpack.c.l.b16 %v1445
        %v1458 = vunpack.c.l.b16 %v1446
        %v1459 = vunpack.c.l.b16 %v1447
        %v1460 = vpack.c.b16 %v1457, %v1456
        %v1461 = vpack.c.b16 %v1459, %v1458
        %v1465 = vsel %vm768, %v1443, 0
        %1467 = vmatpush.bf16.msra.mxu0 0
        %1468 = vmatpush.bf16.msra.mxu0 0
        %1469 = vmatpush.bf16.msra.mxu0 0
        %1470 = vmatpush.bf16.msra.mxu0 0
        %1471 = vmatpush.bf16.msra.mxu0 0
        %1472 = vmatpush.bf16.msra.mxu0 0
        %1473 = vmatpush.bf16.msra.mxu0 %v1461
        %1474 = vmatpush.bf16.msra.mxu0 %v1460
        %1475 = vmatmul.bf16.gmra.mxu0 %v1465
        %v1476 = vpop.f32.mrf.mxu0
        %v1477 = vadd.f32 %v1450, %v1476
        %v1478 = vpop.f32.mrf.mxu0
        %1479 = vdwg.mxu0
        %v1480 = vmax.f32 %v1477, 0.0
        %s1481 = scalar_lea.vmem %s565, 16 [#allocation3]
        %v1482 = vld [vmem:[%s1481] sm:$0xff]
        %v1483 = vpack.c.bf16 %v1480, %v1480
        %v1484 = vld [vmem:[%s6] sm:$0xf]
        %v1485 = vld [vmem:[%s6 + $0x4] sm:$0xf]
        %v1486 = vld [vmem:[%s6 + $0x8] sm:$0xf]
        %v1487 = vld [vmem:[%s6 + $0xc] sm:$0xf]
        %v1488 = vpack.c.bf16 %v1482, %v1482
        %v1489 = vld [vmem:[%s7] sm:$0xf]
        %v1490 = vld [vmem:[%s7 + $0x4] sm:$0xf]
        %v1491 = vld [vmem:[%s7 + $0x8] sm:$0xf]
        %v1492 = vld [vmem:[%s7 + $0xc] sm:$0xf]
        %v1497 = vunpack.c.l.b16 %v1489
        %v1498 = vunpack.c.l.b16 %v1490
        %v1499 = vunpack.c.l.b16 %v1491
        %v1500 = vunpack.c.l.b16 %v1492
        %v1501 = vpack.c.b16 %v1498, %v1497
        %v1502 = vpack.c.b16 %v1500, %v1499
        %v1506 = vsel %vm768, %v1488, 0
        %1508 = vmatpush.bf16.msra.mxu0 0
        %1509 = vmatpush.bf16.msra.mxu0 0
        %1510 = vmatpush.bf16.msra.mxu0 0
        %1511 = vmatpush.bf16.msra.mxu0 0
        %1512 = vmatpush.bf16.msra.mxu0 0
        %1513 = vmatpush.bf16.msra.mxu0 0
        %1514 = vmatpush.bf16.msra.mxu0 %v1502
        %1515 = vmatpush.bf16.msra.mxu0 %v1501
        %1516 = vmatmul.bf16.gmra.mxu0 %v1506
        %v1517 = vpop.f32.mrf.mxu0
        %v1518 = vadd.f32 0.0, %v1517
        %v1519 = vpop.f32.mrf.mxu0
        %1520 = vdwg.mxu0
        %v1525 = vunpack.c.l.b16 %v1484
        %v1526 = vunpack.c.l.b16 %v1485
        %v1527 = vunpack.c.l.b16 %v1486
        %v1528 = vunpack.c.l.b16 %v1487
        %v1529 = vpack.c.b16 %v1526, %v1525
        %v1530 = vpack.c.b16 %v1528, %v1527
        %v1534 = vsel %vm768, %v1483, 0
        %1536 = vmatpush.bf16.msra.mxu0 0
        %1537 = vmatpush.bf16.msra.mxu0 0
        %1538 = vmatpush.bf16.msra.mxu0 0
        %1539 = vmatpush.bf16.msra.mxu0 0
        %1540 = vmatpush.bf16.msra.mxu0 0
        %1541 = vmatpush.bf16.msra.mxu0 0
        %1542 = vmatpush.bf16.msra.mxu0 %v1530
        %1543 = vmatpush.bf16.msra.mxu0 %v1529
        %1544 = vmatmul.bf16.gmra.mxu0 %v1534
        %v1545 = vpop.f32.mrf.mxu0
        %v1546 = vadd.f32 %v1518, %v1545
        %v1547 = vpop.f32.mrf.mxu0
        %1548 = vdwg.mxu0
        %v1549 = vld [vmem:[#allocation12] sm:$0xff]
        %v1550 = vpack.c.bf16 %v1549, %v1549
        %v1551 = vld [vmem:[%s8] sm:$0xf]
        %v1552 = vld [vmem:[%s8 + $0x4] sm:$0xf]
        %v1553 = vld [vmem:[%s8 + $0x8] sm:$0xf]
        %v1554 = vld [vmem:[%s8 + $0xc] sm:$0xf]
        %v1559 = vunpack.c.l.b16 %v1551
        %v1560 = vunpack.c.l.b16 %v1552
        %v1561 = vunpack.c.l.b16 %v1553
        %v1562 = vunpack.c.l.b16 %v1554
        %v1563 = vpack.c.b16 %v1560, %v1559
        %v1564 = vpack.c.b16 %v1562, %v1561
        %v1568 = vsel %vm768, %v1550, 0
        %1570 = vmatpush.bf16.msra.mxu0 0
        %1571 = vmatpush.bf16.msra.mxu0 0
        %1572 = vmatpush.bf16.msra.mxu0 0
        %1573 = vmatpush.bf16.msra.mxu0 0
        %1574 = vmatpush.bf16.msra.mxu0 0
        %1575 = vmatpush.bf16.msra.mxu0 0
        %1576 = vmatpush.bf16.msra.mxu0 %v1564
        %1577 = vmatpush.bf16.msra.mxu0 %v1563
        %1578 = vmatmul.bf16.gmra.mxu0 %v1568
        %v1579 = vpop.f32.mrf.mxu0
        %v1580 = vadd.f32 0.0, %v1579
        %v1581 = vpop.f32.mrf.mxu0
        %1582 = vdwg.mxu0
        %v1583 = vadd.f32 %v1546, %v1580
        %v1584 = vld [vmem:[#allocation6] sm:$0x1]
        %v1586 = vperm.slane %v1584, 0
        %v1588 = vadd.f32 %v1583, %v1586
        %v1589 = vxor.u32 %v1588, 2147483648
        %v1590 = vmul.f32 %v1589, 1.442695
        %v1591 = vpow.pop %v1590
        %v1592 = vadd.f32 %v1591, 1.0
        %v1593 = vrcp.pop %v1592
        %v1594 = vmul.f32 %v1592, %v1593
        %v1595 = vsub.f32 1.0, %v1594
        %v1596 = vmul.f32 %v1593, %v1595
        %v1597 = vadd.f32 %v1593, %v1596
        %vm1598 = vweird.f32 %v1592
        %vm1599 = vweird.f32 %v1593
        %vm1600 = vmor %vm1598, %vm1599
        %v1601 = vsel %vm1600, %v1593, %v1597
        %v1602 = vand.u32 2147483647, %v1592
        %vm1603 = vcmp.eq.f32.partialorder %v1602, 8.507059e+37
        %v1604 = vand.u32 %v1592, 2147483648
        %v1605 = vor.u32 1.1754944e-38, %v1604
        %v1606 = vsel %vm1603, %v1605, %v1601
        %v1607 = vmul.f32 1.0, %v1606
        %v1608 = vtanh.pop %v1588
        %v1609 = vld [vmem:[#allocation13] sm:$0xff]
        %1611 = vrot.lane.b32.xlu0 %v1609, 32
        %v1612 = vpop.permute.xlu0 %1611
        %v1614 = vmul.f32 %v1607, %v1612
        %1616 = vrot.lane.b32.xlu0 %v1608, 64
        %v1617 = vpop.permute.xlu0 %1616
        %v1619 = vmul.f32 %v1607, %v1617
        %1621 = vrot.lane.b32.xlu0 %v1619, 32
        %v1622 = vpop.permute.xlu0 %1621
        %v1624 = vadd.f32 %v1614, %v1622
        %v1625 = vtanh.pop %v1624
        %1627 = vrot.lane.b32.xlu0 %v1625, 64
        %v1628 = vpop.permute.xlu0 %1627
        %v1630 = vmul.f32 %v1607, %v1628
        %1632 = vrot.lane.b32.xlu0 %v1624, 96
        %v1633 = vpop.permute.xlu0 %1632
        %1635 = vst.msk [vmem:[#allocation13] sm:$0xff] %vm768, %v1633
        %1637 = vrot.lane.b32.xlu0 %v1630, 32
        %v1638 = vpop.permute.xlu0 %1637
        %1640 = vst.msk [vmem:[#allocation12] sm:$0xff] %vm768, %v1638
        %v1641 = vpack.c.bf16 %v1630, %v1630
        %v1642 = vld [vmem:[%s10] sm:$0xf]
        %v1643 = vld [vmem:[%s10 + $0x4] sm:$0xf]
        %v1644 = vld [vmem:[%s10 + $0x8] sm:$0xf]
        %v1645 = vld [vmem:[%s10 + $0xc] sm:$0xf]
        %v1646 = vld [vmem:[#allocation8] sm:$0x1]
        %v1648 = vperm.slane %v1646, 0
        %1651 = vrot.lane.b32.xlu0 %v1641, 32
        %v1652 = vpop.permute.xlu0 %1651
        %v1657 = vunpack.c.l.b16 %v1642
        %v1658 = vunpack.c.l.b16 %v1643
        %v1659 = vunpack.c.l.b16 %v1644
        %v1660 = vunpack.c.l.b16 %v1645
        %v1661 = vpack.c.b16 %v1658, %v1657
        %v1662 = vpack.c.b16 %v1660, %v1659
        %v1666 = vsel %vm768, %v1652, 0
        %1668 = vmatpush.bf16.msra.mxu0 0
        %1669 = vmatpush.bf16.msra.mxu0 0
        %1670 = vmatpush.bf16.msra.mxu0 0
        %1671 = vmatpush.bf16.msra.mxu0 0
        %1672 = vmatpush.bf16.msra.mxu0 0
        %1673 = vmatpush.bf16.msra.mxu0 0
        %1674 = vmatpush.bf16.msra.mxu0 %v1662
        %1675 = vmatpush.bf16.msra.mxu0 %v1661
        %1676 = vmatmul.bf16.gmra.mxu0 %v1666
        %v1677 = vpop.f32.mrf.mxu0
        %v1678 = vadd.f32 %v1648, %v1677
        %v1679 = vpop.f32.mrf.mxu0
        %1680 = vdwg.mxu0
        %v1681 = vxor.u32 %v1678, 2147483648
        %v1682 = vmul.f32 %v1681, 1.442695
        %v1683 = vpow.pop %v1682
        %v1684 = vadd.f32 %v1683, 1.0
        %v1685 = vrcp.pop %v1684
        %v1686 = vmul.f32 %v1684, %v1685
        %v1687 = vsub.f32 1.0, %v1686
        %v1688 = vmul.f32 %v1685, %v1687
        %v1689 = vadd.f32 %v1685, %v1688
        %vm1690 = vweird.f32 %v1684
        %vm1691 = vweird.f32 %v1685
        %vm1692 = vmor %vm1690, %vm1691
        %v1693 = vsel %vm1692, %v1685, %v1689
        %v1694 = vand.u32 2147483647, %v1684
        %vm1695 = vcmp.eq.f32.partialorder %v1694, 8.507059e+37
        %v1696 = vand.u32 %v1684, 2147483648
        %v1697 = vor.u32 1.1754944e-38, %v1696
        %v1698 = vsel %vm1695, %v1697, %v1693
        %v1699 = vmul.f32 1.0, %v1698
        %v1700 = vsel %vm991, %v1699, %v1678
        %s1701 = scalar_lea.vmem %s646, 16
        %1702 = vst [vmem:[%s1701] sm:$0xff] %v1700
        %1703 = vst [vmem:[#allocation2] sm:$0xff] %v1700
        %v1704 = vld [vmem:[#allocation2] sm:$0xff]
        %v1705 = vpack.c.bf16 %v1704, %v1704
        %v1706 = vld [vmem:[%s2] sm:$0xf]
        %v1707 = vld [vmem:[%s2 + $0x4] sm:$0xf]
        %v1708 = vld [vmem:[%s2 + $0x8] sm:$0xf]
        %v1709 = vld [vmem:[%s2 + $0xc] sm:$0xf]
        %v1710 = vld [vmem:[%s2 + $0x10] sm:$0xf]
        %v1711 = vld [vmem:[%s2 + $0x14] sm:$0xf]
        %v1712 = vld [vmem:[%s2 + $0x18] sm:$0xf]
        %v1713 = vld [vmem:[%s2 + $0x1c] sm:$0xf]
        %v1714 = vld [vmem:[%s2 + $0x20] sm:$0xf]
        %v1715 = vld [vmem:[%s2 + $0x24] sm:$0xf]
        %v1716 = vld [vmem:[%s2 + $0x28] sm:$0xf]
        %v1717 = vld [vmem:[%s2 + $0x2c] sm:$0xf]
        %v1718 = vld [vmem:[%s2 + $0x30] sm:$0xf]
        %v1719 = vld [vmem:[%s2 + $0x34] sm:$0xf]
        %v1720 = vld [vmem:[%s2 + $0x38] sm:$0xf]
        %v1721 = vld [vmem:[%s2 + $0x3c] sm:$0xf]
        %v1722 = vld [vmem:[%s3] sm:$0x1]
        %v1724 = vperm.slane %v1722, 0
        %v1742 = vunpack.c.l.b16 %v1706
        %v1743 = vunpack.c.l.b16 %v1707
        %v1744 = vunpack.c.l.b16 %v1708
        %v1745 = vunpack.c.l.b16 %v1709
        %v1746 = vunpack.c.l.b16 %v1710
        %v1747 = vunpack.c.l.b16 %v1711
        %v1748 = vunpack.c.l.b16 %v1712
        %v1749 = vunpack.c.l.b16 %v1713
        %v1750 = vunpack.c.l.b16 %v1714
        %v1751 = vunpack.c.l.b16 %v1715
        %v1752 = vunpack.c.l.b16 %v1716
        %v1753 = vunpack.c.l.b16 %v1717
        %v1754 = vunpack.c.l.b16 %v1718
        %v1755 = vunpack.c.l.b16 %v1719
        %v1756 = vunpack.c.l.b16 %v1720
        %v1757 = vunpack.c.l.b16 %v1721
        %v1758 = vpack.c.b16 %v1743, %v1742
        %v1759 = vpack.c.b16 %v1745, %v1744
        %v1760 = vpack.c.b16 %v1747, %v1746
        %v1761 = vpack.c.b16 %v1749, %v1748
        %v1762 = vpack.c.b16 %v1751, %v1750
        %v1763 = vpack.c.b16 %v1753, %v1752
        %v1764 = vpack.c.b16 %v1755, %v1754
        %v1765 = vpack.c.b16 %v1757, %v1756
        %1774 = vmatpush.bf16.msra.mxu0 %v1765
        %1775 = vmatpush.bf16.msra.mxu0 %v1764
        %1776 = vmatpush.bf16.msra.mxu0 %v1763
        %1777 = vmatpush.bf16.msra.mxu0 %v1762
        %1778 = vmatpush.bf16.msra.mxu0 %v1761
        %1779 = vmatpush.bf16.msra.mxu0 %v1760
        %1780 = vmatpush.bf16.msra.mxu0 %v1759
        %1781 = vmatpush.bf16.msra.mxu0 %v1758
        %1782 = vmatmul.bf16.gmra.mxu0 %v1705
        %v1783 = vpop.f32.mrf.mxu0
        %v1784 = vadd.f32 %v1724, %v1783
        %v1785 = vpop.f32.mrf.mxu0
        %1786 = vdwg.mxu0
        %v1787 = vmax.f32 %v1784, 0.0
        %v1788 = vpack.c.bf16 %v1787, %v1787
        %v1789 = vld [vmem:[%s4] sm:$0xf]
        %v1790 = vld [vmem:[%s4 + $0x4] sm:$0xf]
        %v1791 = vld [vmem:[%s4 + $0x8] sm:$0xf]
        %v1792 = vld [vmem:[%s4 + $0xc] sm:$0xf]
        %v1793 = vld [vmem:[%s5] sm:$0x1]
        %v1795 = vperm.slane %v1793, 0
        %v1801 = vunpack.c.l.b16 %v1789
        %v1802 = vunpack.c.l.b16 %v1790
        %v1803 = vunpack.c.l.b16 %v1791
        %v1804 = vunpack.c.l.b16 %v1792
        %v1805 = vpack.c.b16 %v1802, %v1801
        %v1806 = vpack.c.b16 %v1804, %v1803
        %v1810 = vsel %vm768, %v1788, 0
        %1812 = vmatpush.bf16.msra.mxu0 0
        %1813 = vmatpush.bf16.msra.mxu0 0
        %1814 = vmatpush.bf16.msra.mxu0 0
        %1815 = vmatpush.bf16.msra.mxu0 0
        %1816 = vmatpush.bf16.msra.mxu0 0
        %1817 = vmatpush.bf16.msra.mxu0 0
        %1818 = vmatpush.bf16.msra.mxu0 %v1806
        %1819 = vmatpush.bf16.msra.mxu0 %v1805
        %1820 = vmatmul.bf16.gmra.mxu0 %v1810
        %v1821 = vpop.f32.mrf.mxu0
        %v1822 = vadd.f32 %v1795, %v1821
        %v1823 = vpop.f32.mrf.mxu0
        %1824 = vdwg.mxu0
        %v1825 = vmax.f32 %v1822, 0.0
        %s1826 = scalar_lea.vmem %s565, 24 [#allocation3]
        %v1827 = vld [vmem:[%s1826] sm:$0xff]
        %v1828 = vpack.c.bf16 %v1825, %v1825
        %v1829 = vld [vmem:[%s6] sm:$0xf]
        %v1830 = vld [vmem:[%s6 + $0x4] sm:$0xf]
        %v1831 = vld [vmem:[%s6 + $0x8] sm:$0xf]
        %v1832 = vld [vmem:[%s6 + $0xc] sm:$0xf]
        %v1833 = vpack.c.bf16 %v1827, %v1827
        %v1834 = vld [vmem:[%s7] sm:$0xf]
        %v1835 = vld [vmem:[%s7 + $0x4] sm:$0xf]
        %v1836 = vld [vmem:[%s7 + $0x8] sm:$0xf]
        %v1837 = vld [vmem:[%s7 + $0xc] sm:$0xf]
        %v1842 = vunpack.c.l.b16 %v1834
        %v1843 = vunpack.c.l.b16 %v1835
        %v1844 = vunpack.c.l.b16 %v1836
        %v1845 = vunpack.c.l.b16 %v1837
        %v1846 = vpack.c.b16 %v1843, %v1842
        %v1847 = vpack.c.b16 %v1845, %v1844
        %v1851 = vsel %vm768, %v1833, 0
        %1853 = vmatpush.bf16.msra.mxu0 0
        %1854 = vmatpush.bf16.msra.mxu0 0
        %1855 = vmatpush.bf16.msra.mxu0 0
        %1856 = vmatpush.bf16.msra.mxu0 0
        %1857 = vmatpush.bf16.msra.mxu0 0
        %1858 = vmatpush.bf16.msra.mxu0 0
        %1859 = vmatpush.bf16.msra.mxu0 %v1847
        %1860 = vmatpush.bf16.msra.mxu0 %v1846
        %1861 = vmatmul.bf16.gmra.mxu0 %v1851
        %v1862 = vpop.f32.mrf.mxu0
        %v1863 = vadd.f32 0.0, %v1862
        %v1864 = vpop.f32.mrf.mxu0
        %1865 = vdwg.mxu0
        %v1870 = vunpack.c.l.b16 %v1829
        %v1871 = vunpack.c.l.b16 %v1830
        %v1872 = vunpack.c.l.b16 %v1831
        %v1873 = vunpack.c.l.b16 %v1832
        %v1874 = vpack.c.b16 %v1871, %v1870
        %v1875 = vpack.c.b16 %v1873, %v1872
        %v1879 = vsel %vm768, %v1828, 0
        %1881 = vmatpush.bf16.msra.mxu0 0
        %1882 = vmatpush.bf16.msra.mxu0 0
        %1883 = vmatpush.bf16.msra.mxu0 0
        %1884 = vmatpush.bf16.msra.mxu0 0
        %1885 = vmatpush.bf16.msra.mxu0 0
        %1886 = vmatpush.bf16.msra.mxu0 0
        %1887 = vmatpush.bf16.msra.mxu0 %v1875
        %1888 = vmatpush.bf16.msra.mxu0 %v1874
        %1889 = vmatmul.bf16.gmra.mxu0 %v1879
        %v1890 = vpop.f32.mrf.mxu0
        %v1891 = vadd.f32 %v1863, %v1890
        %v1892 = vpop.f32.mrf.mxu0
        %1893 = vdwg.mxu0
        %v1894 = vld [vmem:[#allocation12] sm:$0xff]
        %v1895 = vpack.c.bf16 %v1894, %v1894
        %v1896 = vld [vmem:[%s8] sm:$0xf]
        %v1897 = vld [vmem:[%s8 + $0x4] sm:$0xf]
        %v1898 = vld [vmem:[%s8 + $0x8] sm:$0xf]
        %v1899 = vld [vmem:[%s8 + $0xc] sm:$0xf]
        %v1904 = vunpack.c.l.b16 %v1896
        %v1905 = vunpack.c.l.b16 %v1897
        %v1906 = vunpack.c.l.b16 %v1898
        %v1907 = vunpack.c.l.b16 %v1899
        %v1908 = vpack.c.b16 %v1905, %v1904
        %v1909 = vpack.c.b16 %v1907, %v1906
        %v1913 = vsel %vm768, %v1895, 0
        %1915 = vmatpush.bf16.msra.mxu0 0
        %1916 = vmatpush.bf16.msra.mxu0 0
        %1917 = vmatpush.bf16.msra.mxu0 0
        %1918 = vmatpush.bf16.msra.mxu0 0
        %1919 = vmatpush.bf16.msra.mxu0 0
        %1920 = vmatpush.bf16.msra.mxu0 0
        %1921 = vmatpush.bf16.msra.mxu0 %v1909
        %1922 = vmatpush.bf16.msra.mxu0 %v1908
        %1923 = vmatmul.bf16.gmra.mxu0 %v1913
        %v1924 = vpop.f32.mrf.mxu0
        %v1925 = vadd.f32 0.0, %v1924
        %v1926 = vpop.f32.mrf.mxu0
        %1927 = vdwg.mxu0
        %v1928 = vadd.f32 %v1891, %v1925
        %v1929 = vld [vmem:[#allocation6] sm:$0x1]
        %v1931 = vperm.slane %v1929, 0
        %v1933 = vadd.f32 %v1928, %v1931
        %v1934 = vxor.u32 %v1933, 2147483648
        %v1935 = vmul.f32 %v1934, 1.442695
        %v1936 = vpow.pop %v1935
        %v1937 = vadd.f32 %v1936, 1.0
        %v1938 = vrcp.pop %v1937
        %v1939 = vmul.f32 %v1937, %v1938
        %v1940 = vsub.f32 1.0, %v1939
        %v1941 = vmul.f32 %v1938, %v1940
        %v1942 = vadd.f32 %v1938, %v1941
        %vm1943 = vweird.f32 %v1937
        %vm1944 = vweird.f32 %v1938
        %vm1945 = vmor %vm1943, %vm1944
        %v1946 = vsel %vm1945, %v1938, %v1942
        %v1947 = vand.u32 2147483647, %v1937
        %vm1948 = vcmp.eq.f32.partialorder %v1947, 8.507059e+37
        %v1949 = vand.u32 %v1937, 2147483648
        %v1950 = vor.u32 1.1754944e-38, %v1949
        %v1951 = vsel %vm1948, %v1950, %v1946
        %v1952 = vmul.f32 1.0, %v1951
        %v1953 = vtanh.pop %v1933
        %v1954 = vld [vmem:[#allocation13] sm:$0xff]
        %1956 = vrot.lane.b32.xlu0 %v1954, 32
        %v1957 = vpop.permute.xlu0 %1956
        %v1959 = vmul.f32 %v1952, %v1957
        %1961 = vrot.lane.b32.xlu0 %v1953, 64
        %v1962 = vpop.permute.xlu0 %1961
        %v1964 = vmul.f32 %v1952, %v1962
        %1966 = vrot.lane.b32.xlu0 %v1964, 32
        %v1967 = vpop.permute.xlu0 %1966
        %v1969 = vadd.f32 %v1959, %v1967
        %v1970 = vtanh.pop %v1969
        %1972 = vrot.lane.b32.xlu0 %v1970, 64
        %v1973 = vpop.permute.xlu0 %1972
        %v1975 = vmul.f32 %v1952, %v1973
        %1977 = vrot.lane.b32.xlu0 %v1969, 96
        %v1978 = vpop.permute.xlu0 %1977
        %1980 = vst.msk [vmem:[#allocation13] sm:$0xff] %vm768, %v1978
        %1982 = vrot.lane.b32.xlu0 %v1975, 32
        %v1983 = vpop.permute.xlu0 %1982
        %1985 = vst.msk [vmem:[#allocation12] sm:$0xff] %vm768, %v1983
        %v1986 = vpack.c.bf16 %v1975, %v1975
        %v1987 = vld [vmem:[%s10] sm:$0xf]
        %v1988 = vld [vmem:[%s10 + $0x4] sm:$0xf]
        %v1989 = vld [vmem:[%s10 + $0x8] sm:$0xf]
        %v1990 = vld [vmem:[%s10 + $0xc] sm:$0xf]
        %v1991 = vld [vmem:[#allocation8] sm:$0x1]
        %v1993 = vperm.slane %v1991, 0
        %1996 = vrot.lane.b32.xlu0 %v1986, 32
        %v1997 = vpop.permute.xlu0 %1996
        %v2002 = vunpack.c.l.b16 %v1987
        %v2003 = vunpack.c.l.b16 %v1988
        %v2004 = vunpack.c.l.b16 %v1989
        %v2005 = vunpack.c.l.b16 %v1990
        %v2006 = vpack.c.b16 %v2003, %v2002
        %v2007 = vpack.c.b16 %v2005, %v2004
        %v2011 = vsel %vm768, %v1997, 0
        %2013 = vmatpush.bf16.msra.mxu0 0
        %2014 = vmatpush.bf16.msra.mxu0 0
        %2015 = vmatpush.bf16.msra.mxu0 0
        %2016 = vmatpush.bf16.msra.mxu0 0
        %2017 = vmatpush.bf16.msra.mxu0 0
        %2018 = vmatpush.bf16.msra.mxu0 0
        %2019 = vmatpush.bf16.msra.mxu0 %v2007
        %2020 = vmatpush.bf16.msra.mxu0 %v2006
        %2021 = vmatmul.bf16.gmra.mxu0 %v2011
        %v2022 = vpop.f32.mrf.mxu0
        %v2023 = vadd.f32 %v1993, %v2022
        %v2024 = vpop.f32.mrf.mxu0
        %2025 = vdwg.mxu0
        %v2026 = vxor.u32 %v2023, 2147483648
        %v2027 = vmul.f32 %v2026, 1.442695
        %v2028 = vpow.pop %v2027
        %v2029 = vadd.f32 %v2028, 1.0
        %v2030 = vrcp.pop %v2029
        %v2031 = vmul.f32 %v2029, %v2030
        %v2032 = vsub.f32 1.0, %v2031
        %v2033 = vmul.f32 %v2030, %v2032
        %v2034 = vadd.f32 %v2030, %v2033
        %vm2035 = vweird.f32 %v2029
        %vm2036 = vweird.f32 %v2030
        %vm2037 = vmor %vm2035, %vm2036
        %v2038 = vsel %vm2037, %v2030, %v2034
        %v2039 = vand.u32 2147483647, %v2029
        %vm2040 = vcmp.eq.f32.partialorder %v2039, 8.507059e+37
        %v2041 = vand.u32 %v2029, 2147483648
        %v2042 = vor.u32 1.1754944e-38, %v2041
        %v2043 = vsel %vm2040, %v2042, %v2038
        %v2044 = vmul.f32 1.0, %v2043
        %v2045 = vsel %vm991, %v2044, %v2023
        %s2046 = scalar_lea.vmem %s646, 24
        %2047 = vst [vmem:[%s2046] sm:$0xff] %v2045
        %2048 = vst [vmem:[#allocation2] sm:$0xff] %v2045
        %v2049 = vld [vmem:[#allocation2] sm:$0xff]
        %v2050 = vpack.c.bf16 %v2049, %v2049
        %v2051 = vld [vmem:[%s2] sm:$0xf]
        %v2052 = vld [vmem:[%s2 + $0x4] sm:$0xf]
        %v2053 = vld [vmem:[%s2 + $0x8] sm:$0xf]
        %v2054 = vld [vmem:[%s2 + $0xc] sm:$0xf]
        %v2055 = vld [vmem:[%s2 + $0x10] sm:$0xf]
        %v2056 = vld [vmem:[%s2 + $0x14] sm:$0xf]
        %v2057 = vld [vmem:[%s2 + $0x18] sm:$0xf]
        %v2058 = vld [vmem:[%s2 + $0x1c] sm:$0xf]
        %v2059 = vld [vmem:[%s2 + $0x20] sm:$0xf]
        %v2060 = vld [vmem:[%s2 + $0x24] sm:$0xf]
        %v2061 = vld [vmem:[%s2 + $0x28] sm:$0xf]
        %v2062 = vld [vmem:[%s2 + $0x2c] sm:$0xf]
        %v2063 = vld [vmem:[%s2 + $0x30] sm:$0xf]
        %v2064 = vld [vmem:[%s2 + $0x34] sm:$0xf]
        %v2065 = vld [vmem:[%s2 + $0x38] sm:$0xf]
        %v2066 = vld [vmem:[%s2 + $0x3c] sm:$0xf]
        %v2067 = vld [vmem:[%s3] sm:$0x1]
        %v2069 = vperm.slane %v2067, 0
        %v2087 = vunpack.c.l.b16 %v2051
        %v2088 = vunpack.c.l.b16 %v2052
        %v2089 = vunpack.c.l.b16 %v2053
        %v2090 = vunpack.c.l.b16 %v2054
        %v2091 = vunpack.c.l.b16 %v2055
        %v2092 = vunpack.c.l.b16 %v2056
        %v2093 = vunpack.c.l.b16 %v2057
        %v2094 = vunpack.c.l.b16 %v2058
        %v2095 = vunpack.c.l.b16 %v2059
        %v2096 = vunpack.c.l.b16 %v2060
        %v2097 = vunpack.c.l.b16 %v2061
        %v2098 = vunpack.c.l.b16 %v2062
        %v2099 = vunpack.c.l.b16 %v2063
        %v2100 = vunpack.c.l.b16 %v2064
        %v2101 = vunpack.c.l.b16 %v2065
        %v2102 = vunpack.c.l.b16 %v2066
        %v2103 = vpack.c.b16 %v2088, %v2087
        %v2104 = vpack.c.b16 %v2090, %v2089
        %v2105 = vpack.c.b16 %v2092, %v2091
        %v2106 = vpack.c.b16 %v2094, %v2093
        %v2107 = vpack.c.b16 %v2096, %v2095
        %v2108 = vpack.c.b16 %v2098, %v2097
        %v2109 = vpack.c.b16 %v2100, %v2099
        %v2110 = vpack.c.b16 %v2102, %v2101
        %2119 = vmatpush.bf16.msra.mxu0 %v2110
        %2120 = vmatpush.bf16.msra.mxu0 %v2109
        %2121 = vmatpush.bf16.msra.mxu0 %v2108
        %2122 = vmatpush.bf16.msra.mxu0 %v2107
        %2123 = vmatpush.bf16.msra.mxu0 %v2106
        %2124 = vmatpush.bf16.msra.mxu0 %v2105
        %2125 = vmatpush.bf16.msra.mxu0 %v2104
        %2126 = vmatpush.bf16.msra.mxu0 %v2103
        %2127 = vmatmul.bf16.gmra.mxu0 %v2050
        %v2128 = vpop.f32.mrf.mxu0
        %v2129 = vadd.f32 %v2069, %v2128
        %v2130 = vpop.f32.mrf.mxu0
        %2131 = vdwg.mxu0
        %v2132 = vmax.f32 %v2129, 0.0
        %v2133 = vpack.c.bf16 %v2132, %v2132
        %v2134 = vld [vmem:[%s4] sm:$0xf]
        %v2135 = vld [vmem:[%s4 + $0x4] sm:$0xf]
        %v2136 = vld [vmem:[%s4 + $0x8] sm:$0xf]
        %v2137 = vld [vmem:[%s4 + $0xc] sm:$0xf]
        %v2138 = vld [vmem:[%s5] sm:$0x1]
        %v2140 = vperm.slane %v2138, 0
        %v2146 = vunpack.c.l.b16 %v2134
        %v2147 = vunpack.c.l.b16 %v2135
        %v2148 = vunpack.c.l.b16 %v2136
        %v2149 = vunpack.c.l.b16 %v2137
        %v2150 = vpack.c.b16 %v2147, %v2146
        %v2151 = vpack.c.b16 %v2149, %v2148
        %v2155 = vsel %vm768, %v2133, 0
        %2157 = vmatpush.bf16.msra.mxu0 0
        %2158 = vmatpush.bf16.msra.mxu0 0
        %2159 = vmatpush.bf16.msra.mxu0 0
        %2160 = vmatpush.bf16.msra.mxu0 0
        %2161 = vmatpush.bf16.msra.mxu0 0
        %2162 = vmatpush.bf16.msra.mxu0 0
        %2163 = vmatpush.bf16.msra.mxu0 %v2151
        %2164 = vmatpush.bf16.msra.mxu0 %v2150
        %2165 = vmatmul.bf16.gmra.mxu0 %v2155
        %v2166 = vpop.f32.mrf.mxu0
        %v2167 = vadd.f32 %v2140, %v2166
        %v2168 = vpop.f32.mrf.mxu0
        %2169 = vdwg.mxu0
        %v2170 = vmax.f32 %v2167, 0.0
        %s2171 = scalar_lea.vmem %s565, 32 [#allocation3]
        %v2172 = vld [vmem:[%s2171] sm:$0xff]
        %v2173 = vpack.c.bf16 %v2170, %v2170
        %v2174 = vld [vmem:[%s6] sm:$0xf]
        %v2175 = vld [vmem:[%s6 + $0x4] sm:$0xf]
        %v2176 = vld [vmem:[%s6 + $0x8] sm:$0xf]
        %v2177 = vld [vmem:[%s6 + $0xc] sm:$0xf]
        %v2178 = vpack.c.bf16 %v2172, %v2172
        %v2179 = vld [vmem:[%s7] sm:$0xf]
        %v2180 = vld [vmem:[%s7 + $0x4] sm:$0xf]
        %v2181 = vld [vmem:[%s7 + $0x8] sm:$0xf]
        %v2182 = vld [vmem:[%s7 + $0xc] sm:$0xf]
        %v2187 = vunpack.c.l.b16 %v2179
        %v2188 = vunpack.c.l.b16 %v2180
        %v2189 = vunpack.c.l.b16 %v2181
        %v2190 = vunpack.c.l.b16 %v2182
        %v2191 = vpack.c.b16 %v2188, %v2187
        %v2192 = vpack.c.b16 %v2190, %v2189
        %v2196 = vsel %vm768, %v2178, 0
        %2198 = vmatpush.bf16.msra.mxu0 0
        %2199 = vmatpush.bf16.msra.mxu0 0
        %2200 = vmatpush.bf16.msra.mxu0 0
        %2201 = vmatpush.bf16.msra.mxu0 0
        %2202 = vmatpush.bf16.msra.mxu0 0
        %2203 = vmatpush.bf16.msra.mxu0 0
        %2204 = vmatpush.bf16.msra.mxu0 %v2192
        %2205 = vmatpush.bf16.msra.mxu0 %v2191
        %2206 = vmatmul.bf16.gmra.mxu0 %v2196
        %v2207 = vpop.f32.mrf.mxu0
        %v2208 = vadd.f32 0.0, %v2207
        %v2209 = vpop.f32.mrf.mxu0
        %2210 = vdwg.mxu0
        %v2215 = vunpack.c.l.b16 %v2174
        %v2216 = vunpack.c.l.b16 %v2175
        %v2217 = vunpack.c.l.b16 %v2176
        %v2218 = vunpack.c.l.b16 %v2177
        %v2219 = vpack.c.b16 %v2216, %v2215
        %v2220 = vpack.c.b16 %v2218, %v2217
        %v2224 = vsel %vm768, %v2173, 0
        %2226 = vmatpush.bf16.msra.mxu0 0
        %2227 = vmatpush.bf16.msra.mxu0 0
        %2228 = vmatpush.bf16.msra.mxu0 0
        %2229 = vmatpush.bf16.msra.mxu0 0
        %2230 = vmatpush.bf16.msra.mxu0 0
        %2231 = vmatpush.bf16.msra.mxu0 0
        %2232 = vmatpush.bf16.msra.mxu0 %v2220
        %2233 = vmatpush.bf16.msra.mxu0 %v2219
        %2234 = vmatmul.bf16.gmra.mxu0 %v2224
        %v2235 = vpop.f32.mrf.mxu0
        %v2236 = vadd.f32 %v2208, %v2235
        %v2237 = vpop.f32.mrf.mxu0
        %2238 = vdwg.mxu0
        %v2239 = vld [vmem:[#allocation12] sm:$0xff]
        %v2240 = vpack.c.bf16 %v2239, %v2239
        %v2241 = vld [vmem:[%s8] sm:$0xf]
        %v2242 = vld [vmem:[%s8 + $0x4] sm:$0xf]
        %v2243 = vld [vmem:[%s8 + $0x8] sm:$0xf]
        %v2244 = vld [vmem:[%s8 + $0xc] sm:$0xf]
        %v2249 = vunpack.c.l.b16 %v2241
        %v2250 = vunpack.c.l.b16 %v2242
        %v2251 = vunpack.c.l.b16 %v2243
        %v2252 = vunpack.c.l.b16 %v2244
        %v2253 = vpack.c.b16 %v2250, %v2249
        %v2254 = vpack.c.b16 %v2252, %v2251
        %v2258 = vsel %vm768, %v2240, 0
        %2260 = vmatpush.bf16.msra.mxu0 0
        %2261 = vmatpush.bf16.msra.mxu0 0
        %2262 = vmatpush.bf16.msra.mxu0 0
        %2263 = vmatpush.bf16.msra.mxu0 0
        %2264 = vmatpush.bf16.msra.mxu0 0
        %2265 = vmatpush.bf16.msra.mxu0 0
        %2266 = vmatpush.bf16.msra.mxu0 %v2254
        %2267 = vmatpush.bf16.msra.mxu0 %v2253
        %2268 = vmatmul.bf16.gmra.mxu0 %v2258
        %v2269 = vpop.f32.mrf.mxu0
        %v2270 = vadd.f32 0.0, %v2269
        %v2271 = vpop.f32.mrf.mxu0
        %2272 = vdwg.mxu0
        %v2273 = vadd.f32 %v2236, %v2270
        %v2274 = vld [vmem:[#allocation6] sm:$0x1]
        %v2276 = vperm.slane %v2274, 0
        %v2278 = vadd.f32 %v2273, %v2276
        %v2279 = vxor.u32 %v2278, 2147483648
        %v2280 = vmul.f32 %v2279, 1.442695
        %v2281 = vpow.pop %v2280
        %v2282 = vadd.f32 %v2281, 1.0
        %v2283 = vrcp.pop %v2282
        %v2284 = vmul.f32 %v2282, %v2283
        %v2285 = vsub.f32 1.0, %v2284
        %v2286 = vmul.f32 %v2283, %v2285
        %v2287 = vadd.f32 %v2283, %v2286
        %vm2288 = vweird.f32 %v2282
        %vm2289 = vweird.f32 %v2283
        %vm2290 = vmor %vm2288, %vm2289
        %v2291 = vsel %vm2290, %v2283, %v2287
        %v2292 = vand.u32 2147483647, %v2282
        %vm2293 = vcmp.eq.f32.partialorder %v2292, 8.507059e+37
        %v2294 = vand.u32 %v2282, 2147483648
        %v2295 = vor.u32 1.1754944e-38, %v2294
        %v2296 = vsel %vm2293, %v2295, %v2291
        %v2297 = vmul.f32 1.0, %v2296
        %v2298 = vtanh.pop %v2278
        %v2299 = vld [vmem:[#allocation13] sm:$0xff]
        %2301 = vrot.lane.b32.xlu0 %v2299, 32
        %v2302 = vpop.permute.xlu0 %2301
        %v2304 = vmul.f32 %v2297, %v2302
        %2306 = vrot.lane.b32.xlu0 %v2298, 64
        %v2307 = vpop.permute.xlu0 %2306
        %v2309 = vmul.f32 %v2297, %v2307
        %2311 = vrot.lane.b32.xlu0 %v2309, 32
        %v2312 = vpop.permute.xlu0 %2311
        %v2314 = vadd.f32 %v2304, %v2312
        %v2315 = vtanh.pop %v2314
        %2317 = vrot.lane.b32.xlu0 %v2315, 64
        %v2318 = vpop.permute.xlu0 %2317
        %v2320 = vmul.f32 %v2297, %v2318
        %2322 = vrot.lane.b32.xlu0 %v2314, 96
        %v2323 = vpop.permute.xlu0 %2322
        %2325 = vst.msk [vmem:[#allocation13] sm:$0xff] %vm768, %v2323
        %2327 = vrot.lane.b32.xlu0 %v2320, 32
        %v2328 = vpop.permute.xlu0 %2327
        %2330 = vst.msk [vmem:[#allocation12] sm:$0xff] %vm768, %v2328
        %v2331 = vpack.c.bf16 %v2320, %v2320
        %v2332 = vld [vmem:[%s10] sm:$0xf]
        %v2333 = vld [vmem:[%s10 + $0x4] sm:$0xf]
        %v2334 = vld [vmem:[%s10 + $0x8] sm:$0xf]
        %v2335 = vld [vmem:[%s10 + $0xc] sm:$0xf]
        %v2336 = vld [vmem:[#allocation8] sm:$0x1]
        %v2338 = vperm.slane %v2336, 0
        %2341 = vrot.lane.b32.xlu0 %v2331, 32
        %v2342 = vpop.permute.xlu0 %2341
        %v2347 = vunpack.c.l.b16 %v2332
        %v2348 = vunpack.c.l.b16 %v2333
        %v2349 = vunpack.c.l.b16 %v2334
        %v2350 = vunpack.c.l.b16 %v2335
        %v2351 = vpack.c.b16 %v2348, %v2347
        %v2352 = vpack.c.b16 %v2350, %v2349
        %v2356 = vsel %vm768, %v2342, 0
        %2358 = vmatpush.bf16.msra.mxu0 0
        %2359 = vmatpush.bf16.msra.mxu0 0
        %2360 = vmatpush.bf16.msra.mxu0 0
        %2361 = vmatpush.bf16.msra.mxu0 0
        %2362 = vmatpush.bf16.msra.mxu0 0
        %2363 = vmatpush.bf16.msra.mxu0 0
        %2364 = vmatpush.bf16.msra.mxu0 %v2352
        %2365 = vmatpush.bf16.msra.mxu0 %v2351
        %2366 = vmatmul.bf16.gmra.mxu0 %v2356
        %v2367 = vpop.f32.mrf.mxu0
        %v2368 = vadd.f32 %v2338, %v2367
        %v2369 = vpop.f32.mrf.mxu0
        %2370 = vdwg.mxu0
        %v2371 = vxor.u32 %v2368, 2147483648
        %v2372 = vmul.f32 %v2371, 1.442695
        %v2373 = vpow.pop %v2372
        %v2374 = vadd.f32 %v2373, 1.0
        %v2375 = vrcp.pop %v2374
        %v2376 = vmul.f32 %v2374, %v2375
        %v2377 = vsub.f32 1.0, %v2376
        %v2378 = vmul.f32 %v2375, %v2377
        %v2379 = vadd.f32 %v2375, %v2378
        %vm2380 = vweird.f32 %v2374
        %vm2381 = vweird.f32 %v2375
        %vm2382 = vmor %vm2380, %vm2381
        %v2383 = vsel %vm2382, %v2375, %v2379
        %v2384 = vand.u32 2147483647, %v2374
        %vm2385 = vcmp.eq.f32.partialorder %v2384, 8.507059e+37
        %v2386 = vand.u32 %v2374, 2147483648
        %v2387 = vor.u32 1.1754944e-38, %v2386
        %v2388 = vsel %vm2385, %v2387, %v2383
        %v2389 = vmul.f32 1.0, %v2388
        %v2390 = vsel %vm991, %v2389, %v2368
        %s2391 = scalar_lea.vmem %s646, 32
        %2392 = vst [vmem:[%s2391] sm:$0xff] %v2390
        %2393 = vst [vmem:[#allocation2] sm:$0xff] %v2390
        %v2394 = vld [vmem:[#allocation2] sm:$0xff]
        %v2395 = vpack.c.bf16 %v2394, %v2394
        %v2396 = vld [vmem:[%s2] sm:$0xf]
        %v2397 = vld [vmem:[%s2 + $0x4] sm:$0xf]
        %v2398 = vld [vmem:[%s2 + $0x8] sm:$0xf]
        %v2399 = vld [vmem:[%s2 + $0xc] sm:$0xf]
        %v2400 = vld [vmem:[%s2 + $0x10] sm:$0xf]
        %v2401 = vld [vmem:[%s2 + $0x14] sm:$0xf]
        %v2402 = vld [vmem:[%s2 + $0x18] sm:$0xf]
        %v2403 = vld [vmem:[%s2 + $0x1c] sm:$0xf]
        %v2404 = vld [vmem:[%s2 + $0x20] sm:$0xf]
        %v2405 = vld [vmem:[%s2 + $0x24] sm:$0xf]
        %v2406 = vld [vmem:[%s2 + $0x28] sm:$0xf]
        %v2407 = vld [vmem:[%s2 + $0x2c] sm:$0xf]
        %v2408 = vld [vmem:[%s2 + $0x30] sm:$0xf]
        %v2409 = vld [vmem:[%s2 + $0x34] sm:$0xf]
        %v2410 = vld [vmem:[%s2 + $0x38] sm:$0xf]
        %v2411 = vld [vmem:[%s2 + $0x3c] sm:$0xf]
        %v2412 = vld [vmem:[%s3] sm:$0x1]
        %v2414 = vperm.slane %v2412, 0
        %v2432 = vunpack.c.l.b16 %v2396
        %v2433 = vunpack.c.l.b16 %v2397
        %v2434 = vunpack.c.l.b16 %v2398
        %v2435 = vunpack.c.l.b16 %v2399
        %v2436 = vunpack.c.l.b16 %v2400
        %v2437 = vunpack.c.l.b16 %v2401
        %v2438 = vunpack.c.l.b16 %v2402
        %v2439 = vunpack.c.l.b16 %v2403
        %v2440 = vunpack.c.l.b16 %v2404
        %v2441 = vunpack.c.l.b16 %v2405
        %v2442 = vunpack.c.l.b16 %v2406
        %v2443 = vunpack.c.l.b16 %v2407
        %v2444 = vunpack.c.l.b16 %v2408
        %v2445 = vunpack.c.l.b16 %v2409
        %v2446 = vunpack.c.l.b16 %v2410
        %v2447 = vunpack.c.l.b16 %v2411
        %v2448 = vpack.c.b16 %v2433, %v2432
        %v2449 = vpack.c.b16 %v2435, %v2434
        %v2450 = vpack.c.b16 %v2437, %v2436
        %v2451 = vpack.c.b16 %v2439, %v2438
        %v2452 = vpack.c.b16 %v2441, %v2440
        %v2453 = vpack.c.b16 %v2443, %v2442
        %v2454 = vpack.c.b16 %v2445, %v2444
        %v2455 = vpack.c.b16 %v2447, %v2446
        %2464 = vmatpush.bf16.msra.mxu0 %v2455
        %2465 = vmatpush.bf16.msra.mxu0 %v2454
        %2466 = vmatpush.bf16.msra.mxu0 %v2453
        %2467 = vmatpush.bf16.msra.mxu0 %v2452
        %2468 = vmatpush.bf16.msra.mxu0 %v2451
        %2469 = vmatpush.bf16.msra.mxu0 %v2450
        %2470 = vmatpush.bf16.msra.mxu0 %v2449
        %2471 = vmatpush.bf16.msra.mxu0 %v2448
        %2472 = vmatmul.bf16.gmra.mxu0 %v2395
        %v2473 = vpop.f32.mrf.mxu0
        %v2474 = vadd.f32 %v2414, %v2473
        %v2475 = vpop.f32.mrf.mxu0
        %2476 = vdwg.mxu0
        %v2477 = vmax.f32 %v2474, 0.0
        %v2478 = vpack.c.bf16 %v2477, %v2477
        %v2479 = vld [vmem:[%s4] sm:$0xf]
        %v2480 = vld [vmem:[%s4 + $0x4] sm:$0xf]
        %v2481 = vld [vmem:[%s4 + $0x8] sm:$0xf]
        %v2482 = vld [vmem:[%s4 + $0xc] sm:$0xf]
        %v2483 = vld [vmem:[%s5] sm:$0x1]
        %v2485 = vperm.slane %v2483, 0
        %v2491 = vunpack.c.l.b16 %v2479
        %v2492 = vunpack.c.l.b16 %v2480
        %v2493 = vunpack.c.l.b16 %v2481
        %v2494 = vunpack.c.l.b16 %v2482
        %v2495 = vpack.c.b16 %v2492, %v2491
        %v2496 = vpack.c.b16 %v2494, %v2493
        %v2500 = vsel %vm768, %v2478, 0
        %2502 = vmatpush.bf16.msra.mxu0 0
        %2503 = vmatpush.bf16.msra.mxu0 0
        %2504 = vmatpush.bf16.msra.mxu0 0
        %2505 = vmatpush.bf16.msra.mxu0 0
        %2506 = vmatpush.bf16.msra.mxu0 0
        %2507 = vmatpush.bf16.msra.mxu0 0
        %2508 = vmatpush.bf16.msra.mxu0 %v2496
        %2509 = vmatpush.bf16.msra.mxu0 %v2495
        %2510 = vmatmul.bf16.gmra.mxu0 %v2500
        %v2511 = vpop.f32.mrf.mxu0
        %v2512 = vadd.f32 %v2485, %v2511
        %v2513 = vpop.f32.mrf.mxu0
        %2514 = vdwg.mxu0
        %v2515 = vmax.f32 %v2512, 0.0
        %s2516 = scalar_lea.vmem %s565, 40 [#allocation3]
        %v2517 = vld [vmem:[%s2516] sm:$0xff]
        %v2518 = vpack.c.bf16 %v2515, %v2515
        %v2519 = vld [vmem:[%s6] sm:$0xf]
        %v2520 = vld [vmem:[%s6 + $0x4] sm:$0xf]
        %v2521 = vld [vmem:[%s6 + $0x8] sm:$0xf]
        %v2522 = vld [vmem:[%s6 + $0xc] sm:$0xf]
        %v2523 = vpack.c.bf16 %v2517, %v2517
        %v2524 = vld [vmem:[%s7] sm:$0xf]
        %v2525 = vld [vmem:[%s7 + $0x4] sm:$0xf]
        %v2526 = vld [vmem:[%s7 + $0x8] sm:$0xf]
        %v2527 = vld [vmem:[%s7 + $0xc] sm:$0xf]
        %v2532 = vunpack.c.l.b16 %v2524
        %v2533 = vunpack.c.l.b16 %v2525
        %v2534 = vunpack.c.l.b16 %v2526
        %v2535 = vunpack.c.l.b16 %v2527
        %v2536 = vpack.c.b16 %v2533, %v2532
        %v2537 = vpack.c.b16 %v2535, %v2534
        %v2541 = vsel %vm768, %v2523, 0
        %2543 = vmatpush.bf16.msra.mxu0 0
        %2544 = vmatpush.bf16.msra.mxu0 0
        %2545 = vmatpush.bf16.msra.mxu0 0
        %2546 = vmatpush.bf16.msra.mxu0 0
        %2547 = vmatpush.bf16.msra.mxu0 0
        %2548 = vmatpush.bf16.msra.mxu0 0
        %2549 = vmatpush.bf16.msra.mxu0 %v2537
        %2550 = vmatpush.bf16.msra.mxu0 %v2536
        %2551 = vmatmul.bf16.gmra.mxu0 %v2541
        %v2552 = vpop.f32.mrf.mxu0
        %v2553 = vadd.f32 0.0, %v2552
        %v2554 = vpop.f32.mrf.mxu0
        %2555 = vdwg.mxu0
        %v2560 = vunpack.c.l.b16 %v2519
        %v2561 = vunpack.c.l.b16 %v2520
        %v2562 = vunpack.c.l.b16 %v2521
        %v2563 = vunpack.c.l.b16 %v2522
        %v2564 = vpack.c.b16 %v2561, %v2560
        %v2565 = vpack.c.b16 %v2563, %v2562
        %v2569 = vsel %vm768, %v2518, 0
        %2571 = vmatpush.bf16.msra.mxu0 0
        %2572 = vmatpush.bf16.msra.mxu0 0
        %2573 = vmatpush.bf16.msra.mxu0 0
        %2574 = vmatpush.bf16.msra.mxu0 0
        %2575 = vmatpush.bf16.msra.mxu0 0
        %2576 = vmatpush.bf16.msra.mxu0 0
        %2577 = vmatpush.bf16.msra.mxu0 %v2565
        %2578 = vmatpush.bf16.msra.mxu0 %v2564
        %2579 = vmatmul.bf16.gmra.mxu0 %v2569
        %v2580 = vpop.f32.mrf.mxu0
        %v2581 = vadd.f32 %v2553, %v2580
        %v2582 = vpop.f32.mrf.mxu0
        %2583 = vdwg.mxu0
        %v2584 = vld [vmem:[#allocation12] sm:$0xff]
        %v2585 = vpack.c.bf16 %v2584, %v2584
        %v2586 = vld [vmem:[%s8] sm:$0xf]
        %v2587 = vld [vmem:[%s8 + $0x4] sm:$0xf]
        %v2588 = vld [vmem:[%s8 + $0x8] sm:$0xf]
        %v2589 = vld [vmem:[%s8 + $0xc] sm:$0xf]
        %v2594 = vunpack.c.l.b16 %v2586
        %v2595 = vunpack.c.l.b16 %v2587
        %v2596 = vunpack.c.l.b16 %v2588
        %v2597 = vunpack.c.l.b16 %v2589
        %v2598 = vpack.c.b16 %v2595, %v2594
        %v2599 = vpack.c.b16 %v2597, %v2596
        %v2603 = vsel %vm768, %v2585, 0
        %2605 = vmatpush.bf16.msra.mxu0 0
        %2606 = vmatpush.bf16.msra.mxu0 0
        %2607 = vmatpush.bf16.msra.mxu0 0
        %2608 = vmatpush.bf16.msra.mxu0 0
        %2609 = vmatpush.bf16.msra.mxu0 0
        %2610 = vmatpush.bf16.msra.mxu0 0
        %2611 = vmatpush.bf16.msra.mxu0 %v2599
        %2612 = vmatpush.bf16.msra.mxu0 %v2598
        %2613 = vmatmul.bf16.gmra.mxu0 %v2603
        %v2614 = vpop.f32.mrf.mxu0
        %v2615 = vadd.f32 0.0, %v2614
        %v2616 = vpop.f32.mrf.mxu0
        %2617 = vdwg.mxu0
        %v2618 = vadd.f32 %v2581, %v2615
        %v2619 = vld [vmem:[#allocation6] sm:$0x1]
        %v2621 = vperm.slane %v2619, 0
        %v2623 = vadd.f32 %v2618, %v2621
        %v2624 = vxor.u32 %v2623, 2147483648
        %v2625 = vmul.f32 %v2624, 1.442695
        %v2626 = vpow.pop %v2625
        %v2627 = vadd.f32 %v2626, 1.0
        %v2628 = vrcp.pop %v2627
        %v2629 = vmul.f32 %v2627, %v2628
        %v2630 = vsub.f32 1.0, %v2629
        %v2631 = vmul.f32 %v2628, %v2630
        %v2632 = vadd.f32 %v2628, %v2631
        %vm2633 = vweird.f32 %v2627
        %vm2634 = vweird.f32 %v2628
        %vm2635 = vmor %vm2633, %vm2634
        %v2636 = vsel %vm2635, %v2628, %v2632
        %v2637 = vand.u32 2147483647, %v2627
        %vm2638 = vcmp.eq.f32.partialorder %v2637, 8.507059e+37
        %v2639 = vand.u32 %v2627, 2147483648
        %v2640 = vor.u32 1.1754944e-38, %v2639
        %v2641 = vsel %vm2638, %v2640, %v2636
        %v2642 = vmul.f32 1.0, %v2641
        %v2643 = vtanh.pop %v2623
        %v2644 = vld [vmem:[#allocation13] sm:$0xff]
        %2646 = vrot.lane.b32.xlu0 %v2644, 32
        %v2647 = vpop.permute.xlu0 %2646
        %v2649 = vmul.f32 %v2642, %v2647
        %2651 = vrot.lane.b32.xlu0 %v2643, 64
        %v2652 = vpop.permute.xlu0 %2651
        %v2654 = vmul.f32 %v2642, %v2652
        %2656 = vrot.lane.b32.xlu0 %v2654, 32
        %v2657 = vpop.permute.xlu0 %2656
        %v2659 = vadd.f32 %v2649, %v2657
        %v2660 = vtanh.pop %v2659
        %2662 = vrot.lane.b32.xlu0 %v2660, 64
        %v2663 = vpop.permute.xlu0 %2662
        %v2665 = vmul.f32 %v2642, %v2663
        %2667 = vrot.lane.b32.xlu0 %v2659, 96
        %v2668 = vpop.permute.xlu0 %2667
        %2670 = vst.msk [vmem:[#allocation13] sm:$0xff] %vm768, %v2668
        %2672 = vrot.lane.b32.xlu0 %v2665, 32
        %v2673 = vpop.permute.xlu0 %2672
        %2675 = vst.msk [vmem:[#allocation12] sm:$0xff] %vm768, %v2673
        %v2676 = vpack.c.bf16 %v2665, %v2665
        %v2677 = vld [vmem:[%s10] sm:$0xf]
        %v2678 = vld [vmem:[%s10 + $0x4] sm:$0xf]
        %v2679 = vld [vmem:[%s10 + $0x8] sm:$0xf]
        %v2680 = vld [vmem:[%s10 + $0xc] sm:$0xf]
        %v2681 = vld [vmem:[#allocation8] sm:$0x1]
        %v2683 = vperm.slane %v2681, 0
        %2686 = vrot.lane.b32.xlu0 %v2676, 32
        %v2687 = vpop.permute.xlu0 %2686
        %v2692 = vunpack.c.l.b16 %v2677
        %v2693 = vunpack.c.l.b16 %v2678
        %v2694 = vunpack.c.l.b16 %v2679
        %v2695 = vunpack.c.l.b16 %v2680
        %v2696 = vpack.c.b16 %v2693, %v2692
        %v2697 = vpack.c.b16 %v2695, %v2694
        %v2701 = vsel %vm768, %v2687, 0
        %2703 = vmatpush.bf16.msra.mxu0 0
        %2704 = vmatpush.bf16.msra.mxu0 0
        %2705 = vmatpush.bf16.msra.mxu0 0
        %2706 = vmatpush.bf16.msra.mxu0 0
        %2707 = vmatpush.bf16.msra.mxu0 0
        %2708 = vmatpush.bf16.msra.mxu0 0
        %2709 = vmatpush.bf16.msra.mxu0 %v2697
        %2710 = vmatpush.bf16.msra.mxu0 %v2696
        %2711 = vmatmul.bf16.gmra.mxu0 %v2701
        %v2712 = vpop.f32.mrf.mxu0
        %v2713 = vadd.f32 %v2683, %v2712
        %v2714 = vpop.f32.mrf.mxu0
        %2715 = vdwg.mxu0
        %v2716 = vxor.u32 %v2713, 2147483648
        %v2717 = vmul.f32 %v2716, 1.442695
        %v2718 = vpow.pop %v2717
        %v2719 = vadd.f32 %v2718, 1.0
        %v2720 = vrcp.pop %v2719
        %v2721 = vmul.f32 %v2719, %v2720
        %v2722 = vsub.f32 1.0, %v2721
        %v2723 = vmul.f32 %v2720, %v2722
        %v2724 = vadd.f32 %v2720, %v2723
        %vm2725 = vweird.f32 %v2719
        %vm2726 = vweird.f32 %v2720
        %vm2727 = vmor %vm2725, %vm2726
        %v2728 = vsel %vm2727, %v2720, %v2724
        %v2729 = vand.u32 2147483647, %v2719
        %vm2730 = vcmp.eq.f32.partialorder %v2729, 8.507059e+37
        %v2731 = vand.u32 %v2719, 2147483648
        %v2732 = vor.u32 1.1754944e-38, %v2731
        %v2733 = vsel %vm2730, %v2732, %v2728
        %v2734 = vmul.f32 1.0, %v2733
        %v2735 = vsel %vm991, %v2734, %v2713
        %s2736 = scalar_lea.vmem %s646, 40
        %2737 = vst [vmem:[%s2736] sm:$0xff] %v2735
        %2738 = vst [vmem:[#allocation2] sm:$0xff] %v2735
        %v2739 = vld [vmem:[#allocation2] sm:$0xff]
        %v2740 = vpack.c.bf16 %v2739, %v2739
        %v2741 = vld [vmem:[%s2] sm:$0xf]
        %v2742 = vld [vmem:[%s2 + $0x4] sm:$0xf]
        %v2743 = vld [vmem:[%s2 + $0x8] sm:$0xf]
        %v2744 = vld [vmem:[%s2 + $0xc] sm:$0xf]
        %v2745 = vld [vmem:[%s2 + $0x10] sm:$0xf]
        %v2746 = vld [vmem:[%s2 + $0x14] sm:$0xf]
        %v2747 = vld [vmem:[%s2 + $0x18] sm:$0xf]
        %v2748 = vld [vmem:[%s2 + $0x1c] sm:$0xf]
        %v2749 = vld [vmem:[%s2 + $0x20] sm:$0xf]
        %v2750 = vld [vmem:[%s2 + $0x24] sm:$0xf]
        %v2751 = vld [vmem:[%s2 + $0x28] sm:$0xf]
        %v2752 = vld [vmem:[%s2 + $0x2c] sm:$0xf]
        %v2753 = vld [vmem:[%s2 + $0x30] sm:$0xf]
        %v2754 = vld [vmem:[%s2 + $0x34] sm:$0xf]
        %v2755 = vld [vmem:[%s2 + $0x38] sm:$0xf]
        %v2756 = vld [vmem:[%s2 + $0x3c] sm:$0xf]
        %v2757 = vld [vmem:[%s3] sm:$0x1]
        %v2759 = vperm.slane %v2757, 0
        %v2777 = vunpack.c.l.b16 %v2741
        %v2778 = vunpack.c.l.b16 %v2742
        %v2779 = vunpack.c.l.b16 %v2743
        %v2780 = vunpack.c.l.b16 %v2744
        %v2781 = vunpack.c.l.b16 %v2745
        %v2782 = vunpack.c.l.b16 %v2746
        %v2783 = vunpack.c.l.b16 %v2747
        %v2784 = vunpack.c.l.b16 %v2748
        %v2785 = vunpack.c.l.b16 %v2749
        %v2786 = vunpack.c.l.b16 %v2750
        %v2787 = vunpack.c.l.b16 %v2751
        %v2788 = vunpack.c.l.b16 %v2752
        %v2789 = vunpack.c.l.b16 %v2753
        %v2790 = vunpack.c.l.b16 %v2754
        %v2791 = vunpack.c.l.b16 %v2755
        %v2792 = vunpack.c.l.b16 %v2756
        %v2793 = vpack.c.b16 %v2778, %v2777
        %v2794 = vpack.c.b16 %v2780, %v2779
        %v2795 = vpack.c.b16 %v2782, %v2781
        %v2796 = vpack.c.b16 %v2784, %v2783
        %v2797 = vpack.c.b16 %v2786, %v2785
        %v2798 = vpack.c.b16 %v2788, %v2787
        %v2799 = vpack.c.b16 %v2790, %v2789
        %v2800 = vpack.c.b16 %v2792, %v2791
        %2809 = vmatpush.bf16.msra.mxu0 %v2800
        %2810 = vmatpush.bf16.msra.mxu0 %v2799
        %2811 = vmatpush.bf16.msra.mxu0 %v2798
        %2812 = vmatpush.bf16.msra.mxu0 %v2797
        %2813 = vmatpush.bf16.msra.mxu0 %v2796
        %2814 = vmatpush.bf16.msra.mxu0 %v2795
        %2815 = vmatpush.bf16.msra.mxu0 %v2794
        %2816 = vmatpush.bf16.msra.mxu0 %v2793
        %2817 = vmatmul.bf16.gmra.mxu0 %v2740
        %v2818 = vpop.f32.mrf.mxu0
        %v2819 = vadd.f32 %v2759, %v2818
        %v2820 = vpop.f32.mrf.mxu0
        %2821 = vdwg.mxu0
        %v2822 = vmax.f32 %v2819, 0.0
        %v2823 = vpack.c.bf16 %v2822, %v2822
        %v2824 = vld [vmem:[%s4] sm:$0xf]
        %v2825 = vld [vmem:[%s4 + $0x4] sm:$0xf]
        %v2826 = vld [vmem:[%s4 + $0x8] sm:$0xf]
        %v2827 = vld [vmem:[%s4 + $0xc] sm:$0xf]
        %v2828 = vld [vmem:[%s5] sm:$0x1]
        %v2830 = vperm.slane %v2828, 0
        %v2836 = vunpack.c.l.b16 %v2824
        %v2837 = vunpack.c.l.b16 %v2825
        %v2838 = vunpack.c.l.b16 %v2826
        %v2839 = vunpack.c.l.b16 %v2827
        %v2840 = vpack.c.b16 %v2837, %v2836
        %v2841 = vpack.c.b16 %v2839, %v2838
        %v2845 = vsel %vm768, %v2823, 0
        %2847 = vmatpush.bf16.msra.mxu0 0
        %2848 = vmatpush.bf16.msra.mxu0 0
        %2849 = vmatpush.bf16.msra.mxu0 0
        %2850 = vmatpush.bf16.msra.mxu0 0
        %2851 = vmatpush.bf16.msra.mxu0 0
        %2852 = vmatpush.bf16.msra.mxu0 0
        %2853 = vmatpush.bf16.msra.mxu0 %v2841
        %2854 = vmatpush.bf16.msra.mxu0 %v2840
        %2855 = vmatmul.bf16.gmra.mxu0 %v2845
        %v2856 = vpop.f32.mrf.mxu0
        %v2857 = vadd.f32 %v2830, %v2856
        %v2858 = vpop.f32.mrf.mxu0
        %2859 = vdwg.mxu0
        %v2860 = vmax.f32 %v2857, 0.0
        %s2861 = scalar_lea.vmem %s565, 48 [#allocation3]
        %v2862 = vld [vmem:[%s2861] sm:$0xff]
        %v2863 = vpack.c.bf16 %v2860, %v2860
        %v2864 = vld [vmem:[%s6] sm:$0xf]
        %v2865 = vld [vmem:[%s6 + $0x4] sm:$0xf]
        %v2866 = vld [vmem:[%s6 + $0x8] sm:$0xf]
        %v2867 = vld [vmem:[%s6 + $0xc] sm:$0xf]
        %v2868 = vpack.c.bf16 %v2862, %v2862
        %v2869 = vld [vmem:[%s7] sm:$0xf]
        %v2870 = vld [vmem:[%s7 + $0x4] sm:$0xf]
        %v2871 = vld [vmem:[%s7 + $0x8] sm:$0xf]
        %v2872 = vld [vmem:[%s7 + $0xc] sm:$0xf]
        %v2877 = vunpack.c.l.b16 %v2869
        %v2878 = vunpack.c.l.b16 %v2870
        %v2879 = vunpack.c.l.b16 %v2871
        %v2880 = vunpack.c.l.b16 %v2872
        %v2881 = vpack.c.b16 %v2878, %v2877
        %v2882 = vpack.c.b16 %v2880, %v2879
        %v2886 = vsel %vm768, %v2868, 0
        %2888 = vmatpush.bf16.msra.mxu0 0
        %2889 = vmatpush.bf16.msra.mxu0 0
        %2890 = vmatpush.bf16.msra.mxu0 0
        %2891 = vmatpush.bf16.msra.mxu0 0
        %2892 = vmatpush.bf16.msra.mxu0 0
        %2893 = vmatpush.bf16.msra.mxu0 0
        %2894 = vmatpush.bf16.msra.mxu0 %v2882
        %2895 = vmatpush.bf16.msra.mxu0 %v2881
        %2896 = vmatmul.bf16.gmra.mxu0 %v2886
        %v2897 = vpop.f32.mrf.mxu0
        %v2898 = vadd.f32 0.0, %v2897
        %v2899 = vpop.f32.mrf.mxu0
        %2900 = vdwg.mxu0
        %v2905 = vunpack.c.l.b16 %v2864
        %v2906 = vunpack.c.l.b16 %v2865
        %v2907 = vunpack.c.l.b16 %v2866
        %v2908 = vunpack.c.l.b16 %v2867
        %v2909 = vpack.c.b16 %v2906, %v2905
        %v2910 = vpack.c.b16 %v2908, %v2907
        %v2914 = vsel %vm768, %v2863, 0
        %2916 = vmatpush.bf16.msra.mxu0 0
        %2917 = vmatpush.bf16.msra.mxu0 0
        %2918 = vmatpush.bf16.msra.mxu0 0
        %2919 = vmatpush.bf16.msra.mxu0 0
        %2920 = vmatpush.bf16.msra.mxu0 0
        %2921 = vmatpush.bf16.msra.mxu0 0
        %2922 = vmatpush.bf16.msra.mxu0 %v2910
        %2923 = vmatpush.bf16.msra.mxu0 %v2909
        %2924 = vmatmul.bf16.gmra.mxu0 %v2914
        %v2925 = vpop.f32.mrf.mxu0
        %v2926 = vadd.f32 %v2898, %v2925
        %v2927 = vpop.f32.mrf.mxu0
        %2928 = vdwg.mxu0
        %v2929 = vld [vmem:[#allocation12] sm:$0xff]
        %v2930 = vpack.c.bf16 %v2929, %v2929
        %v2931 = vld [vmem:[%s8] sm:$0xf]
        %v2932 = vld [vmem:[%s8 + $0x4] sm:$0xf]
        %v2933 = vld [vmem:[%s8 + $0x8] sm:$0xf]
        %v2934 = vld [vmem:[%s8 + $0xc] sm:$0xf]
        %v2939 = vunpack.c.l.b16 %v2931
        %v2940 = vunpack.c.l.b16 %v2932
        %v2941 = vunpack.c.l.b16 %v2933
        %v2942 = vunpack.c.l.b16 %v2934
        %v2943 = vpack.c.b16 %v2940, %v2939
        %v2944 = vpack.c.b16 %v2942, %v2941
        %v2948 = vsel %vm768, %v2930, 0
        %2950 = vmatpush.bf16.msra.mxu0 0
        %2951 = vmatpush.bf16.msra.mxu0 0
        %2952 = vmatpush.bf16.msra.mxu0 0
        %2953 = vmatpush.bf16.msra.mxu0 0
        %2954 = vmatpush.bf16.msra.mxu0 0
        %2955 = vmatpush.bf16.msra.mxu0 0
        %2956 = vmatpush.bf16.msra.mxu0 %v2944
        %2957 = vmatpush.bf16.msra.mxu0 %v2943
        %2958 = vmatmul.bf16.gmra.mxu0 %v2948
        %v2959 = vpop.f32.mrf.mxu0
        %v2960 = vadd.f32 0.0, %v2959
        %v2961 = vpop.f32.mrf.mxu0
        %2962 = vdwg.mxu0
        %v2963 = vadd.f32 %v2926, %v2960
        %v2964 = vld [vmem:[#allocation6] sm:$0x1]
        %v2966 = vperm.slane %v2964, 0
        %v2968 = vadd.f32 %v2963, %v2966
        %v2969 = vxor.u32 %v2968, 2147483648
        %v2970 = vmul.f32 %v2969, 1.442695
        %v2971 = vpow.pop %v2970
        %v2972 = vadd.f32 %v2971, 1.0
        %v2973 = vrcp.pop %v2972
        %v2974 = vmul.f32 %v2972, %v2973
        %v2975 = vsub.f32 1.0, %v2974
        %v2976 = vmul.f32 %v2973, %v2975
        %v2977 = vadd.f32 %v2973, %v2976
        %vm2978 = vweird.f32 %v2972
        %vm2979 = vweird.f32 %v2973
        %vm2980 = vmor %vm2978, %vm2979
        %v2981 = vsel %vm2980, %v2973, %v2977
        %v2982 = vand.u32 2147483647, %v2972
        %vm2983 = vcmp.eq.f32.partialorder %v2982, 8.507059e+37
        %v2984 = vand.u32 %v2972, 2147483648
        %v2985 = vor.u32 1.1754944e-38, %v2984
        %v2986 = vsel %vm2983, %v2985, %v2981
        %v2987 = vmul.f32 1.0, %v2986
        %v2988 = vtanh.pop %v2968
        %v2989 = vld [vmem:[#allocation13] sm:$0xff]
        %2991 = vrot.lane.b32.xlu0 %v2989, 32
        %v2992 = vpop.permute.xlu0 %2991
        %v2994 = vmul.f32 %v2987, %v2992
        %2996 = vrot.lane.b32.xlu0 %v2988, 64
        %v2997 = vpop.permute.xlu0 %2996
        %v2999 = vmul.f32 %v2987, %v2997
        %3001 = vrot.lane.b32.xlu0 %v2999, 32
        %v3002 = vpop.permute.xlu0 %3001
        %v3004 = vadd.f32 %v2994, %v3002
        %v3005 = vtanh.pop %v3004
        %3007 = vrot.lane.b32.xlu0 %v3005, 64
        %v3008 = vpop.permute.xlu0 %3007
        %v3010 = vmul.f32 %v2987, %v3008
        %3012 = vrot.lane.b32.xlu0 %v3004, 96
        %v3013 = vpop.permute.xlu0 %3012
        %3015 = vst.msk [vmem:[#allocation13] sm:$0xff] %vm768, %v3013
        %3017 = vrot.lane.b32.xlu0 %v3010, 32
        %v3018 = vpop.permute.xlu0 %3017
        %3020 = vst.msk [vmem:[#allocation12] sm:$0xff] %vm768, %v3018
        %v3021 = vpack.c.bf16 %v3010, %v3010
        %v3022 = vld [vmem:[%s10] sm:$0xf]
        %v3023 = vld [vmem:[%s10 + $0x4] sm:$0xf]
        %v3024 = vld [vmem:[%s10 + $0x8] sm:$0xf]
        %v3025 = vld [vmem:[%s10 + $0xc] sm:$0xf]
        %v3026 = vld [vmem:[#allocation8] sm:$0x1]
        %v3028 = vperm.slane %v3026, 0
        %3031 = vrot.lane.b32.xlu0 %v3021, 32
        %v3032 = vpop.permute.xlu0 %3031
        %v3037 = vunpack.c.l.b16 %v3022
        %v3038 = vunpack.c.l.b16 %v3023
        %v3039 = vunpack.c.l.b16 %v3024
        %v3040 = vunpack.c.l.b16 %v3025
        %v3041 = vpack.c.b16 %v3038, %v3037
        %v3042 = vpack.c.b16 %v3040, %v3039
        %v3046 = vsel %vm768, %v3032, 0
        %3048 = vmatpush.bf16.msra.mxu0 0
        %3049 = vmatpush.bf16.msra.mxu0 0
        %3050 = vmatpush.bf16.msra.mxu0 0
        %3051 = vmatpush.bf16.msra.mxu0 0
        %3052 = vmatpush.bf16.msra.mxu0 0
        %3053 = vmatpush.bf16.msra.mxu0 0
        %3054 = vmatpush.bf16.msra.mxu0 %v3042
        %3055 = vmatpush.bf16.msra.mxu0 %v3041
        %3056 = vmatmul.bf16.gmra.mxu0 %v3046
        %v3057 = vpop.f32.mrf.mxu0
        %v3058 = vadd.f32 %v3028, %v3057
        %v3059 = vpop.f32.mrf.mxu0
        %3060 = vdwg.mxu0
        %v3061 = vxor.u32 %v3058, 2147483648
        %v3062 = vmul.f32 %v3061, 1.442695
        %v3063 = vpow.pop %v3062
        %v3064 = vadd.f32 %v3063, 1.0
        %v3065 = vrcp.pop %v3064
        %v3066 = vmul.f32 %v3064, %v3065
        %v3067 = vsub.f32 1.0, %v3066
        %v3068 = vmul.f32 %v3065, %v3067
        %v3069 = vadd.f32 %v3065, %v3068
        %vm3070 = vweird.f32 %v3064
        %vm3071 = vweird.f32 %v3065
        %vm3072 = vmor %vm3070, %vm3071
        %v3073 = vsel %vm3072, %v3065, %v3069
        %v3074 = vand.u32 2147483647, %v3064
        %vm3075 = vcmp.eq.f32.partialorder %v3074, 8.507059e+37
        %v3076 = vand.u32 %v3064, 2147483648
        %v3077 = vor.u32 1.1754944e-38, %v3076
        %v3078 = vsel %vm3075, %v3077, %v3073
        %v3079 = vmul.f32 1.0, %v3078
        %v3080 = vsel %vm991, %v3079, %v3058
        %s3081 = scalar_lea.vmem %s646, 48
        %3082 = vst [vmem:[%s3081] sm:$0xff] %v3080
        %3083 = vst [vmem:[#allocation2] sm:$0xff] %v3080
        %v3084 = vld [vmem:[#allocation2] sm:$0xff]
        %v3085 = vpack.c.bf16 %v3084, %v3084
        %v3086 = vld [vmem:[%s2] sm:$0xf]
        %v3087 = vld [vmem:[%s2 + $0x4] sm:$0xf]
        %v3088 = vld [vmem:[%s2 + $0x8] sm:$0xf]
        %v3089 = vld [vmem:[%s2 + $0xc] sm:$0xf]
        %v3090 = vld [vmem:[%s2 + $0x10] sm:$0xf]
        %v3091 = vld [vmem:[%s2 + $0x14] sm:$0xf]
        %v3092 = vld [vmem:[%s2 + $0x18] sm:$0xf]
        %v3093 = vld [vmem:[%s2 + $0x1c] sm:$0xf]
        %v3094 = vld [vmem:[%s2 + $0x20] sm:$0xf]
        %v3095 = vld [vmem:[%s2 + $0x24] sm:$0xf]
        %v3096 = vld [vmem:[%s2 + $0x28] sm:$0xf]
        %v3097 = vld [vmem:[%s2 + $0x2c] sm:$0xf]
        %v3098 = vld [vmem:[%s2 + $0x30] sm:$0xf]
        %v3099 = vld [vmem:[%s2 + $0x34] sm:$0xf]
        %v3100 = vld [vmem:[%s2 + $0x38] sm:$0xf]
        %v3101 = vld [vmem:[%s2 + $0x3c] sm:$0xf]
        %v3102 = vld [vmem:[%s3] sm:$0x1]
        %v3104 = vperm.slane %v3102, 0
        %v3122 = vunpack.c.l.b16 %v3086
        %v3123 = vunpack.c.l.b16 %v3087
        %v3124 = vunpack.c.l.b16 %v3088
        %v3125 = vunpack.c.l.b16 %v3089
        %v3126 = vunpack.c.l.b16 %v3090
        %v3127 = vunpack.c.l.b16 %v3091
        %v3128 = vunpack.c.l.b16 %v3092
        %v3129 = vunpack.c.l.b16 %v3093
        %v3130 = vunpack.c.l.b16 %v3094
        %v3131 = vunpack.c.l.b16 %v3095
        %v3132 = vunpack.c.l.b16 %v3096
        %v3133 = vunpack.c.l.b16 %v3097
        %v3134 = vunpack.c.l.b16 %v3098
        %v3135 = vunpack.c.l.b16 %v3099
        %v3136 = vunpack.c.l.b16 %v3100
        %v3137 = vunpack.c.l.b16 %v3101
        %v3138 = vpack.c.b16 %v3123, %v3122
        %v3139 = vpack.c.b16 %v3125, %v3124
        %v3140 = vpack.c.b16 %v3127, %v3126
        %v3141 = vpack.c.b16 %v3129, %v3128
        %v3142 = vpack.c.b16 %v3131, %v3130
        %v3143 = vpack.c.b16 %v3133, %v3132
        %v3144 = vpack.c.b16 %v3135, %v3134
        %v3145 = vpack.c.b16 %v3137, %v3136
        %3154 = vmatpush.bf16.msra.mxu0 %v3145
        %3155 = vmatpush.bf16.msra.mxu0 %v3144
        %3156 = vmatpush.bf16.msra.mxu0 %v3143
        %3157 = vmatpush.bf16.msra.mxu0 %v3142
        %3158 = vmatpush.bf16.msra.mxu0 %v3141
        %3159 = vmatpush.bf16.msra.mxu0 %v3140
        %3160 = vmatpush.bf16.msra.mxu0 %v3139
        %3161 = vmatpush.bf16.msra.mxu0 %v3138
        %3162 = vmatmul.bf16.gmra.mxu0 %v3085
        %v3163 = vpop.f32.mrf.mxu0
        %v3164 = vadd.f32 %v3104, %v3163
        %v3165 = vpop.f32.mrf.mxu0
        %3166 = vdwg.mxu0
        %v3167 = vmax.f32 %v3164, 0.0
        %v3168 = vpack.c.bf16 %v3167, %v3167
        %v3169 = vld [vmem:[%s4] sm:$0xf]
        %v3170 = vld [vmem:[%s4 + $0x4] sm:$0xf]
        %v3171 = vld [vmem:[%s4 + $0x8] sm:$0xf]
        %v3172 = vld [vmem:[%s4 + $0xc] sm:$0xf]
        %v3173 = vld [vmem:[%s5] sm:$0x1]
        %v3175 = vperm.slane %v3173, 0
        %v3181 = vunpack.c.l.b16 %v3169
        %v3182 = vunpack.c.l.b16 %v3170
        %v3183 = vunpack.c.l.b16 %v3171
        %v3184 = vunpack.c.l.b16 %v3172
        %v3185 = vpack.c.b16 %v3182, %v3181
        %v3186 = vpack.c.b16 %v3184, %v3183
        %v3190 = vsel %vm768, %v3168, 0
        %3192 = vmatpush.bf16.msra.mxu0 0
        %3193 = vmatpush.bf16.msra.mxu0 0
        %3194 = vmatpush.bf16.msra.mxu0 0
        %3195 = vmatpush.bf16.msra.mxu0 0
        %3196 = vmatpush.bf16.msra.mxu0 0
        %3197 = vmatpush.bf16.msra.mxu0 0
        %3198 = vmatpush.bf16.msra.mxu0 %v3186
        %3199 = vmatpush.bf16.msra.mxu0 %v3185
        %3200 = vmatmul.bf16.gmra.mxu0 %v3190
        %v3201 = vpop.f32.mrf.mxu0
        %v3202 = vadd.f32 %v3175, %v3201
        %v3203 = vpop.f32.mrf.mxu0
        %3204 = vdwg.mxu0
        %v3205 = vmax.f32 %v3202, 0.0
        %s3206 = scalar_lea.vmem %s565, 56 [#allocation3]
        %v3207 = vld [vmem:[%s3206] sm:$0xff]
        %v3208 = vpack.c.bf16 %v3205, %v3205
        %v3209 = vld [vmem:[%s6] sm:$0xf]
        %v3210 = vld [vmem:[%s6 + $0x4] sm:$0xf]
        %v3211 = vld [vmem:[%s6 + $0x8] sm:$0xf]
        %v3212 = vld [vmem:[%s6 + $0xc] sm:$0xf]
        %v3213 = vpack.c.bf16 %v3207, %v3207
        %v3214 = vld [vmem:[%s7] sm:$0xf]
        %v3215 = vld [vmem:[%s7 + $0x4] sm:$0xf]
        %v3216 = vld [vmem:[%s7 + $0x8] sm:$0xf]
        %v3217 = vld [vmem:[%s7 + $0xc] sm:$0xf]
        %v3222 = vunpack.c.l.b16 %v3214
        %v3223 = vunpack.c.l.b16 %v3215
        %v3224 = vunpack.c.l.b16 %v3216
        %v3225 = vunpack.c.l.b16 %v3217
        %v3226 = vpack.c.b16 %v3223, %v3222
        %v3227 = vpack.c.b16 %v3225, %v3224
        %v3231 = vsel %vm768, %v3213, 0
        %3233 = vmatpush.bf16.msra.mxu0 0
        %3234 = vmatpush.bf16.msra.mxu0 0
        %3235 = vmatpush.bf16.msra.mxu0 0
        %3236 = vmatpush.bf16.msra.mxu0 0
        %3237 = vmatpush.bf16.msra.mxu0 0
        %3238 = vmatpush.bf16.msra.mxu0 0
        %3239 = vmatpush.bf16.msra.mxu0 %v3227
        %3240 = vmatpush.bf16.msra.mxu0 %v3226
        %3241 = vmatmul.bf16.gmra.mxu0 %v3231
        %v3242 = vpop.f32.mrf.mxu0
        %v3243 = vadd.f32 0.0, %v3242
        %v3244 = vpop.f32.mrf.mxu0
        %3245 = vdwg.mxu0
        %v3250 = vunpack.c.l.b16 %v3209
        %v3251 = vunpack.c.l.b16 %v3210
        %v3252 = vunpack.c.l.b16 %v3211
        %v3253 = vunpack.c.l.b16 %v3212
        %v3254 = vpack.c.b16 %v3251, %v3250
        %v3255 = vpack.c.b16 %v3253, %v3252
        %v3259 = vsel %vm768, %v3208, 0
        %3261 = vmatpush.bf16.msra.mxu0 0
        %3262 = vmatpush.bf16.msra.mxu0 0
        %3263 = vmatpush.bf16.msra.mxu0 0
        %3264 = vmatpush.bf16.msra.mxu0 0
        %3265 = vmatpush.bf16.msra.mxu0 0
        %3266 = vmatpush.bf16.msra.mxu0 0
        %3267 = vmatpush.bf16.msra.mxu0 %v3255
        %3268 = vmatpush.bf16.msra.mxu0 %v3254
        %3269 = vmatmul.bf16.gmra.mxu0 %v3259
        %v3270 = vpop.f32.mrf.mxu0
        %v3271 = vadd.f32 %v3243, %v3270
        %v3272 = vpop.f32.mrf.mxu0
        %3273 = vdwg.mxu0
        %v3274 = vld [vmem:[#allocation12] sm:$0xff]
        %v3275 = vpack.c.bf16 %v3274, %v3274
        %v3276 = vld [vmem:[%s8] sm:$0xf]
        %v3277 = vld [vmem:[%s8 + $0x4] sm:$0xf]
        %v3278 = vld [vmem:[%s8 + $0x8] sm:$0xf]
        %v3279 = vld [vmem:[%s8 + $0xc] sm:$0xf]
        %v3284 = vunpack.c.l.b16 %v3276
        %v3285 = vunpack.c.l.b16 %v3277
        %v3286 = vunpack.c.l.b16 %v3278
        %v3287 = vunpack.c.l.b16 %v3279
        %v3288 = vpack.c.b16 %v3285, %v3284
        %v3289 = vpack.c.b16 %v3287, %v3286
        %v3293 = vsel %vm768, %v3275, 0
        %3295 = vmatpush.bf16.msra.mxu0 0
        %3296 = vmatpush.bf16.msra.mxu0 0
        %3297 = vmatpush.bf16.msra.mxu0 0
        %3298 = vmatpush.bf16.msra.mxu0 0
        %3299 = vmatpush.bf16.msra.mxu0 0
        %3300 = vmatpush.bf16.msra.mxu0 0
        %3301 = vmatpush.bf16.msra.mxu0 %v3289
        %3302 = vmatpush.bf16.msra.mxu0 %v3288
        %3303 = vmatmul.bf16.gmra.mxu0 %v3293
        %v3304 = vpop.f32.mrf.mxu0
        %v3305 = vadd.f32 0.0, %v3304
        %v3306 = vpop.f32.mrf.mxu0
        %3307 = vdwg.mxu0
        %v3308 = vadd.f32 %v3271, %v3305
        %v3309 = vld [vmem:[#allocation6] sm:$0x1]
        %v3311 = vperm.slane %v3309, 0
        %v3313 = vadd.f32 %v3308, %v3311
        %v3314 = vxor.u32 %v3313, 2147483648
        %v3315 = vmul.f32 %v3314, 1.442695
        %v3316 = vpow.pop %v3315
        %v3317 = vadd.f32 %v3316, 1.0
        %v3318 = vrcp.pop %v3317
        %v3319 = vmul.f32 %v3317, %v3318
        %v3320 = vsub.f32 1.0, %v3319
        %v3321 = vmul.f32 %v3318, %v3320
        %v3322 = vadd.f32 %v3318, %v3321
        %vm3323 = vweird.f32 %v3317
        %vm3324 = vweird.f32 %v3318
        %vm3325 = vmor %vm3323, %vm3324
        %v3326 = vsel %vm3325, %v3318, %v3322
        %v3327 = vand.u32 2147483647, %v3317
        %vm3328 = vcmp.eq.f32.partialorder %v3327, 8.507059e+37
        %v3329 = vand.u32 %v3317, 2147483648
        %v3330 = vor.u32 1.1754944e-38, %v3329
        %v3331 = vsel %vm3328, %v3330, %v3326
        %v3332 = vmul.f32 1.0, %v3331
        %v3333 = vtanh.pop %v3313
        %v3334 = vld [vmem:[#allocation13] sm:$0xff]
        %3336 = vrot.lane.b32.xlu0 %v3334, 32
        %v3337 = vpop.permute.xlu0 %3336
        %v3339 = vmul.f32 %v3332, %v3337
        %3341 = vrot.lane.b32.xlu0 %v3333, 64
        %v3342 = vpop.permute.xlu0 %3341
        %v3344 = vmul.f32 %v3332, %v3342
        %3346 = vrot.lane.b32.xlu0 %v3344, 32
        %v3347 = vpop.permute.xlu0 %3346
        %v3349 = vadd.f32 %v3339, %v3347
        %v3350 = vtanh.pop %v3349
        %3352 = vrot.lane.b32.xlu0 %v3350, 64
        %v3353 = vpop.permute.xlu0 %3352
        %v3355 = vmul.f32 %v3332, %v3353
        %3357 = vrot.lane.b32.xlu0 %v3349, 96
        %v3358 = vpop.permute.xlu0 %3357
        %3360 = vst.msk [vmem:[#allocation13] sm:$0xff] %vm768, %v3358
        %3362 = vrot.lane.b32.xlu0 %v3355, 32
        %v3363 = vpop.permute.xlu0 %3362
        %3365 = vst.msk [vmem:[#allocation12] sm:$0xff] %vm768, %v3363
        %v3366 = vpack.c.bf16 %v3355, %v3355
        %v3367 = vld [vmem:[%s10] sm:$0xf]
        %v3368 = vld [vmem:[%s10 + $0x4] sm:$0xf]
        %v3369 = vld [vmem:[%s10 + $0x8] sm:$0xf]
        %v3370 = vld [vmem:[%s10 + $0xc] sm:$0xf]
        %v3371 = vld [vmem:[#allocation8] sm:$0x1]
        %v3373 = vperm.slane %v3371, 0
        %3376 = vrot.lane.b32.xlu0 %v3366, 32
        %v3377 = vpop.permute.xlu0 %3376
        %v3382 = vunpack.c.l.b16 %v3367
        %v3383 = vunpack.c.l.b16 %v3368
        %v3384 = vunpack.c.l.b16 %v3369
        %v3385 = vunpack.c.l.b16 %v3370
        %v3386 = vpack.c.b16 %v3383, %v3382
        %v3387 = vpack.c.b16 %v3385, %v3384
        %v3391 = vsel %vm768, %v3377, 0
        %3393 = vmatpush.bf16.msra.mxu0 0
        %3394 = vmatpush.bf16.msra.mxu0 0
        %3395 = vmatpush.bf16.msra.mxu0 0
        %3396 = vmatpush.bf16.msra.mxu0 0
        %3397 = vmatpush.bf16.msra.mxu0 0
        %3398 = vmatpush.bf16.msra.mxu0 0
        %3399 = vmatpush.bf16.msra.mxu0 %v3387
        %3400 = vmatpush.bf16.msra.mxu0 %v3386
        %3401 = vmatmul.bf16.gmra.mxu0 %v3391
        %v3402 = vpop.f32.mrf.mxu0
        %v3403 = vadd.f32 %v3373, %v3402
        %v3404 = vpop.f32.mrf.mxu0
        %3405 = vdwg.mxu0
        %v3406 = vxor.u32 %v3403, 2147483648
        %v3407 = vmul.f32 %v3406, 1.442695
        %v3408 = vpow.pop %v3407
        %v3409 = vadd.f32 %v3408, 1.0
        %v3410 = vrcp.pop %v3409
        %v3411 = vmul.f32 %v3409, %v3410
        %v3412 = vsub.f32 1.0, %v3411
        %v3413 = vmul.f32 %v3410, %v3412
        %v3414 = vadd.f32 %v3410, %v3413
        %vm3415 = vweird.f32 %v3409
        %vm3416 = vweird.f32 %v3410
        %vm3417 = vmor %vm3415, %vm3416
        %v3418 = vsel %vm3417, %v3410, %v3414
        %v3419 = vand.u32 2147483647, %v3409
        %vm3420 = vcmp.eq.f32.partialorder %v3419, 8.507059e+37
        %v3421 = vand.u32 %v3409, 2147483648
        %v3422 = vor.u32 1.1754944e-38, %v3421
        %v3423 = vsel %vm3420, %v3422, %v3418
        %v3424 = vmul.f32 1.0, %v3423
        %v3425 = vsel %vm991, %v3424, %v3403
        %s3426 = scalar_lea.vmem %s646, 56
        %3427 = vst [vmem:[%s3426] sm:$0xff] %v3425
        %3428 = vst [vmem:[#allocation2] sm:$0xff] %v3425
        %s3429 = smul.u32 8, %s40
        %p3430 = scmp.lt.s32.totalorder %s3429, 15
        %s3431 = scalar_select %p3430, %s3429, 15
        %p3432 = scmp.lt.s32.totalorder %s39, 0
        %s3433 = scalar_select %p3432, %s39, 0
        %s3434 = sadd.s32 %s3433, %s3431
        %s3435 = smul.addr %s3434, 8
        %s3436 = scalar_lea.vmem %s14, %s3435
        // Predicated region
        $region101: #{decoder_generate.1} parent=75 // pred_check
          %p3437 = pneg %p378
        $region102: #{decoder_generate.1} parent=75 // pred_check_branch
          %3439 = sbr.rel (%p3437) target = $region104
        $region103: #{decoder_generate.1} parent=75 // pred_region
          %s3440 = smul.u32 8, %s40
        $region104: #{decoder_generate.1} parent=75 // pred_fallthru
          _
        // Predicated region
        $region105: #{decoder_generate.1} parent=75 // pred_check
          %p3441 = pneg %p404
        $region106: #{decoder_generate.1} parent=75 // pred_check_branch
          %3443 = sbr.rel (%p3441) target = $region108
        $region107: #{decoder_generate.1} parent=75 // pred_region
          %3445 = vsyncadd [#allocation5], 0
          %s3446 = smul.addr %s39, 8
          %s3447 = scalar_lea.hbm %s15, %s3446
          %s3449 = sshll.u32 [#allocation12], 4
          %s3450 = int_to_ptr.vmem [resolvable:$true] %s3449
          %s3451 = sshll.u32 %s3447, 4
          %s3452 = int_to_ptr.hbm [resolvable:$true] %s3451
          %3454 = dma.vmem_to_hbm [thread:$0]  %s3450, 128, %s3452, [#allocation5]
        $region108: #{decoder_generate.1} parent=75 // pred_fallthru
          _
        // Predicated region
        $region109: #{decoder_generate.1} parent=75 // pred_check
          %p3455 = pneg %p430
        $region110: #{decoder_generate.1} parent=75 // pred_check_branch
          %3457 = sbr.rel (%p3455) target = $region112
        $region111: #{decoder_generate.1} parent=75 // pred_region
          %3459 = vsyncadd [#allocation14], 0
          %s3460 = smul.addr %s39, 8
          %s3461 = scalar_lea.hbm %s16, %s3460
          %s3463 = sshll.u32 [#allocation13], 4
          %s3464 = int_to_ptr.vmem [resolvable:$true] %s3463
          %s3465 = sshll.u32 %s3461, 4
          %s3466 = int_to_ptr.hbm [resolvable:$true] %s3465
          %3468 = dma.vmem_to_hbm [thread:$0]  %s3464, 128, %s3466, [#allocation14]
        $region112: #{decoder_generate.1} parent=75 // pred_fallthru
          _
        // Predicated region
        $region113: #{decoder_generate.1} parent=75 // pred_check
          %p3469 = pneg %p404
        $region114: #{decoder_generate.1} parent=75 // pred_check_branch
          %3471 = sbr.rel (%p3469) target = $region116
        $region115: #{decoder_generate.1} parent=75 // pred_region
          %3473 = dma.done [#allocation5], 128
        $region116: #{decoder_generate.1} parent=75 // pred_fallthru
          _
        // Predicated region
        $region117: #{decoder_generate.1} parent=75 // pred_check
          %p3474 = pneg %p430
        $region118: #{decoder_generate.1} parent=75 // pred_check_branch
          %3476 = sbr.rel (%p3474) target = $region120
        $region119: #{decoder_generate.1} parent=75 // pred_region
          %3478 = dma.done [#allocation14], 128
        $region120: #{decoder_generate.1} parent=75 // pred_fallthru
          _
      $region76: #{decoder_generate.1} parent=5 // pred_fallthru
        _
      %p3479 = scmp.le.s32.totalorder 2, %s30
      // Predicated region
      $region121: #{decoder_generate.1} parent=5 // pred_check
        %p3480 = pneg %p3479
      $region122: #{decoder_generate.1} parent=5 // pred_check_branch
        %3482 = sbr.rel (%p3480) target = $region124
      $region123: #{decoder_generate.1} parent=5 // pred_region
        %s3483 = ssub.s32 %s30, 2
        // Predicated region
        $region125: #{decoder_generate.1} parent=123 // pred_check
          %p3484 = pneg %p384
        $region126: #{decoder_generate.1} parent=123 // pred_check_branch
          %3486 = sbr.rel (%p3484) target = $region128
        $region127: #{decoder_generate.1} parent=123 // pred_region
          %s3487 = smul.u32 8, %s42
          %p3488 = scmp.lt.s32.totalorder %s3487, 15
          %s3489 = scalar_select %p3488, %s3487, 15
          %p3490 = scmp.lt.s32.totalorder %s41, 0
          %s3491 = scalar_select %p3490, %s41, 0
          %s3492 = sadd.s32 %s3491, %s3489
          %s3493 = smul.addr %s3492, 8
          %s3494 = scalar_lea.vmem %s14, %s3493
        $region128: #{decoder_generate.1} parent=123 // pred_fallthru
          _
      $region124: #{decoder_generate.1} parent=5 // pred_fallthru
        _
    $region6: #{decoder_generate.1} parent=1 // loop_footer
      %s34 = sadd.s32 1, %s30
    $region7: #{decoder_generate.1} parent=1 // loop_footer_branch
      %29 = sbr.rel target = $region3
    $region8: #{decoder_generate.1} parent=1 // loop_exit
      _
    %3495 = vsyncpa [#allocation4], 1
    %s3496 = scalar_lea.sflag [#allocation4], 1
    %3497 = vsyncpa %s3496, 1
    %3498 = vsyncpa [#allocation7], 1
    %3499 = vsyncpa [#allocation10], 1
    %3500 = vsyncpa [#allocation5], 1
    %s3501 = scalar_lea.sflag [#allocation5], 1
    %3502 = vsyncpa %s3501, 1
    %3503 = vsyncpa [#allocation14], 1

</llo_original>
